<compile_context>
chip_gen: v7x
topology: tpu7x:2x2x1
jax: 0.10.0
libtpu: 0.0.40
codegen_flags: <defaults>
</compile_context>

<pallas_src>
import jax
import jax.numpy as jnp
from jax.experimental import pallas as pl
from jax.experimental.pallas import tpu as pltpu

MATMUL_DTYPE = jnp.bfloat16   # MXU operand dtype; accumulation/state stay f32
_LANE = 128
_SUBLANE_BF16 = 16            # bf16 native sublane tile


def _round_up(x, m):
    return ((x + m - 1) // m) * m


# --------------------------------------------------------------------------
# Kernel
# --------------------------------------------------------------------------
def _make_lstm_kernel(time_block, seq_len, hidden_pad, emit_seq, full_cover):
    """Kernel for one LSTM layer; each grid step = `time_block` timesteps of
    one batch tile.  full_cover == (no padded timesteps anywhere)."""
    Hp = hidden_pad
    unroll = 1
    for u in (8, 4, 2):
        if time_block % u == 0:
            unroll = u
            break

    def kernel(x_ref, wx_ref, wh_ref, b_ref, *refs):
        # x_ref  : (Tb, Bt, Kxp) bf16   time-major padded input block
        # wx_ref : (Kxp, 4Hp)   bf16    input projection, gates (i,f,o,g)
        # wh_ref : (Hp, 4Hp)    bf16    recurrent projection, gates (i,f,o,g)
        # b_ref  : (1, 4Hp)     f32     combined bias, reordered & padded
        if emit_seq:
            out_ref, hlast_ref, clast_ref, xg_scr, h_scr, c_scr = refs
        else:
            out_ref = None
            hlast_ref, clast_ref, xg_scr, h_scr, c_scr = refs

        blk = pl.program_id(1)          # time-block index (axis 0 = batch tile)

        @pl.when(blk == 0)
        def _init():
            h_scr[...] = jnp.zeros_like(h_scr)
            c_scr[...] = jnp.zeros_like(c_scr)

        Tb, Bt, Kxp = x_ref.shape

        # ---- hoisted input projection: one big MXU matmul per block --------
        x_blk = x_ref[...].reshape(Tb * Bt, Kxp)                     # bf16
        xg = jnp.dot(x_blk, wx_ref[...],
                     preferred_element_type=jnp.float32)             # (Tb*Bt,4Hp)
        xg = xg + b_ref[...]                                         # fold bias
        xg_scr[...] = xg.reshape(Tb, Bt, 4 * Hp)                     # f32 scratch

        w_h = wh_ref[...]                                            # (Hp, 4Hp)

        def step(t, carry):
            h_prev, c_prev = carry                                   # f32 (Bt,Hp)
            gates = xg_scr[t] + jnp.dot(h_prev.astype(w_h.dtype), w_h,
                                        preferred_element_type=jnp.float32)
            # sigmoid(x) = 0.5*tanh(0.5*x)+0.5  -> 1 EUP op instead of 2
            t_ifo = jnp.tanh(0.5 * gates[:, : 3 * Hp])               # i | f | o
            i_g = 0.5 * t_ifo[:, 0 * Hp:1 * Hp] + 0.5
            f_g = 0.5 * t_ifo[:, 1 * Hp:2 * Hp] + 0.5
            o_g = 0.5 * t_ifo[:, 2 * Hp:3 * Hp] + 0.5
            g_g = jnp.tanh(gates[:, 3 * Hp:])
            c_new = f_g * c_prev + i_g * g_g
            h_new = o_g * jnp.tanh(c_new)
            if not full_cover:
                # Padded timesteps: keep state unchanged (scalar-predicated select).
                valid = (blk * time_block + t) < seq_len
                c_new = jnp.where(valid, c_new, c_prev)
                h_new = jnp.where(valid, h_new, h_prev)
            if emit_seq:
                out_ref[t] = h_new.astype(out_ref.dtype)
            return h_new, c_new

        h_fin, c_fin = jax.lax.fori_loop(0, time_block, step,
                                         (h_scr[...], c_scr[...]),
                                         unroll=unroll)
        h_scr[...] = h_fin
        c_scr[...] = c_fin

        # Final states are resident outputs: write only once, on the last block.
        @pl.when(blk == pl.num_programs(1) - 1)
        def _flush():
            hlast_ref[...] = h_fin.astype(hlast_ref.dtype)
            clast_ref[...] = c_fin.astype(clast_ref.dtype)

    return kernel


def _vmem_limit_bytes(Tb, Bt, Kxp, Hp, H4p, emit_seq):
    b = 2 * Tb * Bt * Kxp * 2                       # x block (double-buffered, bf16)
    if emit_seq:
        b += 2 * Tb * Bt * Hp * 2                   # seq-out block
    b += 2 * (Kxp * H4p + Hp * H4p) * 2             # weights (assume 2x buffered)
    b += 2 * H4p * 4                                # bias
    b += Tb * Bt * H4p * 4                          # xg scratch (f32)
    b += 2 * Bt * Hp * 4                            # h/c state scratch
    b += 2 * 2 * Bt * Hp * 4                        # h_n/c_n out blocks
    return int(min(2 * b + (8 << 20), 64 << 20))    # margin; fits v7x 64 MiB


def _run_lstm_layer(x_pad, w_x, w_h, bias, *, seq_len, time_block, hidden_pad,
                    batch_tile, emit_seq, seq_out_dtype):
    """x_pad: (Tp, Bp, Kxp) time-major padded input (bf16).
    Returns (seq_out (Tp,Bp,Hp) or None, h_n (Bp,Hp), c_n (Bp,Hp))."""
    Tp, Bp, Kxp = x_pad.shape
    Hp = hidden_pad
    H4p = w_x.shape[1]
    nblk = Tp // time_block
    Bt = batch_tile
    nb = Bp // Bt
    full_cover = (Tp == seq_len)

    kernel = _make_lstm_kernel(time_block, seq_len, Hp, emit_seq, full_cover)

    in_specs = [
        pl.BlockSpec((time_block, Bt, Kxp), lambda b, blk: (blk, b, 0)),
        pl.BlockSpec((Kxp, H4p), lambda b, blk: (0, 0)),   # w_x: VMEM-resident
        pl.BlockSpec((Hp, H4p), lambda b, blk: (0, 0)),    # w_h: VMEM-resident
        pl.BlockSpec((1, H4p), lambda b, blk: (0, 0)),     # bias
    ]
    out_specs = []
    out_shapes = []
    if emit_seq:
        out_specs.append(pl.BlockSpec((time_block, Bt, Hp),
                                      lambda b, blk: (blk, b, 0)))
        out_shapes.append(jax.ShapeDtypeStruct((Tp, Bp, Hp), seq_out_dtype))
    out_specs += [pl.BlockSpec((Bt, Hp), lambda b, blk: (b, 0)),
                  pl.BlockSpec((Bt, Hp), lambda b, blk: (b, 0))]
    out_shapes += [jax.ShapeDtypeStruct((Bp, Hp), jnp.float32),
                   jax.ShapeDtypeStruct((Bp, Hp), jnp.float32)]

    grid_spec = pltpu.PrefetchScalarGridSpec(
        num_scalar_prefetch=0,
        grid=(nb, nblk),
        in_specs=in_specs,
        out_specs=out_specs,
        scratch_shapes=[pltpu.VMEM((time_block, Bt, H4p), jnp.float32),  # xg
                        pltpu.VMEM((Bt, Hp), jnp.float32),               # h state
                        pltpu.VMEM((Bt, Hp), jnp.float32)],              # c state
    )

    results = pl.pallas_call(
        kernel,
        out_shape=tuple(out_shapes),
        grid_spec=grid_spec,
        compiler_params=pltpu.CompilerParams(
            # batch tiles independent (v7x dual-TC); time recurrence is serial
            dimension_semantics=("parallel", "arbitrary"),
            vmem_limit_bytes=_vmem_limit_bytes(time_block, Bt, Kxp, Hp, H4p,
                                               emit_seq)),
    )(x_pad, w_x, w_h, bias)

    if emit_seq:
        seq_out, h_n, c_n = results
    else:
        seq_out = None
        h_n, c_n = results
    return seq_out, h_n, c_n


# --------------------------------------------------------------------------
# Parameters (raw PyTorch-layout init + one-time host-side packing)
# --------------------------------------------------------------------------
def init_lstm_params(key, input_size, hidden_size, num_layers):
    """Raw nn.LSTM-style params: [(w_ih (4H,Din), w_hh (4H,H), b_ih, b_hh), ...]."""
    bound = 1.0 / float(hidden_size) ** 0.5
    params = []
    for layer in range(num_layers):
        in_dim = input_size if layer == 0 else hidden_size
        key, k1, k2, k3, k4 = jax.random.split(key, 5)
        w_ih = jax.random.uniform(k1, (4 * hidden_size, in_dim),
                                  jnp.float32, -bound, bound)
        w_hh = jax.random.uniform(k2, (4 * hidden_size, hidden_size),
                                  jnp.float32, -bound, bound)
        b_ih = jax.random.uniform(k3, (4 * hidden_size,),
                                  jnp.float32, -bound, bound)
        b_hh = jax.random.uniform(k4, (4 * hidden_size,),
                                  jnp.float32, -bound, bound)
        params.append((w_ih, w_hh, b_ih, b_hh))
    return params


def prepare_lstm_params(raw_params, input_size, hidden_size):
    """One-time (outside jit) weight prep: keep w_x / w_h separate (so the
    x-projection can be hoisted out of the recurrence), reorder gates
    (i,f,g,o)->(i,f,o,g), pad gate/contraction dims to lane multiples, cast
    weights to bf16, combine the two biases in f32."""
    H = hidden_size
    Hp = _round_up(H, _LANE)

    def reorder_pad(m):                       # m: (4H, ...) -> (4Hp, ...)
        i, f, g, o = (m[k * H:(k + 1) * H] for k in range(4))
        pad_rows = [(0, Hp - H)] + [(0, 0)] * (m.ndim - 1)
        pad = lambda a: jnp.pad(a, pad_rows)
        return jnp.concatenate([pad(i), pad(f), pad(o), pad(g)], axis=0)

    prepped = []
    for layer, (w_ih, w_hh, b_ih, b_hh) in enumerate(raw_params):
        d_in = input_size if layer == 0 else hidden_size
        d_in_p = _round_up(d_in, _LANE) if layer == 0 else Hp
        w_ih_r = reorder_pad(w_ih)                              # (4Hp, d_in)
        w_hh_r = reorder_pad(w_hh)                              # (4Hp, H)
        w_x = jnp.pad(w_ih_r, ((0, 0), (0, d_in_p - d_in))).T   # (d_in_p, 4Hp)
        w_h = jnp.pad(w_hh_r, ((0, 0), (0, Hp - H))).T          # (Hp, 4Hp)
        b_fused = reorder_pad((b_ih + b_hh)[:, None])[:, 0]     # (4Hp,)
        prepped.append({
            "wx": w_x.astype(MATMUL_DTYPE),
            "wh": w_h.astype(MATMUL_DTYPE),
            "b": b_fused[None, :].astype(jnp.float32),
        })
    return prepped


# --------------------------------------------------------------------------
# Public forward (matches PyTorch LSTMEncoder.forward semantics)
# --------------------------------------------------------------------------
def lstm_encoder_forward(x_btd, params, *, hidden_size, time_block=64):
    """x_btd: (B, T, input_size), batch_first.  params: prepare_lstm_params output.
    Returns (out[:, [-1], :], (h_n, c_n)) exactly like the PyTorch module."""
    B, T, Din = x_btd.shape
    H = hidden_size
    Hp = _round_up(H, _LANE)
    Bp = _round_up(B, _SUBLANE_BF16)
    Dinp = _round_up(Din, _LANE)
    Tb = min(time_block, _round_up(T, 8))
    nblk = -(-T // Tb)
    Tp = nblk * Tb
    Bt = Bp                      # single batch tile; split for v7x when B large

    # batch-first -> time-major, pad to lane/sublane multiples, bf16 operands.
    x_tbd = jnp.transpose(x_btd, (1, 0, 2))
    x_pad = jnp.pad(x_tbd, ((0, Tp - T), (0, Bp - B), (0, Dinp - Din)))
    layer_in = x_pad.astype(MATMUL_DTYPE)

    num_layers = len(params)
    h_list, c_list = [], []
    for li, p in enumerate(params):
        emit_seq = li < num_layers - 1       # last layer: only h_n/c_n needed
        seq_out, h_n, c_n = _run_lstm_layer(
            layer_in, p["wx"], p["wh"], p["b"],
            seq_len=T, time_block=Tb, hidden_pad=Hp, batch_tile=Bt,
            emit_seq=emit_seq, seq_out_dtype=MATMUL_DTYPE)
        h_list.append(h_n[:B, :H])
        c_list.append(c_n[:B, :H])
        if emit_seq:
            layer_in = seq_out
    h_n = jnp.stack(h_list, axis=0)          # (num_layers, B, H) f32
    c_n = jnp.stack(c_list, axis=0)
    out_last = h_n[-1][:, None, :]           # (B, 1, H) == encoded_output[:, [-1], :]
    return out_last, (h_n, c_n)


# --------------------------------------------------------------------------
# Pure-JAX reference (for correctness checking)
# --------------------------------------------------------------------------
def _reference_lstm(x_btd, raw_params):
    x_tbd = jnp.transpose(x_btd, (1, 0, 2)).astype(jnp.float32)
    B = x_btd.shape[0]
    h_list, c_list = [], []
    layer_in = x_tbd
    for (w_ih, w_hh, b_ih, b_hh) in raw_params:
        H = w_hh.shape[1]
        h0 = jnp.zeros((B, H), jnp.float32)
        c0 = jnp.zeros((B, H), jnp.float32)

        def step(carry, x_t, w_ih=w_ih, w_hh=w_hh, b_ih=b_ih, b_hh=b_hh, H=H):
            h, c = carry
            gates = x_t @ w_ih.T + b_ih + h @ w_hh.T + b_hh
            i = jax.nn.sigmoid(gates[:, 0 * H:1 * H])
            f = jax.nn.sigmoid(gates[:, 1 * H:2 * H])
            g = jnp.tanh(gates[:, 2 * H:3 * H])
            o = jax.nn.sigmoid(gates[:, 3 * H:4 * H])
            c_new = f * c + i * g
            h_new = o * jnp.tanh(c_new)
            return (h_new, c_new), h_new

        (h_n, c_n), outs = jax.lax.scan(step, (h0, c0), layer_in)
        h_list.append(h_n)
        c_list.append(c_n)
        layer_in = outs
    out_btd = jnp.transpose(layer_in, (1, 0, 2))
    return out_btd[:, -1:, :], (jnp.stack(h_list), jnp.stack(c_list))


if __name__ == "__main__":
    B, T = 2, 8
    input_size, hidden_size, num_layers = 16, 32, 2

    key = jax.random.PRNGKey(0)
    key, xk, pk = jax.random.split(key, 3)
    x = jax.random.normal(xk, (B, T, input_size), jnp.float32)

    raw_params = init_lstm_params(pk, input_size, hidden_size, num_layers)
    params = prepare_lstm_params(raw_params, input_size, hidden_size)  # host prep, once

    fwd = jax.jit(lstm_encoder_forward,
                  static_argnames=("hidden_size", "time_block"))
    out_last, (h_n, c_n) = fwd(x, params, hidden_size=hidden_size, time_block=64)
    jax.block_until_ready((out_last, h_n, c_n))

    # Correctness vs. pure-JAX f32 reference (bf16 matmul operands -> loose tol).
    ref_out, (ref_h, ref_c) = _reference_lstm(x, raw_params)
    assert out_last.shape == (B, 1, hidden_size)
    assert h_n.shape == (num_layers, B, hidden_size)
    assert c_n.shape == (num_layers, B, hidden_size)
    assert jnp.allclose(out_last, ref_out, atol=5e-2, rtol=5e-2)
    assert jnp.allclose(h_n, ref_h, atol=5e-2, rtol=5e-2)
    assert jnp.allclose(c_n, ref_c, atol=5e-2, rtol=5e-2)

    print("KERNEL_OK")
</pallas_src>

<mosaic_0001>
module attributes {stable_mosaic.version = 11 : i64} {
  func.func @kernel(%arg0: i32, %arg1: i32, %arg2: memref<8x16x128xbf16, #tpu.memory_space<vmem>>, %arg3: memref<128x512xbf16, #tpu.memory_space<vmem>>, %arg4: memref<128x512xbf16, #tpu.memory_space<vmem>>, %arg5: memref<1x512xf32, #tpu.memory_space<vmem>>, %arg6: memref<8x16x128xbf16, #tpu.memory_space<vmem>>, %arg7: memref<16x128xf32, #tpu.memory_space<vmem>>, %arg8: memref<16x128xf32, #tpu.memory_space<vmem>>, %arg9: memref<8x16x512xf32, #tpu.memory_space<vmem>>, %arg10: memref<16x128xf32, #tpu.memory_space<vmem>>, %arg11: memref<16x128xf32, #tpu.memory_space<vmem>>) attributes {dimension_semantics = [#tpu.dimension_semantics<parallel>, #tpu.dimension_semantics<arbitrary>], iteration_bounds = array<i64: 1, 1>, scalar_prefetch = 0 : i64, scratch_operands = 3 : i64, tpu.core_type = #tpu.core_type<tc>, window_params = [{transform_indices = @transform_0, window_bounds = array<i64: 8, 16, 128>}, {pipeline_mode = #tpu.pipeline_mode<synchronous>, transform_indices = @transform_1, window_bounds = array<i64: 128, 512>}, {pipeline_mode = #tpu.pipeline_mode<synchronous>, transform_indices = @transform_2, window_bounds = array<i64: 128, 512>}, {pipeline_mode = #tpu.pipeline_mode<synchronous>, transform_indices = @transform_3, window_bounds = array<i64: 1, 512>}, {transform_indices = @transform_4, window_bounds = array<i64: 8, 16, 128>}, {transform_indices = @transform_5, window_bounds = array<i64: 16, 128>}, {transform_indices = @transform_6, window_bounds = array<i64: 16, 128>}]} {
    %c0_i32 = arith.constant 0 : i32
    %0 = arith.cmpi eq, %arg1, %c0_i32 : i32
    %1 = arith.extui %0 : i1 to i32
    %c0_i32_0 = arith.constant 0 : i32
    %2 = arith.cmpi ne, %1, %c0_i32_0 : i32
    scf.if %2 {
      %cst_119 = arith.constant 0.000000e+00 : f32
      %316 = vector.broadcast %cst_119 : f32 to vector<16x128xf32>
      %c0_120 = arith.constant 0 : index
      %c0_121 = arith.constant 0 : index
      %317 = vector.load %arg10[%c0_120, %c0_121] : memref<16x128xf32, #tpu.memory_space<vmem>>, vector<16x128xf32>
      tpu.vector_store %arg10[%c0_120, %c0_121], %316 {strides = array<i32>} : memref<16x128xf32, #tpu.memory_space<vmem>>, vector<16x128xf32>,
      %cst_122 = arith.constant 0.000000e+00 : f32
      %318 = vector.broadcast %cst_122 : f32 to vector<16x128xf32>
      %c0_123 = arith.constant 0 : index
      %c0_124 = arith.constant 0 : index
      %319 = vector.load %arg11[%c0_123, %c0_124] : memref<16x128xf32, #tpu.memory_space<vmem>>, vector<16x128xf32>
      tpu.vector_store %arg11[%c0_123, %c0_124], %318 {strides = array<i32>} : memref<16x128xf32, #tpu.memory_space<vmem>>, vector<16x128xf32>,
    } else {
    }
    %c0 = arith.constant 0 : index
    %c0_1 = arith.constant 0 : index
    %c0_2 = arith.constant 0 : index
    %3 = vector.load %arg2[%c0, %c0_1, %c0_2] : memref<8x16x128xbf16, #tpu.memory_space<vmem>>, vector<8x16x128xbf16>
    %4 = vector.shape_cast %3 : vector<8x16x128xbf16> to vector<128x128xbf16>
    %c0_3 = arith.constant 0 : index
    %c0_4 = arith.constant 0 : index
    %5 = vector.load %arg3[%c0_3, %c0_4] : memref<128x512xbf16, #tpu.memory_space<vmem>>, vector<128x512xbf16>
    %cst = arith.constant dense<0.000000e+00> : vector<128x512xf32>
    %6 = tpu.matmul %4, %5, %cst {dimension_numbers = #tpu.dot_dimension_numbers<[1], [0], [0], [1], [0, 0, 1, 1], [], []>} : vector<128x128xbf16>, vector<128x512xbf16>, vector<128x512xf32> -> vector<128x512xf32>
    %c0_5 = arith.constant 0 : index
    %c0_6 = arith.constant 0 : index
    %7 = vector.load %arg5[%c0_5, %c0_6] : memref<1x512xf32, #tpu.memory_space<vmem>>, vector<1x512xf32>
    %8 = vector.broadcast %7 : vector<1x512xf32> to vector<128x512xf32>
    %9 = arith.addf %6, %8 : vector<128x512xf32>
    %10 = vector.shape_cast %9 : vector<128x512xf32> to vector<8x16x512xf32>
    %c0_7 = arith.constant 0 : index
    %c0_8 = arith.constant 0 : index
    %c0_9 = arith.constant 0 : index
    %11 = vector.load %arg9[%c0_7, %c0_8, %c0_9] : memref<8x16x512xf32, #tpu.memory_space<vmem>>, vector<8x16x512xf32>
    tpu.vector_store %arg9[%c0_7, %c0_8, %c0_9], %10 {strides = array<i32>} : memref<8x16x512xf32, #tpu.memory_space<vmem>>, vector<8x16x512xf32>,
    %c0_10 = arith.constant 0 : index
    %c0_11 = arith.constant 0 : index
    %12 = vector.load %arg4[%c0_10, %c0_11] : memref<128x512xbf16, #tpu.memory_space<vmem>>, vector<128x512xbf16>
    %c0_12 = arith.constant 0 : index
    %c0_13 = arith.constant 0 : index
    %13 = vector.load %arg10[%c0_12, %c0_13] : memref<16x128xf32, #tpu.memory_space<vmem>>, vector<16x128xf32>
    %c0_14 = arith.constant 0 : index
    %c0_15 = arith.constant 0 : index
    %14 = vector.load %arg11[%c0_14, %c0_15] : memref<16x128xf32, #tpu.memory_space<vmem>>, vector<16x128xf32>
    %c0_i32_16 = arith.constant 0 : i32
    %15 = arith.index_cast %c0_i32_16 : i32 to index
    %c0_17 = arith.constant 0 : index
    %c0_18 = arith.constant 0 : index
    %16 = vector.load %arg9[%15, %c0_17, %c0_18] : memref<8x16x512xf32, #tpu.memory_space<vmem>>, vector<1x16x512xf32>
    %17 = vector.shape_cast %16 : vector<1x16x512xf32> to vector<16x512xf32>
    %18 = arith.truncf %13 : vector<16x128xf32> to vector<16x128xbf16>
    %cst_19 = arith.constant dense<0.000000e+00> : vector<16x512xf32>
    %19 = tpu.matmul %18, %12, %cst_19 {dimension_numbers = #tpu.dot_dimension_numbers<[1], [0], [0], [1], [0, 0, 1, 1], [], []>} : vector<16x128xbf16>, vector<128x512xbf16>, vector<16x512xf32> -> vector<16x512xf32>
    %20 = arith.addf %17, %19 : vector<16x512xf32>
    %21 = vector.extract_strided_slice %20 {offsets = [0, 0], sizes = [16, 384], strides = [1, 1]} : vector<16x512xf32> to vector<16x384xf32>
    %cst_20 = arith.constant 5.000000e-01 : f32
    %22 = vector.broadcast %cst_20 : f32 to vector<16x384xf32>
    %23 = arith.mulf %22, %21 : vector<16x384xf32>
    %24 = math.tanh %23 : vector<16x384xf32>
    %25 = vector.extract_strided_slice %24 {offsets = [0, 0], sizes = [16, 128], strides = [1, 1]} : vector<16x384xf32> to vector<16x128xf32>
    %cst_21 = arith.constant 5.000000e-01 : f32
    %26 = vector.broadcast %cst_21 : f32 to vector<16x128xf32>
    %27 = arith.mulf %26, %25 : vector<16x128xf32>
    %cst_22 = arith.constant 5.000000e-01 : f32
    %28 = vector.broadcast %cst_22 : f32 to vector<16x128xf32>
    %29 = arith.addf %27, %28 : vector<16x128xf32>
    %30 = vector.extract_strided_slice %24 {offsets = [0, 128], sizes = [16, 128], strides = [1, 1]} : vector<16x384xf32> to vector<16x128xf32>
    %cst_23 = arith.constant 5.000000e-01 : f32
    %31 = vector.broadcast %cst_23 : f32 to vector<16x128xf32>
    %32 = arith.mulf %31, %30 : vector<16x128xf32>
    %cst_24 = arith.constant 5.000000e-01 : f32
    %33 = vector.broadcast %cst_24 : f32 to vector<16x128xf32>
    %34 = arith.addf %32, %33 : vector<16x128xf32>
    %35 = vector.extract_strided_slice %24 {offsets = [0, 256], sizes = [16, 128], strides = [1, 1]} : vector<16x384xf32> to vector<16x128xf32>
    %cst_25 = arith.constant 5.000000e-01 : f32
    %36 = vector.broadcast %cst_25 : f32 to vector<16x128xf32>
    %37 = arith.mulf %36, %35 : vector<16x128xf32>
    %cst_26 = arith.constant 5.000000e-01 : f32
    %38 = vector.broadcast %cst_26 : f32 to vector<16x128xf32>
    %39 = arith.addf %37, %38 : vector<16x128xf32>
    %40 = vector.extract_strided_slice %20 {offsets = [0, 384], sizes = [16, 128], strides = [1, 1]} : vector<16x512xf32> to vector<16x128xf32>
    %41 = math.tanh %40 : vector<16x128xf32>
    %42 = arith.mulf %34, %14 : vector<16x128xf32>
    %43 = arith.mulf %29, %41 : vector<16x128xf32>
    %44 = arith.addf %42, %43 : vector<16x128xf32>
    %45 = math.tanh %44 : vector<16x128xf32>
    %46 = arith.mulf %39, %45 : vector<16x128xf32>
    %47 = arith.truncf %46 : vector<16x128xf32> to vector<16x128xbf16>
    %48 = arith.index_cast %c0_i32_16 : i32 to index
    %c0_27 = arith.constant 0 : index
    %c0_28 = arith.constant 0 : index
    %49 = vector.load %arg6[%48, %c0_27, %c0_28] : memref<8x16x128xbf16, #tpu.memory_space<vmem>>, vector<1x16x128xbf16>
    %50 = vector.shape_cast %49 : vector<1x16x128xbf16> to vector<16x128xbf16>
    %51 = vector.shape_cast %47 : vector<16x128xbf16> to vector<1x16x128xbf16>
    tpu.vector_store %arg6[%48, %c0_27, %c0_28], %51 {strides = array<i32>} : memref<8x16x128xbf16, #tpu.memory_space<vmem>>, vector<1x16x128xbf16>,
    %c1_i32 = arith.constant 1 : i32
    %52 = arith.index_cast %c1_i32 : i32 to index
    %c0_29 = arith.constant 0 : index
    %c0_30 = arith.constant 0 : index
    %53 = vector.load %arg9[%52, %c0_29, %c0_30] : memref<8x16x512xf32, #tpu.memory_space<vmem>>, vector<1x16x512xf32>
    %54 = vector.shape_cast %53 : vector<1x16x512xf32> to vector<16x512xf32>
    %55 = arith.truncf %46 : vector<16x128xf32> to vector<16x128xbf16>
    %cst_31 = arith.constant dense<0.000000e+00> : vector<16x512xf32>
    %56 = tpu.matmul %55, %12, %cst_31 {dimension_numbers = #tpu.dot_dimension_numbers<[1], [0], [0], [1], [0, 0, 1, 1], [], []>} : vector<16x128xbf16>, vector<128x512xbf16>, vector<16x512xf32> -> vector<16x512xf32>
    %57 = arith.addf %54, %56 : vector<16x512xf32>
    %58 = vector.extract_strided_slice %57 {offsets = [0, 0], sizes = [16, 384], strides = [1, 1]} : vector<16x512xf32> to vector<16x384xf32>
    %cst_32 = arith.constant 5.000000e-01 : f32
    %59 = vector.broadcast %cst_32 : f32 to vector<16x384xf32>
    %60 = arith.mulf %59, %58 : vector<16x384xf32>
    %61 = math.tanh %60 : vector<16x384xf32>
    %62 = vector.extract_strided_slice %61 {offsets = [0, 0], sizes = [16, 128], strides = [1, 1]} : vector<16x384xf32> to vector<16x128xf32>
    %cst_33 = arith.constant 5.000000e-01 : f32
    %63 = vector.broadcast %cst_33 : f32 to vector<16x128xf32>
    %64 = arith.mulf %63, %62 : vector<16x128xf32>
    %cst_34 = arith.constant 5.000000e-01 : f32
    %65 = vector.broadcast %cst_34 : f32 to vector<16x128xf32>
    %66 = arith.addf %64, %65 : vector<16x128xf32>
    %67 = vector.extract_strided_slice %61 {offsets = [0, 128], sizes = [16, 128], strides = [1, 1]} : vector<16x384xf32> to vector<16x128xf32>
    %cst_35 = arith.constant 5.000000e-01 : f32
    %68 = vector.broadcast %cst_35 : f32 to vector<16x128xf32>
    %69 = arith.mulf %68, %67 : vector<16x128xf32>
    %cst_36 = arith.constant 5.000000e-01 : f32
    %70 = vector.broadcast %cst_36 : f32 to vector<16x128xf32>
    %71 = arith.addf %69, %70 : vector<16x128xf32>
    %72 = vector.extract_strided_slice %61 {offsets = [0, 256], sizes = [16, 128], strides = [1, 1]} : vector<16x384xf32> to vector<16x128xf32>
    %cst_37 = arith.constant 5.000000e-01 : f32
    %73 = vector.broadcast %cst_37 : f32 to vector<16x128xf32>
    %74 = arith.mulf %73, %72 : vector<16x128xf32>
    %cst_38 = arith.constant 5.000000e-01 : f32
    %75 = vector.broadcast %cst_38 : f32 to vector<16x128xf32>
    %76 = arith.addf %74, %75 : vector<16x128xf32>
    %77 = vector.extract_strided_slice %57 {offsets = [0, 384], sizes = [16, 128], strides = [1, 1]} : vector<16x512xf32> to vector<16x128xf32>
    %78 = math.tanh %77 : vector<16x128xf32>
    %79 = arith.mulf %71, %44 : vector<16x128xf32>
    %80 = arith.mulf %66, %78 : vector<16x128xf32>
    %81 = arith.addf %79, %80 : vector<16x128xf32>
    %82 = math.tanh %81 : vector<16x128xf32>
    %83 = arith.mulf %76, %82 : vector<16x128xf32>
    %84 = arith.truncf %83 : vector<16x128xf32> to vector<16x128xbf16>
    %85 = arith.index_cast %c1_i32 : i32 to index
    %c0_39 = arith.constant 0 : index
    %c0_40 = arith.constant 0 : index
    %86 = vector.load %arg6[%85, %c0_39, %c0_40] : memref<8x16x128xbf16, #tpu.memory_space<vmem>>, vector<1x16x128xbf16>
    %87 = vector.shape_cast %86 : vector<1x16x128xbf16> to vector<16x128xbf16>
    %88 = vector.shape_cast %84 : vector<16x128xbf16> to vector<1x16x128xbf16>
    tpu.vector_store %arg6[%85, %c0_39, %c0_40], %88 {strides = array<i32>} : memref<8x16x128xbf16, #tpu.memory_space<vmem>>, vector<1x16x128xbf16>,
    %c2_i32 = arith.constant 2 : i32
    %89 = arith.index_cast %c2_i32 : i32 to index
    %c0_41 = arith.constant 0 : index
    %c0_42 = arith.constant 0 : index
    %90 = vector.load %arg9[%89, %c0_41, %c0_42] : memref<8x16x512xf32, #tpu.memory_space<vmem>>, vector<1x16x512xf32>
    %91 = vector.shape_cast %90 : vector<1x16x512xf32> to vector<16x512xf32>
    %92 = arith.truncf %83 : vector<16x128xf32> to vector<16x128xbf16>
    %cst_43 = arith.constant dense<0.000000e+00> : vector<16x512xf32>
    %93 = tpu.matmul %92, %12, %cst_43 {dimension_numbers = #tpu.dot_dimension_numbers<[1], [0], [0], [1], [0, 0, 1, 1], [], []>} : vector<16x128xbf16>, vector<128x512xbf16>, vector<16x512xf32> -> vector<16x512xf32>
    %94 = arith.addf %91, %93 : vector<16x512xf32>
    %95 = vector.extract_strided_slice %94 {offsets = [0, 0], sizes = [16, 384], strides = [1, 1]} : vector<16x512xf32> to vector<16x384xf32>
    %cst_44 = arith.constant 5.000000e-01 : f32
    %96 = vector.broadcast %cst_44 : f32 to vector<16x384xf32>
    %97 = arith.mulf %96, %95 : vector<16x384xf32>
    %98 = math.tanh %97 : vector<16x384xf32>
    %99 = vector.extract_strided_slice %98 {offsets = [0, 0], sizes = [16, 128], strides = [1, 1]} : vector<16x384xf32> to vector<16x128xf32>
    %cst_45 = arith.constant 5.000000e-01 : f32
    %100 = vector.broadcast %cst_45 : f32 to vector<16x128xf32>
    %101 = arith.mulf %100, %99 : vector<16x128xf32>
    %cst_46 = arith.constant 5.000000e-01 : f32
    %102 = vector.broadcast %cst_46 : f32 to vector<16x128xf32>
    %103 = arith.addf %101, %102 : vector<16x128xf32>
    %104 = vector.extract_strided_slice %98 {offsets = [0, 128], sizes = [16, 128], strides = [1, 1]} : vector<16x384xf32> to vector<16x128xf32>
    %cst_47 = arith.constant 5.000000e-01 : f32
    %105 = vector.broadcast %cst_47 : f32 to vector<16x128xf32>
    %106 = arith.mulf %105, %104 : vector<16x128xf32>
    %cst_48 = arith.constant 5.000000e-01 : f32
    %107 = vector.broadcast %cst_48 : f32 to vector<16x128xf32>
    %108 = arith.addf %106, %107 : vector<16x128xf32>
    %109 = vector.extract_strided_slice %98 {offsets = [0, 256], sizes = [16, 128], strides = [1, 1]} : vector<16x384xf32> to vector<16x128xf32>
    %cst_49 = arith.constant 5.000000e-01 : f32
    %110 = vector.broadcast %cst_49 : f32 to vector<16x128xf32>
    %111 = arith.mulf %110, %109 : vector<16x128xf32>
    %cst_50 = arith.constant 5.000000e-01 : f32
    %112 = vector.broadcast %cst_50 : f32 to vector<16x128xf32>
    %113 = arith.addf %111, %112 : vector<16x128xf32>
    %114 = vector.extract_strided_slice %94 {offsets = [0, 384], sizes = [16, 128], strides = [1, 1]} : vector<16x512xf32> to vector<16x128xf32>
    %115 = math.tanh %114 : vector<16x128xf32>
    %116 = arith.mulf %108, %81 : vector<16x128xf32>
    %117 = arith.mulf %103, %115 : vector<16x128xf32>
    %118 = arith.addf %116, %117 : vector<16x128xf32>
    %119 = math.tanh %118 : vector<16x128xf32>
    %120 = arith.mulf %113, %119 : vector<16x128xf32>
    %121 = arith.truncf %120 : vector<16x128xf32> to vector<16x128xbf16>
    %122 = arith.index_cast %c2_i32 : i32 to index
    %c0_51 = arith.constant 0 : index
    %c0_52 = arith.constant 0 : index
    %123 = vector.load %arg6[%122, %c0_51, %c0_52] : memref<8x16x128xbf16, #tpu.memory_space<vmem>>, vector<1x16x128xbf16>
    %124 = vector.shape_cast %123 : vector<1x16x128xbf16> to vector<16x128xbf16>
    %125 = vector.shape_cast %121 : vector<16x128xbf16> to vector<1x16x128xbf16>
    tpu.vector_store %arg6[%122, %c0_51, %c0_52], %125 {strides = array<i32>} : memref<8x16x128xbf16, #tpu.memory_space<vmem>>, vector<1x16x128xbf16>,
    %c3_i32 = arith.constant 3 : i32
    %126 = arith.index_cast %c3_i32 : i32 to index
    %c0_53 = arith.constant 0 : index
    %c0_54 = arith.constant 0 : index
    %127 = vector.load %arg9[%126, %c0_53, %c0_54] : memref<8x16x512xf32, #tpu.memory_space<vmem>>, vector<1x16x512xf32>
    %128 = vector.shape_cast %127 : vector<1x16x512xf32> to vector<16x512xf32>
    %129 = arith.truncf %120 : vector<16x128xf32> to vector<16x128xbf16>
    %cst_55 = arith.constant dense<0.000000e+00> : vector<16x512xf32>
    %130 = tpu.matmul %129, %12, %cst_55 {dimension_numbers = #tpu.dot_dimension_numbers<[1], [0], [0], [1], [0, 0, 1, 1], [], []>} : vector<16x128xbf16>, vector<128x512xbf16>, vector<16x512xf32> -> vector<16x512xf32>
    %131 = arith.addf %128, %130 : vector<16x512xf32>
    %132 = vector.extract_strided_slice %131 {offsets = [0, 0], sizes = [16, 384], strides = [1, 1]} : vector<16x512xf32> to vector<16x384xf32>
    %cst_56 = arith.constant 5.000000e-01 : f32
    %133 = vector.broadcast %cst_56 : f32 to vector<16x384xf32>
    %134 = arith.mulf %133, %132 : vector<16x384xf32>
    %135 = math.tanh %134 : vector<16x384xf32>
    %136 = vector.extract_strided_slice %135 {offsets = [0, 0], sizes = [16, 128], strides = [1, 1]} : vector<16x384xf32> to vector<16x128xf32>
    %cst_57 = arith.constant 5.000000e-01 : f32
    %137 = vector.broadcast %cst_57 : f32 to vector<16x128xf32>
    %138 = arith.mulf %137, %136 : vector<16x128xf32>
    %cst_58 = arith.constant 5.000000e-01 : f32
    %139 = vector.broadcast %cst_58 : f32 to vector<16x128xf32>
    %140 = arith.addf %138, %139 : vector<16x128xf32>
    %141 = vector.extract_strided_slice %135 {offsets = [0, 128], sizes = [16, 128], strides = [1, 1]} : vector<16x384xf32> to vector<16x128xf32>
    %cst_59 = arith.constant 5.000000e-01 : f32
    %142 = vector.broadcast %cst_59 : f32 to vector<16x128xf32>
    %143 = arith.mulf %142, %141 : vector<16x128xf32>
    %cst_60 = arith.constant 5.000000e-01 : f32
    %144 = vector.broadcast %cst_60 : f32 to vector<16x128xf32>
    %145 = arith.addf %143, %144 : vector<16x128xf32>
    %146 = vector.extract_strided_slice %135 {offsets = [0, 256], sizes = [16, 128], strides = [1, 1]} : vector<16x384xf32> to vector<16x128xf32>
    %cst_61 = arith.constant 5.000000e-01 : f32
    %147 = vector.broadcast %cst_61 : f32 to vector<16x128xf32>
    %148 = arith.mulf %147, %146 : vector<16x128xf32>
    %cst_62 = arith.constant 5.000000e-01 : f32
    %149 = vector.broadcast %cst_62 : f32 to vector<16x128xf32>
    %150 = arith.addf %148, %149 : vector<16x128xf32>
    %151 = vector.extract_strided_slice %131 {offsets = [0, 384], sizes = [16, 128], strides = [1, 1]} : vector<16x512xf32> to vector<16x128xf32>
    %152 = math.tanh %151 : vector<16x128xf32>
    %153 = arith.mulf %145, %118 : vector<16x128xf32>
    %154 = arith.mulf %140, %152 : vector<16x128xf32>
    %155 = arith.addf %153, %154 : vector<16x128xf32>
    %156 = math.tanh %155 : vector<16x128xf32>
    %157 = arith.mulf %150, %156 : vector<16x128xf32>
    %158 = arith.truncf %157 : vector<16x128xf32> to vector<16x128xbf16>
    %159 = arith.index_cast %c3_i32 : i32 to index
    %c0_63 = arith.constant 0 : index
    %c0_64 = arith.constant 0 : index
    %160 = vector.load %arg6[%159, %c0_63, %c0_64] : memref<8x16x128xbf16, #tpu.memory_space<vmem>>, vector<1x16x128xbf16>
    %161 = vector.shape_cast %160 : vector<1x16x128xbf16> to vector<16x128xbf16>
    %162 = vector.shape_cast %158 : vector<16x128xbf16> to vector<1x16x128xbf16>
    tpu.vector_store %arg6[%159, %c0_63, %c0_64], %162 {strides = array<i32>} : memref<8x16x128xbf16, #tpu.memory_space<vmem>>, vector<1x16x128xbf16>,
    %c4_i32 = arith.constant 4 : i32
    %163 = arith.index_cast %c4_i32 : i32 to index
    %c0_65 = arith.constant 0 : index
    %c0_66 = arith.constant 0 : index
    %164 = vector.load %arg9[%163, %c0_65, %c0_66] : memref<8x16x512xf32, #tpu.memory_space<vmem>>, vector<1x16x512xf32>
    %165 = vector.shape_cast %164 : vector<1x16x512xf32> to vector<16x512xf32>
    %166 = arith.truncf %157 : vector<16x128xf32> to vector<16x128xbf16>
    %cst_67 = arith.constant dense<0.000000e+00> : vector<16x512xf32>
    %167 = tpu.matmul %166, %12, %cst_67 {dimension_numbers = #tpu.dot_dimension_numbers<[1], [0], [0], [1], [0, 0, 1, 1], [], []>} : vector<16x128xbf16>, vector<128x512xbf16>, vector<16x512xf32> -> vector<16x512xf32>
    %168 = arith.addf %165, %167 : vector<16x512xf32>
    %169 = vector.extract_strided_slice %168 {offsets = [0, 0], sizes = [16, 384], strides = [1, 1]} : vector<16x512xf32> to vector<16x384xf32>
    %cst_68 = arith.constant 5.000000e-01 : f32
    %170 = vector.broadcast %cst_68 : f32 to vector<16x384xf32>
    %171 = arith.mulf %170, %169 : vector<16x384xf32>
    %172 = math.tanh %171 : vector<16x384xf32>
    %173 = vector.extract_strided_slice %172 {offsets = [0, 0], sizes = [16, 128], strides = [1, 1]} : vector<16x384xf32> to vector<16x128xf32>
    %cst_69 = arith.constant 5.000000e-01 : f32
    %174 = vector.broadcast %cst_69 : f32 to vector<16x128xf32>
    %175 = arith.mulf %174, %173 : vector<16x128xf32>
    %cst_70 = arith.constant 5.000000e-01 : f32
    %176 = vector.broadcast %cst_70 : f32 to vector<16x128xf32>
    %177 = arith.addf %175, %176 : vector<16x128xf32>
    %178 = vector.extract_strided_slice %172 {offsets = [0, 128], sizes = [16, 128], strides = [1, 1]} : vector<16x384xf32> to vector<16x128xf32>
    %cst_71 = arith.constant 5.000000e-01 : f32
    %179 = vector.broadcast %cst_71 : f32 to vector<16x128xf32>
    %180 = arith.mulf %179, %178 : vector<16x128xf32>
    %cst_72 = arith.constant 5.000000e-01 : f32
    %181 = vector.broadcast %cst_72 : f32 to vector<16x128xf32>
    %182 = arith.addf %180, %181 : vector<16x128xf32>
    %183 = vector.extract_strided_slice %172 {offsets = [0, 256], sizes = [16, 128], strides = [1, 1]} : vector<16x384xf32> to vector<16x128xf32>
    %cst_73 = arith.constant 5.000000e-01 : f32
    %184 = vector.broadcast %cst_73 : f32 to vector<16x128xf32>
    %185 = arith.mulf %184, %183 : vector<16x128xf32>
    %cst_74 = arith.constant 5.000000e-01 : f32
    %186 = vector.broadcast %cst_74 : f32 to vector<16x128xf32>
    %187 = arith.addf %185, %186 : vector<16x128xf32>
    %188 = vector.extract_strided_slice %168 {offsets = [0, 384], sizes = [16, 128], strides = [1, 1]} : vector<16x512xf32> to vector<16x128xf32>
    %189 = math.tanh %188 : vector<16x128xf32>
    %190 = arith.mulf %182, %155 : vector<16x128xf32>
    %191 = arith.mulf %177, %189 : vector<16x128xf32>
    %192 = arith.addf %190, %191 : vector<16x128xf32>
    %193 = math.tanh %192 : vector<16x128xf32>
    %194 = arith.mulf %187, %193 : vector<16x128xf32>
    %195 = arith.truncf %194 : vector<16x128xf32> to vector<16x128xbf16>
    %196 = arith.index_cast %c4_i32 : i32 to index
    %c0_75 = arith.constant 0 : index
    %c0_76 = arith.constant 0 : index
    %197 = vector.load %arg6[%196, %c0_75, %c0_76] : memref<8x16x128xbf16, #tpu.memory_space<vmem>>, vector<1x16x128xbf16>
    %198 = vector.shape_cast %197 : vector<1x16x128xbf16> to vector<16x128xbf16>
    %199 = vector.shape_cast %195 : vector<16x128xbf16> to vector<1x16x128xbf16>
    tpu.vector_store %arg6[%196, %c0_75, %c0_76], %199 {strides = array<i32>} : memref<8x16x128xbf16, #tpu.memory_space<vmem>>, vector<1x16x128xbf16>,
    %c5_i32 = arith.constant 5 : i32
    %200 = arith.index_cast %c5_i32 : i32 to index
    %c0_77 = arith.constant 0 : index
    %c0_78 = arith.constant 0 : index
    %201 = vector.load %arg9[%200, %c0_77, %c0_78] : memref<8x16x512xf32, #tpu.memory_space<vmem>>, vector<1x16x512xf32>
    %202 = vector.shape_cast %201 : vector<1x16x512xf32> to vector<16x512xf32>
    %203 = arith.truncf %194 : vector<16x128xf32> to vector<16x128xbf16>
    %cst_79 = arith.constant dense<0.000000e+00> : vector<16x512xf32>
    %204 = tpu.matmul %203, %12, %cst_79 {dimension_numbers = #tpu.dot_dimension_numbers<[1], [0], [0], [1], [0, 0, 1, 1], [], []>} : vector<16x128xbf16>, vector<128x512xbf16>, vector<16x512xf32> -> vector<16x512xf32>
    %205 = arith.addf %202, %204 : vector<16x512xf32>
    %206 = vector.extract_strided_slice %205 {offsets = [0, 0], sizes = [16, 384], strides = [1, 1]} : vector<16x512xf32> to vector<16x384xf32>
    %cst_80 = arith.constant 5.000000e-01 : f32
    %207 = vector.broadcast %cst_80 : f32 to vector<16x384xf32>
    %208 = arith.mulf %207, %206 : vector<16x384xf32>
    %209 = math.tanh %208 : vector<16x384xf32>
    %210 = vector.extract_strided_slice %209 {offsets = [0, 0], sizes = [16, 128], strides = [1, 1]} : vector<16x384xf32> to vector<16x128xf32>
    %cst_81 = arith.constant 5.000000e-01 : f32
    %211 = vector.broadcast %cst_81 : f32 to vector<16x128xf32>
    %212 = arith.mulf %211, %210 : vector<16x128xf32>
    %cst_82 = arith.constant 5.000000e-01 : f32
    %213 = vector.broadcast %cst_82 : f32 to vector<16x128xf32>
    %214 = arith.addf %212, %213 : vector<16x128xf32>
    %215 = vector.extract_strided_slice %209 {offsets = [0, 128], sizes = [16, 128], strides = [1, 1]} : vector<16x384xf32> to vector<16x128xf32>
    %cst_83 = arith.constant 5.000000e-01 : f32
    %216 = vector.broadcast %cst_83 : f32 to vector<16x128xf32>
    %217 = arith.mulf %216, %215 : vector<16x128xf32>
    %cst_84 = arith.constant 5.000000e-01 : f32
    %218 = vector.broadcast %cst_84 : f32 to vector<16x128xf32>
    %219 = arith.addf %217, %218 : vector<16x128xf32>
    %220 = vector.extract_strided_slice %209 {offsets = [0, 256], sizes = [16, 128], strides = [1, 1]} : vector<16x384xf32> to vector<16x128xf32>
    %cst_85 = arith.constant 5.000000e-01 : f32
    %221 = vector.broadcast %cst_85 : f32 to vector<16x128xf32>
    %222 = arith.mulf %221, %220 : vector<16x128xf32>
    %cst_86 = arith.constant 5.000000e-01 : f32
    %223 = vector.broadcast %cst_86 : f32 to vector<16x128xf32>
    %224 = arith.addf %222, %223 : vector<16x128xf32>
    %225 = vector.extract_strided_slice %205 {offsets = [0, 384], sizes = [16, 128], strides = [1, 1]} : vector<16x512xf32> to vector<16x128xf32>
    %226 = math.tanh %225 : vector<16x128xf32>
    %227 = arith.mulf %219, %192 : vector<16x128xf32>
    %228 = arith.mulf %214, %226 : vector<16x128xf32>
    %229 = arith.addf %227, %228 : vector<16x128xf32>
    %230 = math.tanh %229 : vector<16x128xf32>
    %231 = arith.mulf %224, %230 : vector<16x128xf32>
    %232 = arith.truncf %231 : vector<16x128xf32> to vector<16x128xbf16>
    %233 = arith.index_cast %c5_i32 : i32 to index
    %c0_87 = arith.constant 0 : index
    %c0_88 = arith.constant 0 : index
    %234 = vector.load %arg6[%233, %c0_87, %c0_88] : memref<8x16x128xbf16, #tpu.memory_space<vmem>>, vector<1x16x128xbf16>
    %235 = vector.shape_cast %234 : vector<1x16x128xbf16> to vector<16x128xbf16>
    %236 = vector.shape_cast %232 : vector<16x128xbf16> to vector<1x16x128xbf16>
    tpu.vector_store %arg6[%233, %c0_87, %c0_88], %236 {strides = array<i32>} : memref<8x16x128xbf16, #tpu.memory_space<vmem>>, vector<1x16x128xbf16>,
    %c6_i32 = arith.constant 6 : i32
    %237 = arith.index_cast %c6_i32 : i32 to index
    %c0_89 = arith.constant 0 : index
    %c0_90 = arith.constant 0 : index
    %238 = vector.load %arg9[%237, %c0_89, %c0_90] : memref<8x16x512xf32, #tpu.memory_space<vmem>>, vector<1x16x512xf32>
    %239 = vector.shape_cast %238 : vector<1x16x512xf32> to vector<16x512xf32>
    %240 = arith.truncf %231 : vector<16x128xf32> to vector<16x128xbf16>
    %cst_91 = arith.constant dense<0.000000e+00> : vector<16x512xf32>
    %241 = tpu.matmul %240, %12, %cst_91 {dimension_numbers = #tpu.dot_dimension_numbers<[1], [0], [0], [1], [0, 0, 1, 1], [], []>} : vector<16x128xbf16>, vector<128x512xbf16>, vector<16x512xf32> -> vector<16x512xf32>
    %242 = arith.addf %239, %241 : vector<16x512xf32>
    %243 = vector.extract_strided_slice %242 {offsets = [0, 0], sizes = [16, 384], strides = [1, 1]} : vector<16x512xf32> to vector<16x384xf32>
    %cst_92 = arith.constant 5.000000e-01 : f32
    %244 = vector.broadcast %cst_92 : f32 to vector<16x384xf32>
    %245 = arith.mulf %244, %243 : vector<16x384xf32>
    %246 = math.tanh %245 : vector<16x384xf32>
    %247 = vector.extract_strided_slice %246 {offsets = [0, 0], sizes = [16, 128], strides = [1, 1]} : vector<16x384xf32> to vector<16x128xf32>
    %cst_93 = arith.constant 5.000000e-01 : f32
    %248 = vector.broadcast %cst_93 : f32 to vector<16x128xf32>
    %249 = arith.mulf %248, %247 : vector<16x128xf32>
    %cst_94 = arith.constant 5.000000e-01 : f32
    %250 = vector.broadcast %cst_94 : f32 to vector<16x128xf32>
    %251 = arith.addf %249, %250 : vector<16x128xf32>
    %252 = vector.extract_strided_slice %246 {offsets = [0, 128], sizes = [16, 128], strides = [1, 1]} : vector<16x384xf32> to vector<16x128xf32>
    %cst_95 = arith.constant 5.000000e-01 : f32
    %253 = vector.broadcast %cst_95 : f32 to vector<16x128xf32>
    %254 = arith.mulf %253, %252 : vector<16x128xf32>
    %cst_96 = arith.constant 5.000000e-01 : f32
    %255 = vector.broadcast %cst_96 : f32 to vector<16x128xf32>
    %256 = arith.addf %254, %255 : vector<16x128xf32>
    %257 = vector.extract_strided_slice %246 {offsets = [0, 256], sizes = [16, 128], strides = [1, 1]} : vector<16x384xf32> to vector<16x128xf32>
    %cst_97 = arith.constant 5.000000e-01 : f32
    %258 = vector.broadcast %cst_97 : f32 to vector<16x128xf32>
    %259 = arith.mulf %258, %257 : vector<16x128xf32>
    %cst_98 = arith.constant 5.000000e-01 : f32
    %260 = vector.broadcast %cst_98 : f32 to vector<16x128xf32>
    %261 = arith.addf %259, %260 : vector<16x128xf32>
    %262 = vector.extract_strided_slice %242 {offsets = [0, 384], sizes = [16, 128], strides = [1, 1]} : vector<16x512xf32> to vector<16x128xf32>
    %263 = math.tanh %262 : vector<16x128xf32>
    %264 = arith.mulf %256, %229 : vector<16x128xf32>
    %265 = arith.mulf %251, %263 : vector<16x128xf32>
    %266 = arith.addf %264, %265 : vector<16x128xf32>
    %267 = math.tanh %266 : vector<16x128xf32>
    %268 = arith.mulf %261, %267 : vector<16x128xf32>
    %269 = arith.truncf %268 : vector<16x128xf32> to vector<16x128xbf16>
    %270 = arith.index_cast %c6_i32 : i32 to index
    %c0_99 = arith.constant 0 : index
    %c0_100 = arith.constant 0 : index
    %271 = vector.load %arg6[%270, %c0_99, %c0_100] : memref<8x16x128xbf16, #tpu.memory_space<vmem>>, vector<1x16x128xbf16>
    %272 = vector.shape_cast %271 : vector<1x16x128xbf16> to vector<16x128xbf16>
    %273 = vector.shape_cast %269 : vector<16x128xbf16> to vector<1x16x128xbf16>
    tpu.vector_store %arg6[%270, %c0_99, %c0_100], %273 {strides = array<i32>} : memref<8x16x128xbf16, #tpu.memory_space<vmem>>, vector<1x16x128xbf16>,
    %c7_i32 = arith.constant 7 : i32
    %274 = arith.index_cast %c7_i32 : i32 to index
    %c0_101 = arith.constant 0 : index
    %c0_102 = arith.constant 0 : index
    %275 = vector.load %arg9[%274, %c0_101, %c0_102] : memref<8x16x512xf32, #tpu.memory_space<vmem>>, vector<1x16x512xf32>
    %276 = vector.shape_cast %275 : vector<1x16x512xf32> to vector<16x512xf32>
    %277 = arith.truncf %268 : vector<16x128xf32> to vector<16x128xbf16>
    %cst_103 = arith.constant dense<0.000000e+00> : vector<16x512xf32>
    %278 = tpu.matmul %277, %12, %cst_103 {dimension_numbers = #tpu.dot_dimension_numbers<[1], [0], [0], [1], [0, 0, 1, 1], [], []>} : vector<16x128xbf16>, vector<128x512xbf16>, vector<16x512xf32> -> vector<16x512xf32>
    %279 = arith.addf %276, %278 : vector<16x512xf32>
    %280 = vector.extract_strided_slice %279 {offsets = [0, 0], sizes = [16, 384], strides = [1, 1]} : vector<16x512xf32> to vector<16x384xf32>
    %cst_104 = arith.constant 5.000000e-01 : f32
    %281 = vector.broadcast %cst_104 : f32 to vector<16x384xf32>
    %282 = arith.mulf %281, %280 : vector<16x384xf32>
    %283 = math.tanh %282 : vector<16x384xf32>
    %284 = vector.extract_strided_slice %283 {offsets = [0, 0], sizes = [16, 128], strides = [1, 1]} : vector<16x384xf32> to vector<16x128xf32>
    %cst_105 = arith.constant 5.000000e-01 : f32
    %285 = vector.broadcast %cst_105 : f32 to vector<16x128xf32>
    %286 = arith.mulf %285, %284 : vector<16x128xf32>
    %cst_106 = arith.constant 5.000000e-01 : f32
    %287 = vector.broadcast %cst_106 : f32 to vector<16x128xf32>
    %288 = arith.addf %286, %287 : vector<16x128xf32>
    %289 = vector.extract_strided_slice %283 {offsets = [0, 128], sizes = [16, 128], strides = [1, 1]} : vector<16x384xf32> to vector<16x128xf32>
    %cst_107 = arith.constant 5.000000e-01 : f32
    %290 = vector.broadcast %cst_107 : f32 to vector<16x128xf32>
    %291 = arith.mulf %290, %289 : vector<16x128xf32>
    %cst_108 = arith.constant 5.000000e-01 : f32
    %292 = vector.broadcast %cst_108 : f32 to vector<16x128xf32>
    %293 = arith.addf %291, %292 : vector<16x128xf32>
    %294 = vector.extract_strided_slice %283 {offsets = [0, 256], sizes = [16, 128], strides = [1, 1]} : vector<16x384xf32> to vector<16x128xf32>
    %cst_109 = arith.constant 5.000000e-01 : f32
    %295 = vector.broadcast %cst_109 : f32 to vector<16x128xf32>
    %296 = arith.mulf %295, %294 : vector<16x128xf32>
    %cst_110 = arith.constant 5.000000e-01 : f32
    %297 = vector.broadcast %cst_110 : f32 to vector<16x128xf32>
    %298 = arith.addf %296, %297 : vector<16x128xf32>
    %299 = vector.extract_strided_slice %279 {offsets = [0, 384], sizes = [16, 128], strides = [1, 1]} : vector<16x512xf32> to vector<16x128xf32>
    %300 = math.tanh %299 : vector<16x128xf32>
    %301 = arith.mulf %293, %266 : vector<16x128xf32>
    %302 = arith.mulf %288, %300 : vector<16x128xf32>
    %303 = arith.addf %301, %302 : vector<16x128xf32>
    %304 = math.tanh %303 : vector<16x128xf32>
    %305 = arith.mulf %298, %304 : vector<16x128xf32>
    %306 = arith.truncf %305 : vector<16x128xf32> to vector<16x128xbf16>
    %307 = arith.index_cast %c7_i32 : i32 to index
    %c0_111 = arith.constant 0 : index
    %c0_112 = arith.constant 0 : index
    %308 = vector.load %arg6[%307, %c0_111, %c0_112] : memref<8x16x128xbf16, #tpu.memory_space<vmem>>, vector<1x16x128xbf16>
    %309 = vector.shape_cast %308 : vector<1x16x128xbf16> to vector<16x128xbf16>
    %310 = vector.shape_cast %306 : vector<16x128xbf16> to vector<1x16x128xbf16>
    tpu.vector_store %arg6[%307, %c0_111, %c0_112], %310 {strides = array<i32>} : memref<8x16x128xbf16, #tpu.memory_space<vmem>>, vector<1x16x128xbf16>,
    %c8_i32 = arith.constant 8 : i32
    %c0_113 = arith.constant 0 : index
    %c0_114 = arith.constant 0 : index
    %311 = vector.load %arg10[%c0_113, %c0_114] : memref<16x128xf32, #tpu.memory_space<vmem>>, vector<16x128xf32>
    tpu.vector_store %arg10[%c0_113, %c0_114], %305 {strides = array<i32>} : memref<16x128xf32, #tpu.memory_space<vmem>>, vector<16x128xf32>,
    %c0_115 = arith.constant 0 : index
    %c0_116 = arith.constant 0 : index
    %312 = vector.load %arg11[%c0_115, %c0_116] : memref<16x128xf32, #tpu.memory_space<vmem>>, vector<16x128xf32>
    tpu.vector_store %arg11[%c0_115, %c0_116], %303 {strides = array<i32>} : memref<16x128xf32, #tpu.memory_space<vmem>>, vector<16x128xf32>,
    %c0_i32_117 = arith.constant 0 : i32
    %313 = arith.cmpi eq, %arg1, %c0_i32_117 : i32
    %314 = arith.extui %313 : i1 to i32
    %c0_i32_118 = arith.constant 0 : i32
    %315 = arith.cmpi ne, %314, %c0_i32_118 : i32
    scf.if %315 {
      %c0_119 = arith.constant 0 : index
      %c0_120 = arith.constant 0 : index
      %316 = vector.load %arg7[%c0_119, %c0_120] : memref<16x128xf32, #tpu.memory_space<vmem>>, vector<16x128xf32>
      tpu.vector_store %arg7[%c0_119, %c0_120], %305 {strides = array<i32>} : memref<16x128xf32, #tpu.memory_space<vmem>>, vector<16x128xf32>,
      %c0_121 = arith.constant 0 : index
      %c0_122 = arith.constant 0 : index
      %317 = vector.load %arg8[%c0_121, %c0_122] : memref<16x128xf32, #tpu.memory_space<vmem>>, vector<16x128xf32>
      tpu.vector_store %arg8[%c0_121, %c0_122], %303 {strides = array<i32>} : memref<16x128xf32, #tpu.memory_space<vmem>>, vector<16x128xf32>,
    } else {
    }
    return
  }
  func.func @transform_0(%arg0: i32, %arg1: i32) -> (i32, i32, i32) {
    %c0_i32 = arith.constant 0 : i32
    %c0_i32_0 = arith.constant 0 : i32
    return %arg1, %arg0, %c0_i32 : i32, i32, i32
  }
  func.func @transform_1(%arg0: i32, %arg1: i32) -> (i32, i32) {
    %c0_i32 = arith.constant 0 : i32
    %c0_i32_0 = arith.constant 0 : i32
    %c0_i32_1 = arith.constant 0 : i32
    return %c0_i32, %c0_i32_0 : i32, i32
  }
  func.func @transform_2(%arg0: i32, %arg1: i32) -> (i32, i32) {
    %c0_i32 = arith.constant 0 : i32
    %c0_i32_0 = arith.constant 0 : i32
    %c0_i32_1 = arith.constant 0 : i32
    return %c0_i32, %c0_i32_0 : i32, i32
  }
  func.func @transform_3(%arg0: i32, %arg1: i32) -> (i32, i32) {
    %c0_i32 = arith.constant 0 : i32
    %c0_i32_0 = arith.constant 0 : i32
    %c0_i32_1 = arith.constant 0 : i32
    return %c0_i32, %c0_i32_0 : i32, i32
  }
  func.func @transform_4(%arg0: i32, %arg1: i32) -> (i32, i32, i32) {
    %c0_i32 = arith.constant 0 : i32
    %c0_i32_0 = arith.constant 0 : i32
    return %arg1, %arg0, %c0_i32 : i32, i32, i32
  }
  func.func @transform_5(%arg0: i32, %arg1: i32) -> (i32, i32) {
    %c0_i32 = arith.constant 0 : i32
    %c0_i32_0 = arith.constant 0 : i32
    return %arg0, %c0_i32 : i32, i32
  }
  func.func @transform_6(%arg0: i32, %arg1: i32) -> (i32, i32) {
    %c0_i32 = arith.constant 0 : i32
    %c0_i32_0 = arith.constant 0 : i32
    return %arg0, %c0_i32 : i32, i32
  }
}

module attributes {stable_mosaic.version = 11 : i64} {
  func.func @kernel(%arg0: i32, %arg1: i32, %arg2: memref<8x16x128xbf16, #tpu.memory_space<vmem>>, %arg3: memref<128x512xbf16, #tpu.memory_space<vmem>>, %arg4: memref<128x512xbf16, #tpu.memory_space<vmem>>, %arg5: memref<1x512xf32, #tpu.memory_space<vmem>>, %arg6: memref<16x128xf32, #tpu.memory_space<vmem>>, %arg7: memref<16x128xf32, #tpu.memory_space<vmem>>, %arg8: memref<8x16x512xf32, #tpu.memory_space<vmem>>, %arg9: memref<16x128xf32, #tpu.memory_space<vmem>>, %arg10: memref<16x128xf32, #tpu.memory_space<vmem>>) attributes {dimension_semantics = [#tpu.dimension_semantics<parallel>, #tpu.dimension_semantics<arbitrary>], iteration_bounds = array<i64: 1, 1>, scalar_prefetch = 0 : i64, scratch_operands = 3 : i64, tpu.core_type = #tpu.core_type<tc>, window_params = [{transform_indices = @transform_0, window_bounds = array<i64: 8, 16, 128>}, {pipeline_mode = #tpu.pipeline_mode<synchronous>, transform_indices = @transform_1, window_bounds = array<i64: 128, 512>}, {pipeline_mode = #tpu.pipeline_mode<synchronous>, transform_indices = @transform_2, window_bounds = array<i64: 128, 512>}, {pipeline_mode = #tpu.pipeline_mode<synchronous>, transform_indices = @transform_3, window_bounds = array<i64: 1, 512>}, {transform_indices = @transform_4, window_bounds = array<i64: 16, 128>}, {transform_indices = @transform_5, window_bounds = array<i64: 16, 128>}]} {
    %c0_i32 = arith.constant 0 : i32
    %0 = arith.cmpi eq, %arg1, %c0_i32 : i32
    %1 = arith.extui %0 : i1 to i32
    %c0_i32_0 = arith.constant 0 : i32
    %2 = arith.cmpi ne, %1, %c0_i32_0 : i32
    scf.if %2 {
      %cst_103 = arith.constant 0.000000e+00 : f32
      %276 = vector.broadcast %cst_103 : f32 to vector<16x128xf32>
      %c0_104 = arith.constant 0 : index
      %c0_105 = arith.constant 0 : index
      %277 = vector.load %arg9[%c0_104, %c0_105] : memref<16x128xf32, #tpu.memory_space<vmem>>, vector<16x128xf32>
      tpu.vector_store %arg9[%c0_104, %c0_105], %276 {strides = array<i32>} : memref<16x128xf32, #tpu.memory_space<vmem>>, vector<16x128xf32>,
      %cst_106 = arith.constant 0.000000e+00 : f32
      %278 = vector.broadcast %cst_106 : f32 to vector<16x128xf32>
      %c0_107 = arith.constant 0 : index
      %c0_108 = arith.constant 0 : index
      %279 = vector.load %arg10[%c0_107, %c0_108] : memref<16x128xf32, #tpu.memory_space<vmem>>, vector<16x128xf32>
      tpu.vector_store %arg10[%c0_107, %c0_108], %278 {strides = array<i32>} : memref<16x128xf32, #tpu.memory_space<vmem>>, vector<16x128xf32>,
    } else {
    }
    %c0 = arith.constant 0 : index
    %c0_1 = arith.constant 0 : index
    %c0_2 = arith.constant 0 : index
    %3 = vector.load %arg2[%c0, %c0_1, %c0_2] : memref<8x16x128xbf16, #tpu.memory_space<vmem>>, vector<8x16x128xbf16>
    %4 = vector.shape_cast %3 : vector<8x16x128xbf16> to vector<128x128xbf16>
    %c0_3 = arith.constant 0 : index
    %c0_4 = arith.constant 0 : index
    %5 = vector.load %arg3[%c0_3, %c0_4] : memref<128x512xbf16, #tpu.memory_space<vmem>>, vector<128x512xbf16>
    %cst = arith.constant dense<0.000000e+00> : vector<128x512xf32>
    %6 = tpu.matmul %4, %5, %cst {dimension_numbers = #tpu.dot_dimension_numbers<[1], [0], [0], [1], [0, 0, 1, 1], [], []>} : vector<128x128xbf16>, vector<128x512xbf16>, vector<128x512xf32> -> vector<128x512xf32>
    %c0_5 = arith.constant 0 : index
    %c0_6 = arith.constant 0 : index
    %7 = vector.load %arg5[%c0_5, %c0_6] : memref<1x512xf32, #tpu.memory_space<vmem>>, vector<1x512xf32>
    %8 = vector.broadcast %7 : vector<1x512xf32> to vector<128x512xf32>
    %9 = arith.addf %6, %8 : vector<128x512xf32>
    %10 = vector.shape_cast %9 : vector<128x512xf32> to vector<8x16x512xf32>
    %c0_7 = arith.constant 0 : index
    %c0_8 = arith.constant 0 : index
    %c0_9 = arith.constant 0 : index
    %11 = vector.load %arg8[%c0_7, %c0_8, %c0_9] : memref<8x16x512xf32, #tpu.memory_space<vmem>>, vector<8x16x512xf32>
    tpu.vector_store %arg8[%c0_7, %c0_8, %c0_9], %10 {strides = array<i32>} : memref<8x16x512xf32, #tpu.memory_space<vmem>>, vector<8x16x512xf32>,
    %c0_10 = arith.constant 0 : index
    %c0_11 = arith.constant 0 : index
    %12 = vector.load %arg4[%c0_10, %c0_11] : memref<128x512xbf16, #tpu.memory_space<vmem>>, vector<128x512xbf16>
    %c0_12 = arith.constant 0 : index
    %c0_13 = arith.constant 0 : index
    %13 = vector.load %arg9[%c0_12, %c0_13] : memref<16x128xf32, #tpu.memory_space<vmem>>, vector<16x128xf32>
    %c0_14 = arith.constant 0 : index
    %c0_15 = arith.constant 0 : index
    %14 = vector.load %arg10[%c0_14, %c0_15] : memref<16x128xf32, #tpu.memory_space<vmem>>, vector<16x128xf32>
    %c0_i32_16 = arith.constant 0 : i32
    %15 = arith.index_cast %c0_i32_16 : i32 to index
    %c0_17 = arith.constant 0 : index
    %c0_18 = arith.constant 0 : index
    %16 = vector.load %arg8[%15, %c0_17, %c0_18] : memref<8x16x512xf32, #tpu.memory_space<vmem>>, vector<1x16x512xf32>
    %17 = vector.shape_cast %16 : vector<1x16x512xf32> to vector<16x512xf32>
    %18 = arith.truncf %13 : vector<16x128xf32> to vector<16x128xbf16>
    %cst_19 = arith.constant dense<0.000000e+00> : vector<16x512xf32>
    %19 = tpu.matmul %18, %12, %cst_19 {dimension_numbers = #tpu.dot_dimension_numbers<[1], [0], [0], [1], [0, 0, 1, 1], [], []>} : vector<16x128xbf16>, vector<128x512xbf16>, vector<16x512xf32> -> vector<16x512xf32>
    %20 = arith.addf %17, %19 : vector<16x512xf32>
    %21 = vector.extract_strided_slice %20 {offsets = [0, 0], sizes = [16, 384], strides = [1, 1]} : vector<16x512xf32> to vector<16x384xf32>
    %cst_20 = arith.constant 5.000000e-01 : f32
    %22 = vector.broadcast %cst_20 : f32 to vector<16x384xf32>
    %23 = arith.mulf %22, %21 : vector<16x384xf32>
    %24 = math.tanh %23 : vector<16x384xf32>
    %25 = vector.extract_strided_slice %24 {offsets = [0, 0], sizes = [16, 128], strides = [1, 1]} : vector<16x384xf32> to vector<16x128xf32>
    %cst_21 = arith.constant 5.000000e-01 : f32
    %26 = vector.broadcast %cst_21 : f32 to vector<16x128xf32>
    %27 = arith.mulf %26, %25 : vector<16x128xf32>
    %cst_22 = arith.constant 5.000000e-01 : f32
    %28 = vector.broadcast %cst_22 : f32 to vector<16x128xf32>
    %29 = arith.addf %27, %28 : vector<16x128xf32>
    %30 = vector.extract_strided_slice %24 {offsets = [0, 128], sizes = [16, 128], strides = [1, 1]} : vector<16x384xf32> to vector<16x128xf32>
    %cst_23 = arith.constant 5.000000e-01 : f32
    %31 = vector.broadcast %cst_23 : f32 to vector<16x128xf32>
    %32 = arith.mulf %31, %30 : vector<16x128xf32>
    %cst_24 = arith.constant 5.000000e-01 : f32
    %33 = vector.broadcast %cst_24 : f32 to vector<16x128xf32>
    %34 = arith.addf %32, %33 : vector<16x128xf32>
    %35 = vector.extract_strided_slice %24 {offsets = [0, 256], sizes = [16, 128], strides = [1, 1]} : vector<16x384xf32> to vector<16x128xf32>
    %cst_25 = arith.constant 5.000000e-01 : f32
    %36 = vector.broadcast %cst_25 : f32 to vector<16x128xf32>
    %37 = arith.mulf %36, %35 : vector<16x128xf32>
    %cst_26 = arith.constant 5.000000e-01 : f32
    %38 = vector.broadcast %cst_26 : f32 to vector<16x128xf32>
    %39 = arith.addf %37, %38 : vector<16x128xf32>
    %40 = vector.extract_strided_slice %20 {offsets = [0, 384], sizes = [16, 128], strides = [1, 1]} : vector<16x512xf32> to vector<16x128xf32>
    %41 = math.tanh %40 : vector<16x128xf32>
    %42 = arith.mulf %34, %14 : vector<16x128xf32>
    %43 = arith.mulf %29, %41 : vector<16x128xf32>
    %44 = arith.addf %42, %43 : vector<16x128xf32>
    %45 = math.tanh %44 : vector<16x128xf32>
    %46 = arith.mulf %39, %45 : vector<16x128xf32>
    %c1_i32 = arith.constant 1 : i32
    %47 = arith.index_cast %c1_i32 : i32 to index
    %c0_27 = arith.constant 0 : index
    %c0_28 = arith.constant 0 : index
    %48 = vector.load %arg8[%47, %c0_27, %c0_28] : memref<8x16x512xf32, #tpu.memory_space<vmem>>, vector<1x16x512xf32>
    %49 = vector.shape_cast %48 : vector<1x16x512xf32> to vector<16x512xf32>
    %50 = arith.truncf %46 : vector<16x128xf32> to vector<16x128xbf16>
    %cst_29 = arith.constant dense<0.000000e+00> : vector<16x512xf32>
    %51 = tpu.matmul %50, %12, %cst_29 {dimension_numbers = #tpu.dot_dimension_numbers<[1], [0], [0], [1], [0, 0, 1, 1], [], []>} : vector<16x128xbf16>, vector<128x512xbf16>, vector<16x512xf32> -> vector<16x512xf32>
    %52 = arith.addf %49, %51 : vector<16x512xf32>
    %53 = vector.extract_strided_slice %52 {offsets = [0, 0], sizes = [16, 384], strides = [1, 1]} : vector<16x512xf32> to vector<16x384xf32>
    %cst_30 = arith.constant 5.000000e-01 : f32
    %54 = vector.broadcast %cst_30 : f32 to vector<16x384xf32>
    %55 = arith.mulf %54, %53 : vector<16x384xf32>
    %56 = math.tanh %55 : vector<16x384xf32>
    %57 = vector.extract_strided_slice %56 {offsets = [0, 0], sizes = [16, 128], strides = [1, 1]} : vector<16x384xf32> to vector<16x128xf32>
    %cst_31 = arith.constant 5.000000e-01 : f32
    %58 = vector.broadcast %cst_31 : f32 to vector<16x128xf32>
    %59 = arith.mulf %58, %57 : vector<16x128xf32>
    %cst_32 = arith.constant 5.000000e-01 : f32
    %60 = vector.broadcast %cst_32 : f32 to vector<16x128xf32>
    %61 = arith.addf %59, %60 : vector<16x128xf32>
    %62 = vector.extract_strided_slice %56 {offsets = [0, 128], sizes = [16, 128], strides = [1, 1]} : vector<16x384xf32> to vector<16x128xf32>
    %cst_33 = arith.constant 5.000000e-01 : f32
    %63 = vector.broadcast %cst_33 : f32 to vector<16x128xf32>
    %64 = arith.mulf %63, %62 : vector<16x128xf32>
    %cst_34 = arith.constant 5.000000e-01 : f32
    %65 = vector.broadcast %cst_34 : f32 to vector<16x128xf32>
    %66 = arith.addf %64, %65 : vector<16x128xf32>
    %67 = vector.extract_strided_slice %56 {offsets = [0, 256], sizes = [16, 128], strides = [1, 1]} : vector<16x384xf32> to vector<16x128xf32>
    %cst_35 = arith.constant 5.000000e-01 : f32
    %68 = vector.broadcast %cst_35 : f32 to vector<16x128xf32>
    %69 = arith.mulf %68, %67 : vector<16x128xf32>
    %cst_36 = arith.constant 5.000000e-01 : f32
    %70 = vector.broadcast %cst_36 : f32 to vector<16x128xf32>
    %71 = arith.addf %69, %70 : vector<16x128xf32>
    %72 = vector.extract_strided_slice %52 {offsets = [0, 384], sizes = [16, 128], strides = [1, 1]} : vector<16x512xf32> to vector<16x128xf32>
    %73 = math.tanh %72 : vector<16x128xf32>
    %74 = arith.mulf %66, %44 : vector<16x128xf32>
    %75 = arith.mulf %61, %73 : vector<16x128xf32>
    %76 = arith.addf %74, %75 : vector<16x128xf32>
    %77 = math.tanh %76 : vector<16x128xf32>
    %78 = arith.mulf %71, %77 : vector<16x128xf32>
    %c2_i32 = arith.constant 2 : i32
    %79 = arith.index_cast %c2_i32 : i32 to index
    %c0_37 = arith.constant 0 : index
    %c0_38 = arith.constant 0 : index
    %80 = vector.load %arg8[%79, %c0_37, %c0_38] : memref<8x16x512xf32, #tpu.memory_space<vmem>>, vector<1x16x512xf32>
    %81 = vector.shape_cast %80 : vector<1x16x512xf32> to vector<16x512xf32>
    %82 = arith.truncf %78 : vector<16x128xf32> to vector<16x128xbf16>
    %cst_39 = arith.constant dense<0.000000e+00> : vector<16x512xf32>
    %83 = tpu.matmul %82, %12, %cst_39 {dimension_numbers = #tpu.dot_dimension_numbers<[1], [0], [0], [1], [0, 0, 1, 1], [], []>} : vector<16x128xbf16>, vector<128x512xbf16>, vector<16x512xf32> -> vector<16x512xf32>
    %84 = arith.addf %81, %83 : vector<16x512xf32>
    %85 = vector.extract_strided_slice %84 {offsets = [0, 0], sizes = [16, 384], strides = [1, 1]} : vector<16x512xf32> to vector<16x384xf32>
    %cst_40 = arith.constant 5.000000e-01 : f32
    %86 = vector.broadcast %cst_40 : f32 to vector<16x384xf32>
    %87 = arith.mulf %86, %85 : vector<16x384xf32>
    %88 = math.tanh %87 : vector<16x384xf32>
    %89 = vector.extract_strided_slice %88 {offsets = [0, 0], sizes = [16, 128], strides = [1, 1]} : vector<16x384xf32> to vector<16x128xf32>
    %cst_41 = arith.constant 5.000000e-01 : f32
    %90 = vector.broadcast %cst_41 : f32 to vector<16x128xf32>
    %91 = arith.mulf %90, %89 : vector<16x128xf32>
    %cst_42 = arith.constant 5.000000e-01 : f32
    %92 = vector.broadcast %cst_42 : f32 to vector<16x128xf32>
    %93 = arith.addf %91, %92 : vector<16x128xf32>
    %94 = vector.extract_strided_slice %88 {offsets = [0, 128], sizes = [16, 128], strides = [1, 1]} : vector<16x384xf32> to vector<16x128xf32>
    %cst_43 = arith.constant 5.000000e-01 : f32
    %95 = vector.broadcast %cst_43 : f32 to vector<16x128xf32>
    %96 = arith.mulf %95, %94 : vector<16x128xf32>
    %cst_44 = arith.constant 5.000000e-01 : f32
    %97 = vector.broadcast %cst_44 : f32 to vector<16x128xf32>
    %98 = arith.addf %96, %97 : vector<16x128xf32>
    %99 = vector.extract_strided_slice %88 {offsets = [0, 256], sizes = [16, 128], strides = [1, 1]} : vector<16x384xf32> to vector<16x128xf32>
    %cst_45 = arith.constant 5.000000e-01 : f32
    %100 = vector.broadcast %cst_45 : f32 to vector<16x128xf32>
    %101 = arith.mulf %100, %99 : vector<16x128xf32>
    %cst_46 = arith.constant 5.000000e-01 : f32
    %102 = vector.broadcast %cst_46 : f32 to vector<16x128xf32>
    %103 = arith.addf %101, %102 : vector<16x128xf32>
    %104 = vector.extract_strided_slice %84 {offsets = [0, 384], sizes = [16, 128], strides = [1, 1]} : vector<16x512xf32> to vector<16x128xf32>
    %105 = math.tanh %104 : vector<16x128xf32>
    %106 = arith.mulf %98, %76 : vector<16x128xf32>
    %107 = arith.mulf %93, %105 : vector<16x128xf32>
    %108 = arith.addf %106, %107 : vector<16x128xf32>
    %109 = math.tanh %108 : vector<16x128xf32>
    %110 = arith.mulf %103, %109 : vector<16x128xf32>
    %c3_i32 = arith.constant 3 : i32
    %111 = arith.index_cast %c3_i32 : i32 to index
    %c0_47 = arith.constant 0 : index
    %c0_48 = arith.constant 0 : index
    %112 = vector.load %arg8[%111, %c0_47, %c0_48] : memref<8x16x512xf32, #tpu.memory_space<vmem>>, vector<1x16x512xf32>
    %113 = vector.shape_cast %112 : vector<1x16x512xf32> to vector<16x512xf32>
    %114 = arith.truncf %110 : vector<16x128xf32> to vector<16x128xbf16>
    %cst_49 = arith.constant dense<0.000000e+00> : vector<16x512xf32>
    %115 = tpu.matmul %114, %12, %cst_49 {dimension_numbers = #tpu.dot_dimension_numbers<[1], [0], [0], [1], [0, 0, 1, 1], [], []>} : vector<16x128xbf16>, vector<128x512xbf16>, vector<16x512xf32> -> vector<16x512xf32>
    %116 = arith.addf %113, %115 : vector<16x512xf32>
    %117 = vector.extract_strided_slice %116 {offsets = [0, 0], sizes = [16, 384], strides = [1, 1]} : vector<16x512xf32> to vector<16x384xf32>
    %cst_50 = arith.constant 5.000000e-01 : f32
    %118 = vector.broadcast %cst_50 : f32 to vector<16x384xf32>
    %119 = arith.mulf %118, %117 : vector<16x384xf32>
    %120 = math.tanh %119 : vector<16x384xf32>
    %121 = vector.extract_strided_slice %120 {offsets = [0, 0], sizes = [16, 128], strides = [1, 1]} : vector<16x384xf32> to vector<16x128xf32>
    %cst_51 = arith.constant 5.000000e-01 : f32
    %122 = vector.broadcast %cst_51 : f32 to vector<16x128xf32>
    %123 = arith.mulf %122, %121 : vector<16x128xf32>
    %cst_52 = arith.constant 5.000000e-01 : f32
    %124 = vector.broadcast %cst_52 : f32 to vector<16x128xf32>
    %125 = arith.addf %123, %124 : vector<16x128xf32>
    %126 = vector.extract_strided_slice %120 {offsets = [0, 128], sizes = [16, 128], strides = [1, 1]} : vector<16x384xf32> to vector<16x128xf32>
    %cst_53 = arith.constant 5.000000e-01 : f32
    %127 = vector.broadcast %cst_53 : f32 to vector<16x128xf32>
    %128 = arith.mulf %127, %126 : vector<16x128xf32>
    %cst_54 = arith.constant 5.000000e-01 : f32
    %129 = vector.broadcast %cst_54 : f32 to vector<16x128xf32>
    %130 = arith.addf %128, %129 : vector<16x128xf32>
    %131 = vector.extract_strided_slice %120 {offsets = [0, 256], sizes = [16, 128], strides = [1, 1]} : vector<16x384xf32> to vector<16x128xf32>
    %cst_55 = arith.constant 5.000000e-01 : f32
    %132 = vector.broadcast %cst_55 : f32 to vector<16x128xf32>
    %133 = arith.mulf %132, %131 : vector<16x128xf32>
    %cst_56 = arith.constant 5.000000e-01 : f32
    %134 = vector.broadcast %cst_56 : f32 to vector<16x128xf32>
    %135 = arith.addf %133, %134 : vector<16x128xf32>
    %136 = vector.extract_strided_slice %116 {offsets = [0, 384], sizes = [16, 128], strides = [1, 1]} : vector<16x512xf32> to vector<16x128xf32>
    %137 = math.tanh %136 : vector<16x128xf32>
    %138 = arith.mulf %130, %108 : vector<16x128xf32>
    %139 = arith.mulf %125, %137 : vector<16x128xf32>
    %140 = arith.addf %138, %139 : vector<16x128xf32>
    %141 = math.tanh %140 : vector<16x128xf32>
    %142 = arith.mulf %135, %141 : vector<16x128xf32>
    %c4_i32 = arith.constant 4 : i32
    %143 = arith.index_cast %c4_i32 : i32 to index
    %c0_57 = arith.constant 0 : index
    %c0_58 = arith.constant 0 : index
    %144 = vector.load %arg8[%143, %c0_57, %c0_58] : memref<8x16x512xf32, #tpu.memory_space<vmem>>, vector<1x16x512xf32>
    %145 = vector.shape_cast %144 : vector<1x16x512xf32> to vector<16x512xf32>
    %146 = arith.truncf %142 : vector<16x128xf32> to vector<16x128xbf16>
    %cst_59 = arith.constant dense<0.000000e+00> : vector<16x512xf32>
    %147 = tpu.matmul %146, %12, %cst_59 {dimension_numbers = #tpu.dot_dimension_numbers<[1], [0], [0], [1], [0, 0, 1, 1], [], []>} : vector<16x128xbf16>, vector<128x512xbf16>, vector<16x512xf32> -> vector<16x512xf32>
    %148 = arith.addf %145, %147 : vector<16x512xf32>
    %149 = vector.extract_strided_slice %148 {offsets = [0, 0], sizes = [16, 384], strides = [1, 1]} : vector<16x512xf32> to vector<16x384xf32>
    %cst_60 = arith.constant 5.000000e-01 : f32
    %150 = vector.broadcast %cst_60 : f32 to vector<16x384xf32>
    %151 = arith.mulf %150, %149 : vector<16x384xf32>
    %152 = math.tanh %151 : vector<16x384xf32>
    %153 = vector.extract_strided_slice %152 {offsets = [0, 0], sizes = [16, 128], strides = [1, 1]} : vector<16x384xf32> to vector<16x128xf32>
    %cst_61 = arith.constant 5.000000e-01 : f32
    %154 = vector.broadcast %cst_61 : f32 to vector<16x128xf32>
    %155 = arith.mulf %154, %153 : vector<16x128xf32>
    %cst_62 = arith.constant 5.000000e-01 : f32
    %156 = vector.broadcast %cst_62 : f32 to vector<16x128xf32>
    %157 = arith.addf %155, %156 : vector<16x128xf32>
    %158 = vector.extract_strided_slice %152 {offsets = [0, 128], sizes = [16, 128], strides = [1, 1]} : vector<16x384xf32> to vector<16x128xf32>
    %cst_63 = arith.constant 5.000000e-01 : f32
    %159 = vector.broadcast %cst_63 : f32 to vector<16x128xf32>
    %160 = arith.mulf %159, %158 : vector<16x128xf32>
    %cst_64 = arith.constant 5.000000e-01 : f32
    %161 = vector.broadcast %cst_64 : f32 to vector<16x128xf32>
    %162 = arith.addf %160, %161 : vector<16x128xf32>
    %163 = vector.extract_strided_slice %152 {offsets = [0, 256], sizes = [16, 128], strides = [1, 1]} : vector<16x384xf32> to vector<16x128xf32>
    %cst_65 = arith.constant 5.000000e-01 : f32
    %164 = vector.broadcast %cst_65 : f32 to vector<16x128xf32>
    %165 = arith.mulf %164, %163 : vector<16x128xf32>
    %cst_66 = arith.constant 5.000000e-01 : f32
    %166 = vector.broadcast %cst_66 : f32 to vector<16x128xf32>
    %167 = arith.addf %165, %166 : vector<16x128xf32>
    %168 = vector.extract_strided_slice %148 {offsets = [0, 384], sizes = [16, 128], strides = [1, 1]} : vector<16x512xf32> to vector<16x128xf32>
    %169 = math.tanh %168 : vector<16x128xf32>
    %170 = arith.mulf %162, %140 : vector<16x128xf32>
    %171 = arith.mulf %157, %169 : vector<16x128xf32>
    %172 = arith.addf %170, %171 : vector<16x128xf32>
    %173 = math.tanh %172 : vector<16x128xf32>
    %174 = arith.mulf %167, %173 : vector<16x128xf32>
    %c5_i32 = arith.constant 5 : i32
    %175 = arith.index_cast %c5_i32 : i32 to index
    %c0_67 = arith.constant 0 : index
    %c0_68 = arith.constant 0 : index
    %176 = vector.load %arg8[%175, %c0_67, %c0_68] : memref<8x16x512xf32, #tpu.memory_space<vmem>>, vector<1x16x512xf32>
    %177 = vector.shape_cast %176 : vector<1x16x512xf32> to vector<16x512xf32>
    %178 = arith.truncf %174 : vector<16x128xf32> to vector<16x128xbf16>
    %cst_69 = arith.constant dense<0.000000e+00> : vector<16x512xf32>
    %179 = tpu.matmul %178, %12, %cst_69 {dimension_numbers = #tpu.dot_dimension_numbers<[1], [0], [0], [1], [0, 0, 1, 1], [], []>} : vector<16x128xbf16>, vector<128x512xbf16>, vector<16x512xf32> -> vector<16x512xf32>
    %180 = arith.addf %177, %179 : vector<16x512xf32>
    %181 = vector.extract_strided_slice %180 {offsets = [0, 0], sizes = [16, 384], strides = [1, 1]} : vector<16x512xf32> to vector<16x384xf32>
    %cst_70 = arith.constant 5.000000e-01 : f32
    %182 = vector.broadcast %cst_70 : f32 to vector<16x384xf32>
    %183 = arith.mulf %182, %181 : vector<16x384xf32>
    %184 = math.tanh %183 : vector<16x384xf32>
    %185 = vector.extract_strided_slice %184 {offsets = [0, 0], sizes = [16, 128], strides = [1, 1]} : vector<16x384xf32> to vector<16x128xf32>
    %cst_71 = arith.constant 5.000000e-01 : f32
    %186 = vector.broadcast %cst_71 : f32 to vector<16x128xf32>
    %187 = arith.mulf %186, %185 : vector<16x128xf32>
    %cst_72 = arith.constant 5.000000e-01 : f32
    %188 = vector.broadcast %cst_72 : f32 to vector<16x128xf32>
    %189 = arith.addf %187, %188 : vector<16x128xf32>
    %190 = vector.extract_strided_slice %184 {offsets = [0, 128], sizes = [16, 128], strides = [1, 1]} : vector<16x384xf32> to vector<16x128xf32>
    %cst_73 = arith.constant 5.000000e-01 : f32
    %191 = vector.broadcast %cst_73 : f32 to vector<16x128xf32>
    %192 = arith.mulf %191, %190 : vector<16x128xf32>
    %cst_74 = arith.constant 5.000000e-01 : f32
    %193 = vector.broadcast %cst_74 : f32 to vector<16x128xf32>
    %194 = arith.addf %192, %193 : vector<16x128xf32>
    %195 = vector.extract_strided_slice %184 {offsets = [0, 256], sizes = [16, 128], strides = [1, 1]} : vector<16x384xf32> to vector<16x128xf32>
    %cst_75 = arith.constant 5.000000e-01 : f32
    %196 = vector.broadcast %cst_75 : f32 to vector<16x128xf32>
    %197 = arith.mulf %196, %195 : vector<16x128xf32>
    %cst_76 = arith.constant 5.000000e-01 : f32
    %198 = vector.broadcast %cst_76 : f32 to vector<16x128xf32>
    %199 = arith.addf %197, %198 : vector<16x128xf32>
    %200 = vector.extract_strided_slice %180 {offsets = [0, 384], sizes = [16, 128], strides = [1, 1]} : vector<16x512xf32> to vector<16x128xf32>
    %201 = math.tanh %200 : vector<16x128xf32>
    %202 = arith.mulf %194, %172 : vector<16x128xf32>
    %203 = arith.mulf %189, %201 : vector<16x128xf32>
    %204 = arith.addf %202, %203 : vector<16x128xf32>
    %205 = math.tanh %204 : vector<16x128xf32>
    %206 = arith.mulf %199, %205 : vector<16x128xf32>
    %c6_i32 = arith.constant 6 : i32
    %207 = arith.index_cast %c6_i32 : i32 to index
    %c0_77 = arith.constant 0 : index
    %c0_78 = arith.constant 0 : index
    %208 = vector.load %arg8[%207, %c0_77, %c0_78] : memref<8x16x512xf32, #tpu.memory_space<vmem>>, vector<1x16x512xf32>
    %209 = vector.shape_cast %208 : vector<1x16x512xf32> to vector<16x512xf32>
    %210 = arith.truncf %206 : vector<16x128xf32> to vector<16x128xbf16>
    %cst_79 = arith.constant dense<0.000000e+00> : vector<16x512xf32>
    %211 = tpu.matmul %210, %12, %cst_79 {dimension_numbers = #tpu.dot_dimension_numbers<[1], [0], [0], [1], [0, 0, 1, 1], [], []>} : vector<16x128xbf16>, vector<128x512xbf16>, vector<16x512xf32> -> vector<16x512xf32>
    %212 = arith.addf %209, %211 : vector<16x512xf32>
    %213 = vector.extract_strided_slice %212 {offsets = [0, 0], sizes = [16, 384], strides = [1, 1]} : vector<16x512xf32> to vector<16x384xf32>
    %cst_80 = arith.constant 5.000000e-01 : f32
    %214 = vector.broadcast %cst_80 : f32 to vector<16x384xf32>
    %215 = arith.mulf %214, %213 : vector<16x384xf32>
    %216 = math.tanh %215 : vector<16x384xf32>
    %217 = vector.extract_strided_slice %216 {offsets = [0, 0], sizes = [16, 128], strides = [1, 1]} : vector<16x384xf32> to vector<16x128xf32>
    %cst_81 = arith.constant 5.000000e-01 : f32
    %218 = vector.broadcast %cst_81 : f32 to vector<16x128xf32>
    %219 = arith.mulf %218, %217 : vector<16x128xf32>
    %cst_82 = arith.constant 5.000000e-01 : f32
    %220 = vector.broadcast %cst_82 : f32 to vector<16x128xf32>
    %221 = arith.addf %219, %220 : vector<16x128xf32>
    %222 = vector.extract_strided_slice %216 {offsets = [0, 128], sizes = [16, 128], strides = [1, 1]} : vector<16x384xf32> to vector<16x128xf32>
    %cst_83 = arith.constant 5.000000e-01 : f32
    %223 = vector.broadcast %cst_83 : f32 to vector<16x128xf32>
    %224 = arith.mulf %223, %222 : vector<16x128xf32>
    %cst_84 = arith.constant 5.000000e-01 : f32
    %225 = vector.broadcast %cst_84 : f32 to vector<16x128xf32>
    %226 = arith.addf %224, %225 : vector<16x128xf32>
    %227 = vector.extract_strided_slice %216 {offsets = [0, 256], sizes = [16, 128], strides = [1, 1]} : vector<16x384xf32> to vector<16x128xf32>
    %cst_85 = arith.constant 5.000000e-01 : f32
    %228 = vector.broadcast %cst_85 : f32 to vector<16x128xf32>
    %229 = arith.mulf %228, %227 : vector<16x128xf32>
    %cst_86 = arith.constant 5.000000e-01 : f32
    %230 = vector.broadcast %cst_86 : f32 to vector<16x128xf32>
    %231 = arith.addf %229, %230 : vector<16x128xf32>
    %232 = vector.extract_strided_slice %212 {offsets = [0, 384], sizes = [16, 128], strides = [1, 1]} : vector<16x512xf32> to vector<16x128xf32>
    %233 = math.tanh %232 : vector<16x128xf32>
    %234 = arith.mulf %226, %204 : vector<16x128xf32>
    %235 = arith.mulf %221, %233 : vector<16x128xf32>
    %236 = arith.addf %234, %235 : vector<16x128xf32>
    %237 = math.tanh %236 : vector<16x128xf32>
    %238 = arith.mulf %231, %237 : vector<16x128xf32>
    %c7_i32 = arith.constant 7 : i32
    %239 = arith.index_cast %c7_i32 : i32 to index
    %c0_87 = arith.constant 0 : index
    %c0_88 = arith.constant 0 : index
    %240 = vector.load %arg8[%239, %c0_87, %c0_88] : memref<8x16x512xf32, #tpu.memory_space<vmem>>, vector<1x16x512xf32>
    %241 = vector.shape_cast %240 : vector<1x16x512xf32> to vector<16x512xf32>
    %242 = arith.truncf %238 : vector<16x128xf32> to vector<16x128xbf16>
    %cst_89 = arith.constant dense<0.000000e+00> : vector<16x512xf32>
    %243 = tpu.matmul %242, %12, %cst_89 {dimension_numbers = #tpu.dot_dimension_numbers<[1], [0], [0], [1], [0, 0, 1, 1], [], []>} : vector<16x128xbf16>, vector<128x512xbf16>, vector<16x512xf32> -> vector<16x512xf32>
    %244 = arith.addf %241, %243 : vector<16x512xf32>
    %245 = vector.extract_strided_slice %244 {offsets = [0, 0], sizes = [16, 384], strides = [1, 1]} : vector<16x512xf32> to vector<16x384xf32>
    %cst_90 = arith.constant 5.000000e-01 : f32
    %246 = vector.broadcast %cst_90 : f32 to vector<16x384xf32>
    %247 = arith.mulf %246, %245 : vector<16x384xf32>
    %248 = math.tanh %247 : vector<16x384xf32>
    %249 = vector.extract_strided_slice %248 {offsets = [0, 0], sizes = [16, 128], strides = [1, 1]} : vector<16x384xf32> to vector<16x128xf32>
    %cst_91 = arith.constant 5.000000e-01 : f32
    %250 = vector.broadcast %cst_91 : f32 to vector<16x128xf32>
    %251 = arith.mulf %250, %249 : vector<16x128xf32>
    %cst_92 = arith.constant 5.000000e-01 : f32
    %252 = vector.broadcast %cst_92 : f32 to vector<16x128xf32>
    %253 = arith.addf %251, %252 : vector<16x128xf32>
    %254 = vector.extract_strided_slice %248 {offsets = [0, 128], sizes = [16, 128], strides = [1, 1]} : vector<16x384xf32> to vector<16x128xf32>
    %cst_93 = arith.constant 5.000000e-01 : f32
    %255 = vector.broadcast %cst_93 : f32 to vector<16x128xf32>
    %256 = arith.mulf %255, %254 : vector<16x128xf32>
    %cst_94 = arith.constant 5.000000e-01 : f32
    %257 = vector.broadcast %cst_94 : f32 to vector<16x128xf32>
    %258 = arith.addf %256, %257 : vector<16x128xf32>
    %259 = vector.extract_strided_slice %248 {offsets = [0, 256], sizes = [16, 128], strides = [1, 1]} : vector<16x384xf32> to vector<16x128xf32>
    %cst_95 = arith.constant 5.000000e-01 : f32
    %260 = vector.broadcast %cst_95 : f32 to vector<16x128xf32>
    %261 = arith.mulf %260, %259 : vector<16x128xf32>
    %cst_96 = arith.constant 5.000000e-01 : f32
    %262 = vector.broadcast %cst_96 : f32 to vector<16x128xf32>
    %263 = arith.addf %261, %262 : vector<16x128xf32>
    %264 = vector.extract_strided_slice %244 {offsets = [0, 384], sizes = [16, 128], strides = [1, 1]} : vector<16x512xf32> to vector<16x128xf32>
    %265 = math.tanh %264 : vector<16x128xf32>
    %266 = arith.mulf %258, %236 : vector<16x128xf32>
    %267 = arith.mulf %253, %265 : vector<16x128xf32>
    %268 = arith.addf %266, %267 : vector<16x128xf32>
    %269 = math.tanh %268 : vector<16x128xf32>
    %270 = arith.mulf %263, %269 : vector<16x128xf32>
    %c8_i32 = arith.constant 8 : i32
    %c0_97 = arith.constant 0 : index
    %c0_98 = arith.constant 0 : index
    %271 = vector.load %arg9[%c0_97, %c0_98] : memref<16x128xf32, #tpu.memory_space<vmem>>, vector<16x128xf32>
    tpu.vector_store %arg9[%c0_97, %c0_98], %270 {strides = array<i32>} : memref<16x128xf32, #tpu.memory_space<vmem>>, vector<16x128xf32>,
    %c0_99 = arith.constant 0 : index
    %c0_100 = arith.constant 0 : index
    %272 = vector.load %arg10[%c0_99, %c0_100] : memref<16x128xf32, #tpu.memory_space<vmem>>, vector<16x128xf32>
    tpu.vector_store %arg10[%c0_99, %c0_100], %268 {strides = array<i32>} : memref<16x128xf32, #tpu.memory_space<vmem>>, vector<16x128xf32>,
    %c0_i32_101 = arith.constant 0 : i32
    %273 = arith.cmpi eq, %arg1, %c0_i32_101 : i32
    %274 = arith.extui %273 : i1 to i32
    %c0_i32_102 = arith.constant 0 : i32
    %275 = arith.cmpi ne, %274, %c0_i32_102 : i32
    scf.if %275 {
      %c0_103 = arith.constant 0 : index
      %c0_104 = arith.constant 0 : index
      %276 = vector.load %arg6[%c0_103, %c0_104] : memref<16x128xf32, #tpu.memory_space<vmem>>, vector<16x128xf32>
      tpu.vector_store %arg6[%c0_103, %c0_104], %270 {strides = array<i32>} : memref<16x128xf32, #tpu.memory_space<vmem>>, vector<16x128xf32>,
      %c0_105 = arith.constant 0 : index
      %c0_106 = arith.constant 0 : index
      %277 = vector.load %arg7[%c0_105, %c0_106] : memref<16x128xf32, #tpu.memory_space<vmem>>, vector<16x128xf32>
      tpu.vector_store %arg7[%c0_105, %c0_106], %268 {strides = array<i32>} : memref<16x128xf32, #tpu.memory_space<vmem>>, vector<16x128xf32>,
    } else {
    }
    return
  }
  func.func @transform_0(%arg0: i32, %arg1: i32) -> (i32, i32, i32) {
    %c0_i32 = arith.constant 0 : i32
    %c0_i32_0 = arith.constant 0 : i32
    return %arg1, %arg0, %c0_i32 : i32, i32, i32
  }
  func.func @transform_1(%arg0: i32, %arg1: i32) -> (i32, i32) {
    %c0_i32 = arith.constant 0 : i32
    %c0_i32_0 = arith.constant 0 : i32
    %c0_i32_1 = arith.constant 0 : i32
    return %c0_i32, %c0_i32_0 : i32, i32
  }
  func.func @transform_2(%arg0: i32, %arg1: i32) -> (i32, i32) {
    %c0_i32 = arith.constant 0 : i32
    %c0_i32_0 = arith.constant 0 : i32
    %c0_i32_1 = arith.constant 0 : i32
    return %c0_i32, %c0_i32_0 : i32, i32
  }
  func.func @transform_3(%arg0: i32, %arg1: i32) -> (i32, i32) {
    %c0_i32 = arith.constant 0 : i32
    %c0_i32_0 = arith.constant 0 : i32
    %c0_i32_1 = arith.constant 0 : i32
    return %c0_i32, %c0_i32_0 : i32, i32
  }
  func.func @transform_4(%arg0: i32, %arg1: i32) -> (i32, i32) {
    %c0_i32 = arith.constant 0 : i32
    %c0_i32_0 = arith.constant 0 : i32
    return %arg0, %c0_i32 : i32, i32
  }
  func.func @transform_5(%arg0: i32, %arg1: i32) -> (i32, i32) {
    %c0_i32 = arith.constant 0 : i32
    %c0_i32_0 = arith.constant 0 : i32
    return %arg0, %c0_i32 : i32, i32
  }
}

</mosaic_0001>

<llo_original>
// kernel: lstm_encoder_forward.3
$region0: #{lstm_encoder_forward.3}
  #allocation0 [shape = 'u32[]', space=smem, size = 0x4, offset = 0x4, fixed_abs, tag = 'smem constant byte address 0x4 - core index']
  #allocation1 [shape = 'u32[144,128]{1,0:T(1,128)}', space=vmem, size = 0x12000, scoped, tag = 'internal scratch']
  #allocation2 [shape = 'f32[8,16,512]{2,1,0:T(8,128)}', space=vmem, size = 0x40000, scoped, tag = 'scratch operand']
  #allocation3 [shape = 'f32[16,128]{1,0:T(8,128)}', space=vmem, size = 0x2000, scoped, tag = 'scratch operand']
  #allocation4 [shape = 'f32[16,128]{1,0:T(8,128)}', space=vmem, size = 0x2000, scoped, tag = 'scratch operand']
  %s0 = inlined_call_operand.vmem [shape: bf16[8,16,128], index: 0, kind: input, shape index: {}]
  %s1 = inlined_call_operand.vmem [shape: bf16[128,512], index: 1, kind: input, shape index: {}]
  %s2 = inlined_call_operand.vmem [shape: bf16[128,512], index: 2, kind: input, shape index: {}]
  %s3 = inlined_call_operand.vmem [shape: f32[1,512], index: 3, kind: input, shape index: {}]
  %s4 = inlined_call_operand.vmem [shape: f32[16,128], index: 4, kind: output, shape index: {0}]
  %s5 = inlined_call_operand.vmem [shape: f32[16,128], index: 5, kind: output, shape index: {1}]
  %6 = xla_tuple %s4, %s5
  %s7 = sld [smem:[#allocation0]]
  $region42: #{lstm_encoder_forward.3} parent=0
    _
  %s9 = ssub.s32 1, %s7
  %s10 = scalar_select 0, %s9, %s7
  // Predicated region
  $region2: #{lstm_encoder_forward.3} parent=0 // pred_check
    _
  $region3: #{lstm_encoder_forward.3} parent=0 // pred_check_branch
    %12 = sbr.rel (0) target = $region5
  $region4: #{lstm_encoder_forward.3} parent=0 // pred_region
    _
  $region5: #{lstm_encoder_forward.3} parent=0 // pred_fallthru
    _
  // Predicated region
  $region6: #{lstm_encoder_forward.3} parent=0 // pred_check
    _
  $region7: #{lstm_encoder_forward.3} parent=0 // pred_check_branch
    %14 = sbr.rel (0) target = $region9
  $region8: #{lstm_encoder_forward.3} parent=0 // pred_region
    _
  $region9: #{lstm_encoder_forward.3} parent=0 // pred_fallthru
    _
  // Predicated region
  $region10: #{lstm_encoder_forward.3} parent=0 // pred_check
    _
  $region11: #{lstm_encoder_forward.3} parent=0 // pred_check_branch
    %16 = sbr.rel (0) target = $region13
  $region12: #{lstm_encoder_forward.3} parent=0 // pred_region
    _
  $region13: #{lstm_encoder_forward.3} parent=0 // pred_fallthru
    _
  // Predicated region
  $region14: #{lstm_encoder_forward.3} parent=0 // pred_check
    _
  $region15: #{lstm_encoder_forward.3} parent=0 // pred_check_branch
    %18 = sbr.rel (0) target = $region17
  $region16: #{lstm_encoder_forward.3} parent=0 // pred_region
    _
  $region17: #{lstm_encoder_forward.3} parent=0 // pred_fallthru
    _
  %p20 = scmp.eq.s32.totalorder 0, 0
  // Predicated region
  $region18: #{lstm_encoder_forward.3} parent=0 // pred_check
    %p21 = pneg %p20
  $region19: #{lstm_encoder_forward.3} parent=0 // pred_check_branch
    %23 = sbr.rel (%p21) target = $region21
  $region20: #{lstm_encoder_forward.3} parent=0 // pred_region
    %24 = vst [vmem:[#allocation3] sm:$0xff] 0.0
    %25 = vst [vmem:[#allocation3 + $0x8] sm:$0xff] 0.0
    %26 = vst [vmem:[#allocation4] sm:$0xff] 0.0
    %27 = vst [vmem:[#allocation4 + $0x8] sm:$0xff] 0.0
  $region21: #{lstm_encoder_forward.3} parent=0 // pred_fallthru
    _
  %v28 = vld [vmem:[%s0] sm:$0xf]
  %v29 = vld [vmem:[%s0 + $0x4] sm:$0xf]
  %v30 = vld [vmem:[%s0 + $0x8] sm:$0xf]
  %v31 = vld [vmem:[%s0 + $0xc] sm:$0xf]
  %v32 = vld [vmem:[%s0 + $0x10] sm:$0xf]
  %v33 = vld [vmem:[%s0 + $0x14] sm:$0xf]
  %v34 = vld [vmem:[%s0 + $0x18] sm:$0xf]
  %v35 = vld [vmem:[%s0 + $0x1c] sm:$0xf]
  %v36 = vld [vmem:[%s0 + $0x20] sm:$0xf]
  %v37 = vld [vmem:[%s0 + $0x24] sm:$0xf]
  %v38 = vld [vmem:[%s0 + $0x28] sm:$0xf]
  %v39 = vld [vmem:[%s0 + $0x2c] sm:$0xf]
  %v40 = vld [vmem:[%s0 + $0x30] sm:$0xf]
  %v41 = vld [vmem:[%s0 + $0x34] sm:$0xf]
  %v42 = vld [vmem:[%s0 + $0x38] sm:$0xf]
  %v43 = vld [vmem:[%s0 + $0x3c] sm:$0xf]
  %v44 = vld [vmem:[%s1] sm:$0xff]
  %v45 = vld [vmem:[%s1 + $0x8] sm:$0xff]
  %v46 = vld [vmem:[%s1 + $0x10] sm:$0xff]
  %v47 = vld [vmem:[%s1 + $0x18] sm:$0xff]
  %v48 = vld [vmem:[%s1 + $0x20] sm:$0xff]
  %v49 = vld [vmem:[%s1 + $0x28] sm:$0xff]
  %v50 = vld [vmem:[%s1 + $0x30] sm:$0xff]
  %v51 = vld [vmem:[%s1 + $0x38] sm:$0xff]
  %v52 = vld [vmem:[%s1 + $0x40] sm:$0xff]
  %v53 = vld [vmem:[%s1 + $0x48] sm:$0xff]
  %v54 = vld [vmem:[%s1 + $0x50] sm:$0xff]
  %v55 = vld [vmem:[%s1 + $0x58] sm:$0xff]
  %v56 = vld [vmem:[%s1 + $0x60] sm:$0xff]
  %v57 = vld [vmem:[%s1 + $0x68] sm:$0xff]
  %v58 = vld [vmem:[%s1 + $0x70] sm:$0xff]
  %v59 = vld [vmem:[%s1 + $0x78] sm:$0xff]
  %v60 = vld [vmem:[%s1 + $0x80] sm:$0xff]
  %v61 = vld [vmem:[%s1 + $0x88] sm:$0xff]
  %v62 = vld [vmem:[%s1 + $0x90] sm:$0xff]
  %v63 = vld [vmem:[%s1 + $0x98] sm:$0xff]
  %v64 = vld [vmem:[%s1 + $0xa0] sm:$0xff]
  %v65 = vld [vmem:[%s1 + $0xa8] sm:$0xff]
  %v66 = vld [vmem:[%s1 + $0xb0] sm:$0xff]
  %v67 = vld [vmem:[%s1 + $0xb8] sm:$0xff]
  %v68 = vld [vmem:[%s1 + $0xc0] sm:$0xff]
  %v69 = vld [vmem:[%s1 + $0xc8] sm:$0xff]
  %v70 = vld [vmem:[%s1 + $0xd0] sm:$0xff]
  %v71 = vld [vmem:[%s1 + $0xd8] sm:$0xff]
  %v72 = vld [vmem:[%s1 + $0xe0] sm:$0xff]
  %v73 = vld [vmem:[%s1 + $0xe8] sm:$0xff]
  %v74 = vld [vmem:[%s1 + $0xf0] sm:$0xff]
  %v75 = vld [vmem:[%s1 + $0xf8] sm:$0xff]
  %v76 = vld [vmem:[%s3] sm:$0xf]
  %v78 = vlaneseq
  %v79 = vshrl.u32 %v78, 7
  %v80 = vsub.s32 0, %v79
  %v81 = vrot.slane %v76, %v80
  %v82 = vlaneseq
  %v83 = vshrl.u32 %v82, 7
  %v84 = vsub.s32 1, %v83
  %v85 = vrot.slane %v76, %v84
  %v86 = vlaneseq
  %v87 = vshrl.u32 %v86, 7
  %v88 = vsub.s32 2, %v87
  %v89 = vrot.slane %v76, %v88
  %v90 = vlaneseq
  %v91 = vshrl.u32 %v90, 7
  %v92 = vsub.s32 3, %v91
  %v93 = vrot.slane %v76, %v92
  %v114 = vunpack.c.l.b16 %v28
  %v115 = vunpack.c.l.b16 %v29
  %v116 = vunpack.c.l.b16 %v30
  %v117 = vunpack.c.l.b16 %v31
  %v118 = vunpack.c.l.b16 %v32
  %v119 = vunpack.c.l.b16 %v33
  %v120 = vunpack.c.l.b16 %v34
  %v121 = vunpack.c.l.b16 %v35
  %v122 = vunpack.c.l.b16 %v36
  %v123 = vunpack.c.l.b16 %v37
  %v124 = vunpack.c.l.b16 %v38
  %v125 = vunpack.c.l.b16 %v39
  %v126 = vunpack.c.l.b16 %v40
  %v127 = vunpack.c.l.b16 %v41
  %v128 = vunpack.c.l.b16 %v42
  %v129 = vunpack.c.l.b16 %v43
  %v130 = vpack.c.b16 %v115, %v114
  %v131 = vpack.c.b16 %v117, %v116
  %v132 = vpack.c.b16 %v119, %v118
  %v133 = vpack.c.b16 %v121, %v120
  %v134 = vpack.c.b16 %v123, %v122
  %v135 = vpack.c.b16 %v125, %v124
  %v136 = vpack.c.b16 %v127, %v126
  %v137 = vpack.c.b16 %v129, %v128
  %v178 = vunpack.c.l.b16 %v44
  %v179 = vunpack.c.h.b16 %v44
  %v180 = vunpack.c.l.b16 %v45
  %v181 = vunpack.c.h.b16 %v45
  %v182 = vunpack.c.l.b16 %v46
  %v183 = vunpack.c.h.b16 %v46
  %v184 = vunpack.c.l.b16 %v47
  %v185 = vunpack.c.h.b16 %v47
  %v186 = vunpack.c.l.b16 %v48
  %v187 = vunpack.c.h.b16 %v48
  %v188 = vunpack.c.l.b16 %v49
  %v189 = vunpack.c.h.b16 %v49
  %v190 = vunpack.c.l.b16 %v50
  %v191 = vunpack.c.h.b16 %v50
  %v192 = vunpack.c.l.b16 %v51
  %v193 = vunpack.c.h.b16 %v51
  %v194 = vunpack.c.l.b16 %v52
  %v195 = vunpack.c.h.b16 %v52
  %v196 = vunpack.c.l.b16 %v53
  %v197 = vunpack.c.h.b16 %v53
  %v198 = vunpack.c.l.b16 %v54
  %v199 = vunpack.c.h.b16 %v54
  %v200 = vunpack.c.l.b16 %v55
  %v201 = vunpack.c.h.b16 %v55
  %v202 = vunpack.c.l.b16 %v56
  %v203 = vunpack.c.h.b16 %v56
  %v204 = vunpack.c.l.b16 %v57
  %v205 = vunpack.c.h.b16 %v57
  %v206 = vunpack.c.l.b16 %v58
  %v207 = vunpack.c.h.b16 %v58
  %v208 = vunpack.c.l.b16 %v59
  %v209 = vunpack.c.h.b16 %v59
  %v210 = vunpack.c.l.b16 %v60
  %v211 = vunpack.c.h.b16 %v60
  %v212 = vunpack.c.l.b16 %v61
  %v213 = vunpack.c.h.b16 %v61
  %v214 = vunpack.c.l.b16 %v62
  %v215 = vunpack.c.h.b16 %v62
  %v216 = vunpack.c.l.b16 %v63
  %v217 = vunpack.c.h.b16 %v63
  %v218 = vunpack.c.l.b16 %v64
  %v219 = vunpack.c.h.b16 %v64
  %v220 = vunpack.c.l.b16 %v65
  %v221 = vunpack.c.h.b16 %v65
  %v222 = vunpack.c.l.b16 %v66
  %v223 = vunpack.c.h.b16 %v66
  %v224 = vunpack.c.l.b16 %v67
  %v225 = vunpack.c.h.b16 %v67
  %v226 = vunpack.c.l.b16 %v68
  %v227 = vunpack.c.h.b16 %v68
  %v228 = vunpack.c.l.b16 %v69
  %v229 = vunpack.c.h.b16 %v69
  %v230 = vunpack.c.l.b16 %v70
  %v231 = vunpack.c.h.b16 %v70
  %v232 = vunpack.c.l.b16 %v71
  %v233 = vunpack.c.h.b16 %v71
  %v234 = vunpack.c.l.b16 %v72
  %v235 = vunpack.c.h.b16 %v72
  %v236 = vunpack.c.l.b16 %v73
  %v237 = vunpack.c.h.b16 %v73
  %v238 = vunpack.c.l.b16 %v74
  %v239 = vunpack.c.h.b16 %v74
  %v240 = vunpack.c.l.b16 %v75
  %v241 = vunpack.c.h.b16 %v75
  %v242 = vpack.c.b16 %v182, %v178
  %v243 = vpack.c.b16 %v183, %v179
  %v244 = vpack.c.b16 %v184, %v180
  %v245 = vpack.c.b16 %v185, %v181
  %v246 = vpack.c.b16 %v190, %v186
  %v247 = vpack.c.b16 %v191, %v187
  %v248 = vpack.c.b16 %v192, %v188
  %v249 = vpack.c.b16 %v193, %v189
  %v250 = vpack.c.b16 %v198, %v194
  %v251 = vpack.c.b16 %v199, %v195
  %v252 = vpack.c.b16 %v200, %v196
  %v253 = vpack.c.b16 %v201, %v197
  %v254 = vpack.c.b16 %v206, %v202
  %v255 = vpack.c.b16 %v207, %v203
  %v256 = vpack.c.b16 %v208, %v204
  %v257 = vpack.c.b16 %v209, %v205
  %v258 = vpack.c.b16 %v214, %v210
  %v259 = vpack.c.b16 %v215, %v211
  %v260 = vpack.c.b16 %v216, %v212
  %v261 = vpack.c.b16 %v217, %v213
  %v262 = vpack.c.b16 %v222, %v218
  %v263 = vpack.c.b16 %v223, %v219
  %v264 = vpack.c.b16 %v224, %v220
  %v265 = vpack.c.b16 %v225, %v221
  %v266 = vpack.c.b16 %v230, %v226
  %v267 = vpack.c.b16 %v231, %v227
  %v268 = vpack.c.b16 %v232, %v228
  %v269 = vpack.c.b16 %v233, %v229
  %v270 = vpack.c.b16 %v238, %v234
  %v271 = vpack.c.b16 %v239, %v235
  %v272 = vpack.c.b16 %v240, %v236
  %v273 = vpack.c.b16 %v241, %v237
  %306 = vmatprep.subr.bf16.mxu0 %v243
  %307 = vmatpush1.bf16.msra.mxu0 %v242
  %308 = vmatprep.subr.bf16.mxu0 %v247
  %309 = vmatpush1.bf16.msra.mxu0 %v246
  %310 = vmatprep.subr.bf16.mxu0 %v251
  %311 = vmatpush1.bf16.msra.mxu0 %v250
  %312 = vmatprep.subr.bf16.mxu0 %v255
  %313 = vmatpush1.bf16.msra.mxu0 %v254
  %314 = vmatprep.subr.bf16.mxu0 %v259
  %315 = vmatpush1.bf16.msra.mxu0 %v258
  %316 = vmatprep.subr.bf16.mxu0 %v263
  %317 = vmatpush1.bf16.msra.mxu0 %v262
  %318 = vmatprep.subr.bf16.mxu0 %v267
  %319 = vmatpush1.bf16.msra.mxu0 %v266
  %320 = vmatprep.subr.bf16.mxu0 %v271
  %321 = vmatpush1.bf16.msra.mxu0 %v270
  %322 = vmatprep.subr.bf16.mxu0 0
  %323 = vmatpush1.bf16.msra.mxu0 0
  %324 = vmatprep.subr.bf16.mxu0 0
  %325 = vmatpush1.bf16.msra.mxu0 0
  %326 = vmatprep.subr.bf16.mxu0 0
  %327 = vmatpush1.bf16.msra.mxu0 0
  %328 = vmatprep.subr.bf16.mxu0 0
  %329 = vmatpush1.bf16.msra.mxu0 0
  %330 = vmatprep.subr.bf16.mxu0 0
  %331 = vmatpush1.bf16.msra.mxu0 0
  %332 = vmatprep.subr.bf16.mxu0 0
  %333 = vmatpush1.bf16.msra.mxu0 0
  %334 = vmatprep.subr.bf16.mxu0 0
  %335 = vmatpush1.bf16.msra.mxu0 0
  %336 = vmatprep.subr.bf16.mxu0 0
  %337 = vmatpush1.bf16.msra.mxu0 0
  %338 = vmatprep.mubr.bf16.mxu0 0
  %339 = vmatmul.mubr.bf16.gmra.mrb[0].mxu0 %v130
  %v340 = vpop.f32.mrb[0].mxu0
  %v341 = vadd.f32 %v81, %v340
  %v342 = vpop.f32.mrb[0].mxu0
  %v343 = vadd.f32 %v85, %v342
  %v344 = vpop.f32.mrb[0].mxu0
  %v345 = vadd.f32 %v81, %v344
  %v346 = vpop.f32.mrb[0].mxu0
  %v347 = vadd.f32 %v85, %v346
  %348 = vmatprep.mubr.bf16.mxu0 0
  %349 = vmatmul.mubr.bf16.gmra.mrb[0].mxu0 %v131
  %v350 = vpop.f32.mrb[0].mxu0
  %v351 = vadd.f32 %v81, %v350
  %v352 = vpop.f32.mrb[0].mxu0
  %v353 = vadd.f32 %v85, %v352
  %v354 = vpop.f32.mrb[0].mxu0
  %v355 = vadd.f32 %v81, %v354
  %v356 = vpop.f32.mrb[0].mxu0
  %v357 = vadd.f32 %v85, %v356
  %358 = vmatprep.mubr.bf16.mxu0 0
  %359 = vmatmul.mubr.bf16.gmra.mrb[0].mxu0 %v132
  %v360 = vpop.f32.mrb[0].mxu0
  %v361 = vadd.f32 %v81, %v360
  %v362 = vpop.f32.mrb[0].mxu0
  %v363 = vadd.f32 %v85, %v362
  %v364 = vpop.f32.mrb[0].mxu0
  %v365 = vadd.f32 %v81, %v364
  %v366 = vpop.f32.mrb[0].mxu0
  %v367 = vadd.f32 %v85, %v366
  %368 = vmatprep.mubr.bf16.mxu0 0
  %369 = vmatmul.mubr.bf16.gmra.mrb[0].mxu0 %v133
  %v370 = vpop.f32.mrb[0].mxu0
  %v371 = vadd.f32 %v81, %v370
  %v372 = vpop.f32.mrb[0].mxu0
  %v373 = vadd.f32 %v85, %v372
  %v374 = vpop.f32.mrb[0].mxu0
  %v375 = vadd.f32 %v81, %v374
  %v376 = vpop.f32.mrb[0].mxu0
  %v377 = vadd.f32 %v85, %v376
  %378 = vmatprep.mubr.bf16.mxu0 0
  %379 = vmatmul.mubr.bf16.gmra.mrb[0].mxu0 %v134
  %v380 = vpop.f32.mrb[0].mxu0
  %v381 = vadd.f32 %v81, %v380
  %v382 = vpop.f32.mrb[0].mxu0
  %v383 = vadd.f32 %v85, %v382
  %v384 = vpop.f32.mrb[0].mxu0
  %v385 = vadd.f32 %v81, %v384
  %v386 = vpop.f32.mrb[0].mxu0
  %v387 = vadd.f32 %v85, %v386
  %388 = vmatprep.mubr.bf16.mxu0 0
  %389 = vmatmul.mubr.bf16.gmra.mrb[0].mxu0 %v135
  %v390 = vpop.f32.mrb[0].mxu0
  %v391 = vadd.f32 %v81, %v390
  %v392 = vpop.f32.mrb[0].mxu0
  %v393 = vadd.f32 %v85, %v392
  %v394 = vpop.f32.mrb[0].mxu0
  %v395 = vadd.f32 %v81, %v394
  %v396 = vpop.f32.mrb[0].mxu0
  %v397 = vadd.f32 %v85, %v396
  %398 = vmatprep.mubr.bf16.mxu0 0
  %399 = vmatmul.mubr.bf16.gmra.mrb[0].mxu0 %v136
  %v400 = vpop.f32.mrb[0].mxu0
  %v401 = vadd.f32 %v81, %v400
  %v402 = vpop.f32.mrb[0].mxu0
  %v403 = vadd.f32 %v85, %v402
  %v404 = vpop.f32.mrb[0].mxu0
  %v405 = vadd.f32 %v81, %v404
  %v406 = vpop.f32.mrb[0].mxu0
  %v407 = vadd.f32 %v85, %v406
  %408 = vmatprep.mubr.bf16.mxu0 0
  %409 = vmatmul.mubr.bf16.gmra.mrb[0].mxu0 %v137
  %v410 = vpop.f32.mrb[0].mxu0
  %v411 = vadd.f32 %v81, %v410
  %v412 = vpop.f32.mrb[0].mxu0
  %v413 = vadd.f32 %v85, %v412
  %v414 = vpop.f32.mrb[0].mxu0
  %v415 = vadd.f32 %v81, %v414
  %v416 = vpop.f32.mrb[0].mxu0
  %v417 = vadd.f32 %v85, %v416
  %418 = vdwg.mxu0
  %419 = vmatprep.subr.bf16.mxu0 %v245
  %420 = vmatpush1.bf16.msra.mxu0 %v244
  %421 = vmatprep.subr.bf16.mxu0 %v249
  %422 = vmatpush1.bf16.msra.mxu0 %v248
  %423 = vmatprep.subr.bf16.mxu0 %v253
  %424 = vmatpush1.bf16.msra.mxu0 %v252
  %425 = vmatprep.subr.bf16.mxu0 %v257
  %426 = vmatpush1.bf16.msra.mxu0 %v256
  %427 = vmatprep.subr.bf16.mxu0 %v261
  %428 = vmatpush1.bf16.msra.mxu0 %v260
  %429 = vmatprep.subr.bf16.mxu0 %v265
  %430 = vmatpush1.bf16.msra.mxu0 %v264
  %431 = vmatprep.subr.bf16.mxu0 %v269
  %432 = vmatpush1.bf16.msra.mxu0 %v268
  %433 = vmatprep.subr.bf16.mxu0 %v273
  %434 = vmatpush1.bf16.msra.mxu0 %v272
  %435 = vmatprep.subr.bf16.mxu0 0
  %436 = vmatpush1.bf16.msra.mxu0 0
  %437 = vmatprep.subr.bf16.mxu0 0
  %438 = vmatpush1.bf16.msra.mxu0 0
  %439 = vmatprep.subr.bf16.mxu0 0
  %440 = vmatpush1.bf16.msra.mxu0 0
  %441 = vmatprep.subr.bf16.mxu0 0
  %442 = vmatpush1.bf16.msra.mxu0 0
  %443 = vmatprep.subr.bf16.mxu0 0
  %444 = vmatpush1.bf16.msra.mxu0 0
  %445 = vmatprep.subr.bf16.mxu0 0
  %446 = vmatpush1.bf16.msra.mxu0 0
  %447 = vmatprep.subr.bf16.mxu0 0
  %448 = vmatpush1.bf16.msra.mxu0 0
  %449 = vmatprep.subr.bf16.mxu0 0
  %450 = vmatpush1.bf16.msra.mxu0 0
  %451 = vmatprep.mubr.bf16.mxu0 0
  %452 = vmatmul.mubr.bf16.gmra.mrb[0].mxu0 %v130
  %v453 = vpop.f32.mrb[0].mxu0
  %v454 = vadd.f32 %v89, %v453
  %v455 = vpop.f32.mrb[0].mxu0
  %v456 = vadd.f32 %v93, %v455
  %v457 = vpop.f32.mrb[0].mxu0
  %v458 = vadd.f32 %v89, %v457
  %v459 = vpop.f32.mrb[0].mxu0
  %v460 = vadd.f32 %v93, %v459
  %461 = vmatprep.mubr.bf16.mxu0 0
  %462 = vmatmul.mubr.bf16.gmra.mrb[0].mxu0 %v131
  %v463 = vpop.f32.mrb[0].mxu0
  %v464 = vadd.f32 %v89, %v463
  %v465 = vpop.f32.mrb[0].mxu0
  %v466 = vadd.f32 %v93, %v465
  %v467 = vpop.f32.mrb[0].mxu0
  %v468 = vadd.f32 %v89, %v467
  %v469 = vpop.f32.mrb[0].mxu0
  %v470 = vadd.f32 %v93, %v469
  %471 = vmatprep.mubr.bf16.mxu0 0
  %472 = vmatmul.mubr.bf16.gmra.mrb[0].mxu0 %v132
  %v473 = vpop.f32.mrb[0].mxu0
  %v474 = vadd.f32 %v89, %v473
  %v475 = vpop.f32.mrb[0].mxu0
  %v476 = vadd.f32 %v93, %v475
  %v477 = vpop.f32.mrb[0].mxu0
  %v478 = vadd.f32 %v89, %v477
  %v479 = vpop.f32.mrb[0].mxu0
  %v480 = vadd.f32 %v93, %v479
  %481 = vmatprep.mubr.bf16.mxu0 0
  %482 = vmatmul.mubr.bf16.gmra.mrb[0].mxu0 %v133
  %v483 = vpop.f32.mrb[0].mxu0
  %v484 = vadd.f32 %v89, %v483
  %v485 = vpop.f32.mrb[0].mxu0
  %v486 = vadd.f32 %v93, %v485
  %v487 = vpop.f32.mrb[0].mxu0
  %v488 = vadd.f32 %v89, %v487
  %v489 = vpop.f32.mrb[0].mxu0
  %v490 = vadd.f32 %v93, %v489
  %491 = vmatprep.mubr.bf16.mxu0 0
  %492 = vmatmul.mubr.bf16.gmra.mrb[0].mxu0 %v134
  %v493 = vpop.f32.mrb[0].mxu0
  %v494 = vadd.f32 %v89, %v493
  %v495 = vpop.f32.mrb[0].mxu0
  %v496 = vadd.f32 %v93, %v495
  %v497 = vpop.f32.mrb[0].mxu0
  %v498 = vadd.f32 %v89, %v497
  %v499 = vpop.f32.mrb[0].mxu0
  %v500 = vadd.f32 %v93, %v499
  %501 = vmatprep.mubr.bf16.mxu0 0
  %502 = vmatmul.mubr.bf16.gmra.mrb[0].mxu0 %v135
  %v503 = vpop.f32.mrb[0].mxu0
  %v504 = vadd.f32 %v89, %v503
  %v505 = vpop.f32.mrb[0].mxu0
  %v506 = vadd.f32 %v93, %v505
  %v507 = vpop.f32.mrb[0].mxu0
  %v508 = vadd.f32 %v89, %v507
  %v509 = vpop.f32.mrb[0].mxu0
  %v510 = vadd.f32 %v93, %v509
  %511 = vmatprep.mubr.bf16.mxu0 0
  %512 = vmatmul.mubr.bf16.gmra.mrb[0].mxu0 %v136
  %v513 = vpop.f32.mrb[0].mxu0
  %v514 = vadd.f32 %v89, %v513
  %v515 = vpop.f32.mrb[0].mxu0
  %v516 = vadd.f32 %v93, %v515
  %v517 = vpop.f32.mrb[0].mxu0
  %v518 = vadd.f32 %v89, %v517
  %v519 = vpop.f32.mrb[0].mxu0
  %v520 = vadd.f32 %v93, %v519
  %521 = vmatprep.mubr.bf16.mxu0 0
  %522 = vmatmul.mubr.bf16.gmra.mrb[0].mxu0 %v137
  %v523 = vpop.f32.mrb[0].mxu0
  %v524 = vadd.f32 %v89, %v523
  %v525 = vpop.f32.mrb[0].mxu0
  %v526 = vadd.f32 %v93, %v525
  %v527 = vpop.f32.mrb[0].mxu0
  %v528 = vadd.f32 %v89, %v527
  %v529 = vpop.f32.mrb[0].mxu0
  %v530 = vadd.f32 %v93, %v529
  %531 = vdwg.mxu0
  %532 = vst [vmem:[#allocation2] sm:$0xff] %v341
  %533 = vst [vmem:[#allocation2 + $0x8] sm:$0xff] %v343
  %534 = vst [vmem:[#allocation2 + $0x10] sm:$0xff] %v454
  %535 = vst [vmem:[#allocation2 + $0x18] sm:$0xff] %v456
  %536 = vst [vmem:[#allocation2 + $0x20] sm:$0xff] %v345
  %537 = vst [vmem:[#allocation2 + $0x28] sm:$0xff] %v347
  %538 = vst [vmem:[#allocation2 + $0x30] sm:$0xff] %v458
  %539 = vst [vmem:[#allocation2 + $0x38] sm:$0xff] %v460
  %540 = vst [vmem:[#allocation2 + $0x40] sm:$0xff] %v351
  %541 = vst [vmem:[#allocation2 + $0x48] sm:$0xff] %v353
  %542 = vst [vmem:[#allocation2 + $0x50] sm:$0xff] %v464
  %543 = vst [vmem:[#allocation2 + $0x58] sm:$0xff] %v466
  %544 = vst [vmem:[#allocation2 + $0x60] sm:$0xff] %v355
  %545 = vst [vmem:[#allocation2 + $0x68] sm:$0xff] %v357
  %546 = vst [vmem:[#allocation2 + $0x70] sm:$0xff] %v468
  %547 = vst [vmem:[#allocation2 + $0x78] sm:$0xff] %v470
  %548 = vst [vmem:[#allocation2 + $0x80] sm:$0xff] %v361
  %549 = vst [vmem:[#allocation2 + $0x88] sm:$0xff] %v363
  %550 = vst [vmem:[#allocation2 + $0x90] sm:$0xff] %v474
  %551 = vst [vmem:[#allocation2 + $0x98] sm:$0xff] %v476
  %552 = vst [vmem:[#allocation2 + $0xa0] sm:$0xff] %v365
  %553 = vst [vmem:[#allocation2 + $0xa8] sm:$0xff] %v367
  %554 = vst [vmem:[#allocation2 + $0xb0] sm:$0xff] %v478
  %555 = vst [vmem:[#allocation2 + $0xb8] sm:$0xff] %v480
  %556 = vst [vmem:[#allocation2 + $0xc0] sm:$0xff] %v371
  %557 = vst [vmem:[#allocation2 + $0xc8] sm:$0xff] %v373
  %558 = vst [vmem:[#allocation2 + $0xd0] sm:$0xff] %v484
  %559 = vst [vmem:[#allocation2 + $0xd8] sm:$0xff] %v486
  %560 = vst [vmem:[#allocation2 + $0xe0] sm:$0xff] %v375
  %561 = vst [vmem:[#allocation2 + $0xe8] sm:$0xff] %v377
  %562 = vst [vmem:[#allocation2 + $0xf0] sm:$0xff] %v488
  %563 = vst [vmem:[#allocation2 + $0xf8] sm:$0xff] %v490
  %564 = vst [vmem:[#allocation2 + $0x100] sm:$0xff] %v381
  %565 = vst [vmem:[#allocation2 + $0x108] sm:$0xff] %v383
  %566 = vst [vmem:[#allocation2 + $0x110] sm:$0xff] %v494
  %567 = vst [vmem:[#allocation2 + $0x118] sm:$0xff] %v496
  %568 = vst [vmem:[#allocation2 + $0x120] sm:$0xff] %v385
  %569 = vst [vmem:[#allocation2 + $0x128] sm:$0xff] %v387
  %570 = vst [vmem:[#allocation2 + $0x130] sm:$0xff] %v498
  %571 = vst [vmem:[#allocation2 + $0x138] sm:$0xff] %v500
  %572 = vst [vmem:[#allocation2 + $0x140] sm:$0xff] %v391
  %573 = vst [vmem:[#allocation2 + $0x148] sm:$0xff] %v393
  %574 = vst [vmem:[#allocation2 + $0x150] sm:$0xff] %v504
  %575 = vst [vmem:[#allocation2 + $0x158] sm:$0xff] %v506
  %576 = vst [vmem:[#allocation2 + $0x160] sm:$0xff] %v395
  %577 = vst [vmem:[#allocation2 + $0x168] sm:$0xff] %v397
  %578 = vst [vmem:[#allocation2 + $0x170] sm:$0xff] %v508
  %579 = vst [vmem:[#allocation2 + $0x178] sm:$0xff] %v510
  %580 = vst [vmem:[#allocation2 + $0x180] sm:$0xff] %v401
  %581 = vst [vmem:[#allocation2 + $0x188] sm:$0xff] %v403
  %582 = vst [vmem:[#allocation2 + $0x190] sm:$0xff] %v514
  %583 = vst [vmem:[#allocation2 + $0x198] sm:$0xff] %v516
  %584 = vst [vmem:[#allocation2 + $0x1a0] sm:$0xff] %v405
  %585 = vst [vmem:[#allocation2 + $0x1a8] sm:$0xff] %v407
  %586 = vst [vmem:[#allocation2 + $0x1b0] sm:$0xff] %v518
  %587 = vst [vmem:[#allocation2 + $0x1b8] sm:$0xff] %v520
  %588 = vst [vmem:[#allocation2 + $0x1c0] sm:$0xff] %v411
  %589 = vst [vmem:[#allocation2 + $0x1c8] sm:$0xff] %v413
  %590 = vst [vmem:[#allocation2 + $0x1d0] sm:$0xff] %v524
  %591 = vst [vmem:[#allocation2 + $0x1d8] sm:$0xff] %v526
  %592 = vst [vmem:[#allocation2 + $0x1e0] sm:$0xff] %v415
  %593 = vst [vmem:[#allocation2 + $0x1e8] sm:$0xff] %v417
  %594 = vst [vmem:[#allocation2 + $0x1f0] sm:$0xff] %v528
  %595 = vst [vmem:[#allocation2 + $0x1f8] sm:$0xff] %v530
  %v596 = vld [vmem:[%s2] sm:$0xff]
  %v597 = vld [vmem:[%s2 + $0x8] sm:$0xff]
  %v598 = vld [vmem:[%s2 + $0x10] sm:$0xff]
  %v599 = vld [vmem:[%s2 + $0x18] sm:$0xff]
  %v600 = vld [vmem:[%s2 + $0x20] sm:$0xff]
  %v601 = vld [vmem:[%s2 + $0x28] sm:$0xff]
  %v602 = vld [vmem:[%s2 + $0x30] sm:$0xff]
  %v603 = vld [vmem:[%s2 + $0x38] sm:$0xff]
  %v604 = vld [vmem:[%s2 + $0x40] sm:$0xff]
  %v605 = vld [vmem:[%s2 + $0x48] sm:$0xff]
  %v606 = vld [vmem:[%s2 + $0x50] sm:$0xff]
  %v607 = vld [vmem:[%s2 + $0x58] sm:$0xff]
  %v608 = vld [vmem:[%s2 + $0x60] sm:$0xff]
  %v609 = vld [vmem:[%s2 + $0x68] sm:$0xff]
  %v610 = vld [vmem:[%s2 + $0x70] sm:$0xff]
  %v611 = vld [vmem:[%s2 + $0x78] sm:$0xff]
  %v612 = vld [vmem:[%s2 + $0x80] sm:$0xff]
  %v613 = vld [vmem:[%s2 + $0x88] sm:$0xff]
  %v614 = vld [vmem:[%s2 + $0x90] sm:$0xff]
  %v615 = vld [vmem:[%s2 + $0x98] sm:$0xff]
  %v616 = vld [vmem:[%s2 + $0xa0] sm:$0xff]
  %v617 = vld [vmem:[%s2 + $0xa8] sm:$0xff]
  %v618 = vld [vmem:[%s2 + $0xb0] sm:$0xff]
  %v619 = vld [vmem:[%s2 + $0xb8] sm:$0xff]
  %v620 = vld [vmem:[%s2 + $0xc0] sm:$0xff]
  %v621 = vld [vmem:[%s2 + $0xc8] sm:$0xff]
  %v622 = vld [vmem:[%s2 + $0xd0] sm:$0xff]
  %v623 = vld [vmem:[%s2 + $0xd8] sm:$0xff]
  %v624 = vld [vmem:[%s2 + $0xe0] sm:$0xff]
  %v625 = vld [vmem:[%s2 + $0xe8] sm:$0xff]
  %v626 = vld [vmem:[%s2 + $0xf0] sm:$0xff]
  %v627 = vld [vmem:[%s2 + $0xf8] sm:$0xff]
  %v628 = vld [vmem:[#allocation3] sm:$0xff]
  %v629 = vld [vmem:[#allocation3 + $0x8] sm:$0xff]
  %v630 = vld [vmem:[#allocation4] sm:$0xff]
  %v631 = vld [vmem:[#allocation4 + $0x8] sm:$0xff]
  %v632 = vld [vmem:[#allocation2] sm:$0xff]
  %v633 = vld [vmem:[#allocation2 + $0x8] sm:$0xff]
  %v634 = vld [vmem:[#allocation2 + $0x10] sm:$0xff]
  %v635 = vld [vmem:[#allocation2 + $0x18] sm:$0xff]
  %v636 = vld [vmem:[#allocation2 + $0x20] sm:$0xff]
  %v637 = vld [vmem:[#allocation2 + $0x28] sm:$0xff]
  %v638 = vld [vmem:[#allocation2 + $0x30] sm:$0xff]
  %v639 = vld [vmem:[#allocation2 + $0x38] sm:$0xff]
  %v640 = vpack.c.bf16 %v629, %v628
  %v673 = vunpack.c.l.b16 %v596
  %v674 = vunpack.c.h.b16 %v596
  %v675 = vunpack.c.l.b16 %v597
  %v676 = vunpack.c.h.b16 %v597
  %v677 = vunpack.c.l.b16 %v598
  %v678 = vunpack.c.h.b16 %v598
  %v679 = vunpack.c.l.b16 %v599
  %v680 = vunpack.c.h.b16 %v599
  %v681 = vunpack.c.l.b16 %v600
  %v682 = vunpack.c.h.b16 %v600
  %v683 = vunpack.c.l.b16 %v601
  %v684 = vunpack.c.h.b16 %v601
  %v685 = vunpack.c.l.b16 %v602
  %v686 = vunpack.c.h.b16 %v602
  %v687 = vunpack.c.l.b16 %v603
  %v688 = vunpack.c.h.b16 %v603
  %v689 = vunpack.c.l.b16 %v604
  %v690 = vunpack.c.h.b16 %v604
  %v691 = vunpack.c.l.b16 %v605
  %v692 = vunpack.c.h.b16 %v605
  %v693 = vunpack.c.l.b16 %v606
  %v694 = vunpack.c.h.b16 %v606
  %v695 = vunpack.c.l.b16 %v607
  %v696 = vunpack.c.h.b16 %v607
  %v697 = vunpack.c.l.b16 %v608
  %v698 = vunpack.c.h.b16 %v608
  %v699 = vunpack.c.l.b16 %v609
  %v700 = vunpack.c.h.b16 %v609
  %v701 = vunpack.c.l.b16 %v610
  %v702 = vunpack.c.h.b16 %v610
  %v703 = vunpack.c.l.b16 %v611
  %v704 = vunpack.c.h.b16 %v611
  %v705 = vunpack.c.l.b16 %v612
  %v706 = vunpack.c.h.b16 %v612
  %v707 = vunpack.c.l.b16 %v613
  %v708 = vunpack.c.h.b16 %v613
  %v709 = vunpack.c.l.b16 %v614
  %v710 = vunpack.c.h.b16 %v614
  %v711 = vunpack.c.l.b16 %v615
  %v712 = vunpack.c.h.b16 %v615
  %v713 = vunpack.c.l.b16 %v616
  %v714 = vunpack.c.h.b16 %v616
  %v715 = vunpack.c.l.b16 %v617
  %v716 = vunpack.c.h.b16 %v617
  %v717 = vunpack.c.l.b16 %v618
  %v718 = vunpack.c.h.b16 %v618
  %v719 = vunpack.c.l.b16 %v619
  %v720 = vunpack.c.h.b16 %v619
  %v721 = vunpack.c.l.b16 %v620
  %v722 = vunpack.c.h.b16 %v620
  %v723 = vunpack.c.l.b16 %v621
  %v724 = vunpack.c.h.b16 %v621
  %v725 = vunpack.c.l.b16 %v622
  %v726 = vunpack.c.h.b16 %v622
  %v727 = vunpack.c.l.b16 %v623
  %v728 = vunpack.c.h.b16 %v623
  %v729 = vunpack.c.l.b16 %v624
  %v730 = vunpack.c.h.b16 %v624
  %v731 = vunpack.c.l.b16 %v625
  %v732 = vunpack.c.h.b16 %v625
  %v733 = vunpack.c.l.b16 %v626
  %v734 = vunpack.c.h.b16 %v626
  %v735 = vunpack.c.l.b16 %v627
  %v736 = vunpack.c.h.b16 %v627
  %v737 = vpack.c.b16 %v677, %v673
  %v738 = vpack.c.b16 %v678, %v674
  %v739 = vpack.c.b16 %v679, %v675
  %v740 = vpack.c.b16 %v680, %v676
  %v741 = vpack.c.b16 %v685, %v681
  %v742 = vpack.c.b16 %v686, %v682
  %v743 = vpack.c.b16 %v687, %v683
  %v744 = vpack.c.b16 %v688, %v684
  %v745 = vpack.c.b16 %v693, %v689
  %v746 = vpack.c.b16 %v694, %v690
  %v747 = vpack.c.b16 %v695, %v691
  %v748 = vpack.c.b16 %v696, %v692
  %v749 = vpack.c.b16 %v701, %v697
  %v750 = vpack.c.b16 %v702, %v698
  %v751 = vpack.c.b16 %v703, %v699
  %v752 = vpack.c.b16 %v704, %v700
  %v753 = vpack.c.b16 %v709, %v705
  %v754 = vpack.c.b16 %v710, %v706
  %v755 = vpack.c.b16 %v711, %v707
  %v756 = vpack.c.b16 %v712, %v708
  %v757 = vpack.c.b16 %v717, %v713
  %v758 = vpack.c.b16 %v718, %v714
  %v759 = vpack.c.b16 %v719, %v715
  %v760 = vpack.c.b16 %v720, %v716
  %v761 = vpack.c.b16 %v725, %v721
  %v762 = vpack.c.b16 %v726, %v722
  %v763 = vpack.c.b16 %v727, %v723
  %v764 = vpack.c.b16 %v728, %v724
  %v765 = vpack.c.b16 %v733, %v729
  %v766 = vpack.c.b16 %v734, %v730
  %v767 = vpack.c.b16 %v735, %v731
  %v768 = vpack.c.b16 %v736, %v732
  %801 = vmatprep.subr.bf16.mxu0 %v738
  %802 = vmatpush1.bf16.msra.mxu0 %v737
  %803 = vmatprep.subr.bf16.mxu0 %v742
  %804 = vmatpush1.bf16.msra.mxu0 %v741
  %805 = vmatprep.subr.bf16.mxu0 %v746
  %806 = vmatpush1.bf16.msra.mxu0 %v745
  %807 = vmatprep.subr.bf16.mxu0 %v750
  %808 = vmatpush1.bf16.msra.mxu0 %v749
  %809 = vmatprep.subr.bf16.mxu0 %v754
  %810 = vmatpush1.bf16.msra.mxu0 %v753
  %811 = vmatprep.subr.bf16.mxu0 %v758
  %812 = vmatpush1.bf16.msra.mxu0 %v757
  %813 = vmatprep.subr.bf16.mxu0 %v762
  %814 = vmatpush1.bf16.msra.mxu0 %v761
  %815 = vmatprep.subr.bf16.mxu0 %v766
  %816 = vmatpush1.bf16.msra.mxu0 %v765
  %817 = vmatprep.subr.bf16.mxu0 0
  %818 = vmatpush1.bf16.msra.mxu0 0
  %819 = vmatprep.subr.bf16.mxu0 0
  %820 = vmatpush1.bf16.msra.mxu0 0
  %821 = vmatprep.subr.bf16.mxu0 0
  %822 = vmatpush1.bf16.msra.mxu0 0
  %823 = vmatprep.subr.bf16.mxu0 0
  %824 = vmatpush1.bf16.msra.mxu0 0
  %825 = vmatprep.subr.bf16.mxu0 0
  %826 = vmatpush1.bf16.msra.mxu0 0
  %827 = vmatprep.subr.bf16.mxu0 0
  %828 = vmatpush1.bf16.msra.mxu0 0
  %829 = vmatprep.subr.bf16.mxu0 0
  %830 = vmatpush1.bf16.msra.mxu0 0
  %831 = vmatprep.subr.bf16.mxu0 0
  %832 = vmatpush1.bf16.msra.mxu0 0
  %833 = vmatprep.mubr.bf16.mxu0 0
  %834 = vmatmul.mubr.bf16.gmra.mrb[0].mxu0 %v640
  %v835 = vpop.f32.mrb[0].mxu0
  %v836 = vadd.f32 0.0, %v835
  %v837 = vpop.f32.mrb[0].mxu0
  %v838 = vadd.f32 0.0, %v837
  %v839 = vpop.f32.mrb[0].mxu0
  %v840 = vadd.f32 0.0, %v839
  %v841 = vpop.f32.mrb[0].mxu0
  %v842 = vadd.f32 0.0, %v841
  %843 = vdwg.mxu0
  %844 = vmatprep.subr.bf16.mxu0 %v740
  %845 = vmatpush1.bf16.msra.mxu0 %v739
  %846 = vmatprep.subr.bf16.mxu0 %v744
  %847 = vmatpush1.bf16.msra.mxu0 %v743
  %848 = vmatprep.subr.bf16.mxu0 %v748
  %849 = vmatpush1.bf16.msra.mxu0 %v747
  %850 = vmatprep.subr.bf16.mxu0 %v752
  %851 = vmatpush1.bf16.msra.mxu0 %v751
  %852 = vmatprep.subr.bf16.mxu0 %v756
  %853 = vmatpush1.bf16.msra.mxu0 %v755
  %854 = vmatprep.subr.bf16.mxu0 %v760
  %855 = vmatpush1.bf16.msra.mxu0 %v759
  %856 = vmatprep.subr.bf16.mxu0 %v764
  %857 = vmatpush1.bf16.msra.mxu0 %v763
  %858 = vmatprep.subr.bf16.mxu0 %v768
  %859 = vmatpush1.bf16.msra.mxu0 %v767
  %860 = vmatprep.subr.bf16.mxu0 0
  %861 = vmatpush1.bf16.msra.mxu0 0
  %862 = vmatprep.subr.bf16.mxu0 0
  %863 = vmatpush1.bf16.msra.mxu0 0
  %864 = vmatprep.subr.bf16.mxu0 0
  %865 = vmatpush1.bf16.msra.mxu0 0
  %866 = vmatprep.subr.bf16.mxu0 0
  %867 = vmatpush1.bf16.msra.mxu0 0
  %868 = vmatprep.subr.bf16.mxu0 0
  %869 = vmatpush1.bf16.msra.mxu0 0
  %870 = vmatprep.subr.bf16.mxu0 0
  %871 = vmatpush1.bf16.msra.mxu0 0
  %872 = vmatprep.subr.bf16.mxu0 0
  %873 = vmatpush1.bf16.msra.mxu0 0
  %874 = vmatprep.subr.bf16.mxu0 0
  %875 = vmatpush1.bf16.msra.mxu0 0
  %876 = vmatprep.mubr.bf16.mxu0 0
  %877 = vmatmul.mubr.bf16.gmra.mrb[0].mxu0 %v640
  %v878 = vpop.f32.mrb[0].mxu0
  %v879 = vadd.f32 0.0, %v878
  %v880 = vpop.f32.mrb[0].mxu0
  %v881 = vadd.f32 0.0, %v880
  %v882 = vpop.f32.mrb[0].mxu0
  %v883 = vadd.f32 0.0, %v882
  %v884 = vpop.f32.mrb[0].mxu0
  %v885 = vadd.f32 0.0, %v884
  %886 = vdwg.mxu0
  %v887 = vadd.f32 %v632, %v836
  %v888 = vadd.f32 %v633, %v838
  %v889 = vadd.f32 %v634, %v879
  %v890 = vadd.f32 %v635, %v881
  %v891 = vadd.f32 %v636, %v840
  %v892 = vadd.f32 %v637, %v842
  %v893 = vadd.f32 %v638, %v883
  %v894 = vadd.f32 %v639, %v885
  %v895 = vmul.f32 %v887, 0.5
  %v896 = vmul.f32 %v888, 0.5
  %v897 = vmul.f32 %v889, 0.5
  %v898 = vmul.f32 %v891, 0.5
  %v899 = vmul.f32 %v892, 0.5
  %v900 = vmul.f32 %v893, 0.5
  %v901 = vtanh.pop %v895
  %v902 = vtanh.pop %v896
  %v903 = vtanh.pop %v897
  %v904 = vtanh.pop %v898
  %v905 = vtanh.pop %v899
  %v906 = vtanh.pop %v900
  %v907 = vmul.f32 %v901, 0.5
  %v908 = vmul.f32 %v904, 0.5
  %v909 = vadd.f32 %v907, 0.5
  %v910 = vadd.f32 %v908, 0.5
  %v911 = vmul.f32 %v902, 0.5
  %v912 = vmul.f32 %v905, 0.5
  %v913 = vadd.f32 %v911, 0.5
  %v914 = vadd.f32 %v912, 0.5
  %v915 = vmul.f32 %v903, 0.5
  %v916 = vmul.f32 %v906, 0.5
  %v917 = vadd.f32 %v915, 0.5
  %v918 = vadd.f32 %v916, 0.5
  %v919 = vtanh.pop %v890
  %v920 = vtanh.pop %v894
  %v921 = vmul.f32 %v913, %v630
  %v922 = vmul.f32 %v914, %v631
  %v923 = vmul.f32 %v909, %v919
  %v924 = vmul.f32 %v910, %v920
  %v925 = vadd.f32 %v921, %v923
  %v926 = vadd.f32 %v922, %v924
  %v927 = vtanh.pop %v925
  %v928 = vtanh.pop %v926
  %v929 = vmul.f32 %v917, %v927
  %v930 = vmul.f32 %v918, %v928
  %s931 = scalar_lea.vmem [#allocation2], 64
  %v932 = vld [vmem:[%s931] sm:$0xff]
  %v933 = vld [vmem:[%s931 + $0x8] sm:$0xff]
  %v934 = vld [vmem:[%s931 + $0x10] sm:$0xff]
  %v935 = vld [vmem:[%s931 + $0x18] sm:$0xff]
  %v936 = vld [vmem:[%s931 + $0x20] sm:$0xff]
  %v937 = vld [vmem:[%s931 + $0x28] sm:$0xff]
  %v938 = vld [vmem:[%s931 + $0x30] sm:$0xff]
  %v939 = vld [vmem:[%s931 + $0x38] sm:$0xff]
  %v940 = vpack.c.bf16 %v930, %v929
  %941 = vmatprep.subr.bf16.mxu0 %v738
  %942 = vmatpush1.bf16.msra.mxu0 %v737
  %943 = vmatprep.subr.bf16.mxu0 %v742
  %944 = vmatpush1.bf16.msra.mxu0 %v741
  %945 = vmatprep.subr.bf16.mxu0 %v746
  %946 = vmatpush1.bf16.msra.mxu0 %v745
  %947 = vmatprep.subr.bf16.mxu0 %v750
  %948 = vmatpush1.bf16.msra.mxu0 %v749
  %949 = vmatprep.subr.bf16.mxu0 %v754
  %950 = vmatpush1.bf16.msra.mxu0 %v753
  %951 = vmatprep.subr.bf16.mxu0 %v758
  %952 = vmatpush1.bf16.msra.mxu0 %v757
  %953 = vmatprep.subr.bf16.mxu0 %v762
  %954 = vmatpush1.bf16.msra.mxu0 %v761
  %955 = vmatprep.subr.bf16.mxu0 %v766
  %956 = vmatpush1.bf16.msra.mxu0 %v765
  %957 = vmatprep.subr.bf16.mxu0 0
  %958 = vmatpush1.bf16.msra.mxu0 0
  %959 = vmatprep.subr.bf16.mxu0 0
  %960 = vmatpush1.bf16.msra.mxu0 0
  %961 = vmatprep.subr.bf16.mxu0 0
  %962 = vmatpush1.bf16.msra.mxu0 0
  %963 = vmatprep.subr.bf16.mxu0 0
  %964 = vmatpush1.bf16.msra.mxu0 0
  %965 = vmatprep.subr.bf16.mxu0 0
  %966 = vmatpush1.bf16.msra.mxu0 0
  %967 = vmatprep.subr.bf16.mxu0 0
  %968 = vmatpush1.bf16.msra.mxu0 0
  %969 = vmatprep.subr.bf16.mxu0 0
  %970 = vmatpush1.bf16.msra.mxu0 0
  %971 = vmatprep.subr.bf16.mxu0 0
  %972 = vmatpush1.bf16.msra.mxu0 0
  %973 = vmatprep.mubr.bf16.mxu0 0
  %974 = vmatmul.mubr.bf16.gmra.mrb[0].mxu0 %v940
  %v975 = vpop.f32.mrb[0].mxu0
  %v976 = vadd.f32 0.0, %v975
  %v977 = vpop.f32.mrb[0].mxu0
  %v978 = vadd.f32 0.0, %v977
  %v979 = vpop.f32.mrb[0].mxu0
  %v980 = vadd.f32 0.0, %v979
  %v981 = vpop.f32.mrb[0].mxu0
  %v982 = vadd.f32 0.0, %v981
  %983 = vdwg.mxu0
  %984 = vmatprep.subr.bf16.mxu0 %v740
  %985 = vmatpush1.bf16.msra.mxu0 %v739
  %986 = vmatprep.subr.bf16.mxu0 %v744
  %987 = vmatpush1.bf16.msra.mxu0 %v743
  %988 = vmatprep.subr.bf16.mxu0 %v748
  %989 = vmatpush1.bf16.msra.mxu0 %v747
  %990 = vmatprep.subr.bf16.mxu0 %v752
  %991 = vmatpush1.bf16.msra.mxu0 %v751
  %992 = vmatprep.subr.bf16.mxu0 %v756
  %993 = vmatpush1.bf16.msra.mxu0 %v755
  %994 = vmatprep.subr.bf16.mxu0 %v760
  %995 = vmatpush1.bf16.msra.mxu0 %v759
  %996 = vmatprep.subr.bf16.mxu0 %v764
  %997 = vmatpush1.bf16.msra.mxu0 %v763
  %998 = vmatprep.subr.bf16.mxu0 %v768
  %999 = vmatpush1.bf16.msra.mxu0 %v767
  %1000 = vmatprep.subr.bf16.mxu0 0
  %1001 = vmatpush1.bf16.msra.mxu0 0
  %1002 = vmatprep.subr.bf16.mxu0 0
  %1003 = vmatpush1.bf16.msra.mxu0 0
  %1004 = vmatprep.subr.bf16.mxu0 0
  %1005 = vmatpush1.bf16.msra.mxu0 0
  %1006 = vmatprep.subr.bf16.mxu0 0
  %1007 = vmatpush1.bf16.msra.mxu0 0
  %1008 = vmatprep.subr.bf16.mxu0 0
  %1009 = vmatpush1.bf16.msra.mxu0 0
  %1010 = vmatprep.subr.bf16.mxu0 0
  %1011 = vmatpush1.bf16.msra.mxu0 0
  %1012 = vmatprep.subr.bf16.mxu0 0
  %1013 = vmatpush1.bf16.msra.mxu0 0
  %1014 = vmatprep.subr.bf16.mxu0 0
  %1015 = vmatpush1.bf16.msra.mxu0 0
  %1016 = vmatprep.mubr.bf16.mxu0 0
  %1017 = vmatmul.mubr.bf16.gmra.mrb[0].mxu0 %v940
  %v1018 = vpop.f32.mrb[0].mxu0
  %v1019 = vadd.f32 0.0, %v1018
  %v1020 = vpop.f32.mrb[0].mxu0
  %v1021 = vadd.f32 0.0, %v1020
  %v1022 = vpop.f32.mrb[0].mxu0
  %v1023 = vadd.f32 0.0, %v1022
  %v1024 = vpop.f32.mrb[0].mxu0
  %v1025 = vadd.f32 0.0, %v1024
  %1026 = vdwg.mxu0
  %v1027 = vadd.f32 %v932, %v976
  %v1028 = vadd.f32 %v933, %v978
  %v1029 = vadd.f32 %v934, %v1019
  %v1030 = vadd.f32 %v935, %v1021
  %v1031 = vadd.f32 %v936, %v980
  %v1032 = vadd.f32 %v937, %v982
  %v1033 = vadd.f32 %v938, %v1023
  %v1034 = vadd.f32 %v939, %v1025
  %v1035 = vmul.f32 %v1027, 0.5
  %v1036 = vmul.f32 %v1028, 0.5
  %v1037 = vmul.f32 %v1029, 0.5
  %v1038 = vmul.f32 %v1031, 0.5
  %v1039 = vmul.f32 %v1032, 0.5
  %v1040 = vmul.f32 %v1033, 0.5
  %v1041 = vtanh.pop %v1035
  %v1042 = vtanh.pop %v1036
  %v1043 = vtanh.pop %v1037
  %v1044 = vtanh.pop %v1038
  %v1045 = vtanh.pop %v1039
  %v1046 = vtanh.pop %v1040
  %v1047 = vmul.f32 %v1041, 0.5
  %v1048 = vmul.f32 %v1044, 0.5
  %v1049 = vadd.f32 %v1047, 0.5
  %v1050 = vadd.f32 %v1048, 0.5
  %v1051 = vmul.f32 %v1042, 0.5
  %v1052 = vmul.f32 %v1045, 0.5
  %v1053 = vadd.f32 %v1051, 0.5
  %v1054 = vadd.f32 %v1052, 0.5
  %v1055 = vmul.f32 %v1043, 0.5
  %v1056 = vmul.f32 %v1046, 0.5
  %v1057 = vadd.f32 %v1055, 0.5
  %v1058 = vadd.f32 %v1056, 0.5
  %v1059 = vtanh.pop %v1030
  %v1060 = vtanh.pop %v1034
  %v1061 = vmul.f32 %v1053, %v925
  %v1062 = vmul.f32 %v1054, %v926
  %v1063 = vmul.f32 %v1049, %v1059
  %v1064 = vmul.f32 %v1050, %v1060
  %v1065 = vadd.f32 %v1061, %v1063
  %v1066 = vadd.f32 %v1062, %v1064
  %v1067 = vtanh.pop %v1065
  %v1068 = vtanh.pop %v1066
  %v1069 = vmul.f32 %v1057, %v1067
  %v1070 = vmul.f32 %v1058, %v1068
  %s1071 = scalar_lea.vmem [#allocation2], 128
  %v1072 = vld [vmem:[%s1071] sm:$0xff]
  %v1073 = vld [vmem:[%s1071 + $0x8] sm:$0xff]
  %v1074 = vld [vmem:[%s1071 + $0x10] sm:$0xff]
  %v1075 = vld [vmem:[%s1071 + $0x18] sm:$0xff]
  %v1076 = vld [vmem:[%s1071 + $0x20] sm:$0xff]
  %v1077 = vld [vmem:[%s1071 + $0x28] sm:$0xff]
  %v1078 = vld [vmem:[%s1071 + $0x30] sm:$0xff]
  %v1079 = vld [vmem:[%s1071 + $0x38] sm:$0xff]
  %v1080 = vpack.c.bf16 %v1070, %v1069
  %1081 = vmatprep.subr.bf16.mxu0 %v738
  %1082 = vmatpush1.bf16.msra.mxu0 %v737
  %1083 = vmatprep.subr.bf16.mxu0 %v742
  %1084 = vmatpush1.bf16.msra.mxu0 %v741
  %1085 = vmatprep.subr.bf16.mxu0 %v746
  %1086 = vmatpush1.bf16.msra.mxu0 %v745
  %1087 = vmatprep.subr.bf16.mxu0 %v750
  %1088 = vmatpush1.bf16.msra.mxu0 %v749
  %1089 = vmatprep.subr.bf16.mxu0 %v754
  %1090 = vmatpush1.bf16.msra.mxu0 %v753
  %1091 = vmatprep.subr.bf16.mxu0 %v758
  %1092 = vmatpush1.bf16.msra.mxu0 %v757
  %1093 = vmatprep.subr.bf16.mxu0 %v762
  %1094 = vmatpush1.bf16.msra.mxu0 %v761
  %1095 = vmatprep.subr.bf16.mxu0 %v766
  %1096 = vmatpush1.bf16.msra.mxu0 %v765
  %1097 = vmatprep.subr.bf16.mxu0 0
  %1098 = vmatpush1.bf16.msra.mxu0 0
  %1099 = vmatprep.subr.bf16.mxu0 0
  %1100 = vmatpush1.bf16.msra.mxu0 0
  %1101 = vmatprep.subr.bf16.mxu0 0
  %1102 = vmatpush1.bf16.msra.mxu0 0
  %1103 = vmatprep.subr.bf16.mxu0 0
  %1104 = vmatpush1.bf16.msra.mxu0 0
  %1105 = vmatprep.subr.bf16.mxu0 0
  %1106 = vmatpush1.bf16.msra.mxu0 0
  %1107 = vmatprep.subr.bf16.mxu0 0
  %1108 = vmatpush1.bf16.msra.mxu0 0
  %1109 = vmatprep.subr.bf16.mxu0 0
  %1110 = vmatpush1.bf16.msra.mxu0 0
  %1111 = vmatprep.subr.bf16.mxu0 0
  %1112 = vmatpush1.bf16.msra.mxu0 0
  %1113 = vmatprep.mubr.bf16.mxu0 0
  %1114 = vmatmul.mubr.bf16.gmra.mrb[0].mxu0 %v1080
  %v1115 = vpop.f32.mrb[0].mxu0
  %v1116 = vadd.f32 0.0, %v1115
  %v1117 = vpop.f32.mrb[0].mxu0
  %v1118 = vadd.f32 0.0, %v1117
  %v1119 = vpop.f32.mrb[0].mxu0
  %v1120 = vadd.f32 0.0, %v1119
  %v1121 = vpop.f32.mrb[0].mxu0
  %v1122 = vadd.f32 0.0, %v1121
  %1123 = vdwg.mxu0
  %1124 = vmatprep.subr.bf16.mxu0 %v740
  %1125 = vmatpush1.bf16.msra.mxu0 %v739
  %1126 = vmatprep.subr.bf16.mxu0 %v744
  %1127 = vmatpush1.bf16.msra.mxu0 %v743
  %1128 = vmatprep.subr.bf16.mxu0 %v748
  %1129 = vmatpush1.bf16.msra.mxu0 %v747
  %1130 = vmatprep.subr.bf16.mxu0 %v752
  %1131 = vmatpush1.bf16.msra.mxu0 %v751
  %1132 = vmatprep.subr.bf16.mxu0 %v756
  %1133 = vmatpush1.bf16.msra.mxu0 %v755
  %1134 = vmatprep.subr.bf16.mxu0 %v760
  %1135 = vmatpush1.bf16.msra.mxu0 %v759
  %1136 = vmatprep.subr.bf16.mxu0 %v764
  %1137 = vmatpush1.bf16.msra.mxu0 %v763
  %1138 = vmatprep.subr.bf16.mxu0 %v768
  %1139 = vmatpush1.bf16.msra.mxu0 %v767
  %1140 = vmatprep.subr.bf16.mxu0 0
  %1141 = vmatpush1.bf16.msra.mxu0 0
  %1142 = vmatprep.subr.bf16.mxu0 0
  %1143 = vmatpush1.bf16.msra.mxu0 0
  %1144 = vmatprep.subr.bf16.mxu0 0
  %1145 = vmatpush1.bf16.msra.mxu0 0
  %1146 = vmatprep.subr.bf16.mxu0 0
  %1147 = vmatpush1.bf16.msra.mxu0 0
  %1148 = vmatprep.subr.bf16.mxu0 0
  %1149 = vmatpush1.bf16.msra.mxu0 0
  %1150 = vmatprep.subr.bf16.mxu0 0
  %1151 = vmatpush1.bf16.msra.mxu0 0
  %1152 = vmatprep.subr.bf16.mxu0 0
  %1153 = vmatpush1.bf16.msra.mxu0 0
  %1154 = vmatprep.subr.bf16.mxu0 0
  %1155 = vmatpush1.bf16.msra.mxu0 0
  %1156 = vmatprep.mubr.bf16.mxu0 0
  %1157 = vmatmul.mubr.bf16.gmra.mrb[0].mxu0 %v1080
  %v1158 = vpop.f32.mrb[0].mxu0
  %v1159 = vadd.f32 0.0, %v1158
  %v1160 = vpop.f32.mrb[0].mxu0
  %v1161 = vadd.f32 0.0, %v1160
  %v1162 = vpop.f32.mrb[0].mxu0
  %v1163 = vadd.f32 0.0, %v1162
  %v1164 = vpop.f32.mrb[0].mxu0
  %v1165 = vadd.f32 0.0, %v1164
  %1166 = vdwg.mxu0
  %v1167 = vadd.f32 %v1072, %v1116
  %v1168 = vadd.f32 %v1073, %v1118
  %v1169 = vadd.f32 %v1074, %v1159
  %v1170 = vadd.f32 %v1075, %v1161
  %v1171 = vadd.f32 %v1076, %v1120
  %v1172 = vadd.f32 %v1077, %v1122
  %v1173 = vadd.f32 %v1078, %v1163
  %v1174 = vadd.f32 %v1079, %v1165
  %v1175 = vmul.f32 %v1167, 0.5
  %v1176 = vmul.f32 %v1168, 0.5
  %v1177 = vmul.f32 %v1169, 0.5
  %v1178 = vmul.f32 %v1171, 0.5
  %v1179 = vmul.f32 %v1172, 0.5
  %v1180 = vmul.f32 %v1173, 0.5
  %v1181 = vtanh.pop %v1175
  %v1182 = vtanh.pop %v1176
  %v1183 = vtanh.pop %v1177
  %v1184 = vtanh.pop %v1178
  %v1185 = vtanh.pop %v1179
  %v1186 = vtanh.pop %v1180
  %v1187 = vmul.f32 %v1181, 0.5
  %v1188 = vmul.f32 %v1184, 0.5
  %v1189 = vadd.f32 %v1187, 0.5
  %v1190 = vadd.f32 %v1188, 0.5
  %v1191 = vmul.f32 %v1182, 0.5
  %v1192 = vmul.f32 %v1185, 0.5
  %v1193 = vadd.f32 %v1191, 0.5
  %v1194 = vadd.f32 %v1192, 0.5
  %v1195 = vmul.f32 %v1183, 0.5
  %v1196 = vmul.f32 %v1186, 0.5
  %v1197 = vadd.f32 %v1195, 0.5
  %v1198 = vadd.f32 %v1196, 0.5
  %v1199 = vtanh.pop %v1170
  %v1200 = vtanh.pop %v1174
  %v1201 = vmul.f32 %v1193, %v1065
  %v1202 = vmul.f32 %v1194, %v1066
  %v1203 = vmul.f32 %v1189, %v1199
  %v1204 = vmul.f32 %v1190, %v1200
  %v1205 = vadd.f32 %v1201, %v1203
  %v1206 = vadd.f32 %v1202, %v1204
  %v1207 = vtanh.pop %v1205
  %v1208 = vtanh.pop %v1206
  %v1209 = vmul.f32 %v1197, %v1207
  %v1210 = vmul.f32 %v1198, %v1208
  %s1211 = scalar_lea.vmem [#allocation2], 192
  %v1212 = vld [vmem:[%s1211] sm:$0xff]
  %v1213 = vld [vmem:[%s1211 + $0x8] sm:$0xff]
  %v1214 = vld [vmem:[%s1211 + $0x10] sm:$0xff]
  %v1215 = vld [vmem:[%s1211 + $0x18] sm:$0xff]
  %v1216 = vld [vmem:[%s1211 + $0x20] sm:$0xff]
  %v1217 = vld [vmem:[%s1211 + $0x28] sm:$0xff]
  %v1218 = vld [vmem:[%s1211 + $0x30] sm:$0xff]
  %v1219 = vld [vmem:[%s1211 + $0x38] sm:$0xff]
  %v1220 = vpack.c.bf16 %v1210, %v1209
  %1221 = vmatprep.subr.bf16.mxu0 %v738
  %1222 = vmatpush1.bf16.msra.mxu0 %v737
  %1223 = vmatprep.subr.bf16.mxu0 %v742
  %1224 = vmatpush1.bf16.msra.mxu0 %v741
  %1225 = vmatprep.subr.bf16.mxu0 %v746
  %1226 = vmatpush1.bf16.msra.mxu0 %v745
  %1227 = vmatprep.subr.bf16.mxu0 %v750
  %1228 = vmatpush1.bf16.msra.mxu0 %v749
  %1229 = vmatprep.subr.bf16.mxu0 %v754
  %1230 = vmatpush1.bf16.msra.mxu0 %v753
  %1231 = vmatprep.subr.bf16.mxu0 %v758
  %1232 = vmatpush1.bf16.msra.mxu0 %v757
  %1233 = vmatprep.subr.bf16.mxu0 %v762
  %1234 = vmatpush1.bf16.msra.mxu0 %v761
  %1235 = vmatprep.subr.bf16.mxu0 %v766
  %1236 = vmatpush1.bf16.msra.mxu0 %v765
  %1237 = vmatprep.subr.bf16.mxu0 0
  %1238 = vmatpush1.bf16.msra.mxu0 0
  %1239 = vmatprep.subr.bf16.mxu0 0
  %1240 = vmatpush1.bf16.msra.mxu0 0
  %1241 = vmatprep.subr.bf16.mxu0 0
  %1242 = vmatpush1.bf16.msra.mxu0 0
  %1243 = vmatprep.subr.bf16.mxu0 0
  %1244 = vmatpush1.bf16.msra.mxu0 0
  %1245 = vmatprep.subr.bf16.mxu0 0
  %1246 = vmatpush1.bf16.msra.mxu0 0
  %1247 = vmatprep.subr.bf16.mxu0 0
  %1248 = vmatpush1.bf16.msra.mxu0 0
  %1249 = vmatprep.subr.bf16.mxu0 0
  %1250 = vmatpush1.bf16.msra.mxu0 0
  %1251 = vmatprep.subr.bf16.mxu0 0
  %1252 = vmatpush1.bf16.msra.mxu0 0
  %1253 = vmatprep.mubr.bf16.mxu0 0
  %1254 = vmatmul.mubr.bf16.gmra.mrb[0].mxu0 %v1220
  %v1255 = vpop.f32.mrb[0].mxu0
  %v1256 = vadd.f32 0.0, %v1255
  %v1257 = vpop.f32.mrb[0].mxu0
  %v1258 = vadd.f32 0.0, %v1257
  %v1259 = vpop.f32.mrb[0].mxu0
  %v1260 = vadd.f32 0.0, %v1259
  %v1261 = vpop.f32.mrb[0].mxu0
  %v1262 = vadd.f32 0.0, %v1261
  %1263 = vdwg.mxu0
  %1264 = vmatprep.subr.bf16.mxu0 %v740
  %1265 = vmatpush1.bf16.msra.mxu0 %v739
  %1266 = vmatprep.subr.bf16.mxu0 %v744
  %1267 = vmatpush1.bf16.msra.mxu0 %v743
  %1268 = vmatprep.subr.bf16.mxu0 %v748
  %1269 = vmatpush1.bf16.msra.mxu0 %v747
  %1270 = vmatprep.subr.bf16.mxu0 %v752
  %1271 = vmatpush1.bf16.msra.mxu0 %v751
  %1272 = vmatprep.subr.bf16.mxu0 %v756
  %1273 = vmatpush1.bf16.msra.mxu0 %v755
  %1274 = vmatprep.subr.bf16.mxu0 %v760
  %1275 = vmatpush1.bf16.msra.mxu0 %v759
  %1276 = vmatprep.subr.bf16.mxu0 %v764
  %1277 = vmatpush1.bf16.msra.mxu0 %v763
  %1278 = vmatprep.subr.bf16.mxu0 %v768
  %1279 = vmatpush1.bf16.msra.mxu0 %v767
  %1280 = vmatprep.subr.bf16.mxu0 0
  %1281 = vmatpush1.bf16.msra.mxu0 0
  %1282 = vmatprep.subr.bf16.mxu0 0
  %1283 = vmatpush1.bf16.msra.mxu0 0
  %1284 = vmatprep.subr.bf16.mxu0 0
  %1285 = vmatpush1.bf16.msra.mxu0 0
  %1286 = vmatprep.subr.bf16.mxu0 0
  %1287 = vmatpush1.bf16.msra.mxu0 0
  %1288 = vmatprep.subr.bf16.mxu0 0
  %1289 = vmatpush1.bf16.msra.mxu0 0
  %1290 = vmatprep.subr.bf16.mxu0 0
  %1291 = vmatpush1.bf16.msra.mxu0 0
  %1292 = vmatprep.subr.bf16.mxu0 0
  %1293 = vmatpush1.bf16.msra.mxu0 0
  %1294 = vmatprep.subr.bf16.mxu0 0
  %1295 = vmatpush1.bf16.msra.mxu0 0
  %1296 = vmatprep.mubr.bf16.mxu0 0
  %1297 = vmatmul.mubr.bf16.gmra.mrb[0].mxu0 %v1220
  %v1298 = vpop.f32.mrb[0].mxu0
  %v1299 = vadd.f32 0.0, %v1298
  %v1300 = vpop.f32.mrb[0].mxu0
  %v1301 = vadd.f32 0.0, %v1300
  %v1302 = vpop.f32.mrb[0].mxu0
  %v1303 = vadd.f32 0.0, %v1302
  %v1304 = vpop.f32.mrb[0].mxu0
  %v1305 = vadd.f32 0.0, %v1304
  %1306 = vdwg.mxu0
  %v1307 = vadd.f32 %v1212, %v1256
  %v1308 = vadd.f32 %v1213, %v1258
  %v1309 = vadd.f32 %v1214, %v1299
  %v1310 = vadd.f32 %v1215, %v1301
  %v1311 = vadd.f32 %v1216, %v1260
  %v1312 = vadd.f32 %v1217, %v1262
  %v1313 = vadd.f32 %v1218, %v1303
  %v1314 = vadd.f32 %v1219, %v1305
  %v1315 = vmul.f32 %v1307, 0.5
  %v1316 = vmul.f32 %v1308, 0.5
  %v1317 = vmul.f32 %v1309, 0.5
  %v1318 = vmul.f32 %v1311, 0.5
  %v1319 = vmul.f32 %v1312, 0.5
  %v1320 = vmul.f32 %v1313, 0.5
  %v1321 = vtanh.pop %v1315
  %v1322 = vtanh.pop %v1316
  %v1323 = vtanh.pop %v1317
  %v1324 = vtanh.pop %v1318
  %v1325 = vtanh.pop %v1319
  %v1326 = vtanh.pop %v1320
  %v1327 = vmul.f32 %v1321, 0.5
  %v1328 = vmul.f32 %v1324, 0.5
  %v1329 = vadd.f32 %v1327, 0.5
  %v1330 = vadd.f32 %v1328, 0.5
  %v1331 = vmul.f32 %v1322, 0.5
  %v1332 = vmul.f32 %v1325, 0.5
  %v1333 = vadd.f32 %v1331, 0.5
  %v1334 = vadd.f32 %v1332, 0.5
  %v1335 = vmul.f32 %v1323, 0.5
  %v1336 = vmul.f32 %v1326, 0.5
  %v1337 = vadd.f32 %v1335, 0.5
  %v1338 = vadd.f32 %v1336, 0.5
  %v1339 = vtanh.pop %v1310
  %v1340 = vtanh.pop %v1314
  %v1341 = vmul.f32 %v1333, %v1205
  %v1342 = vmul.f32 %v1334, %v1206
  %v1343 = vmul.f32 %v1329, %v1339
  %v1344 = vmul.f32 %v1330, %v1340
  %v1345 = vadd.f32 %v1341, %v1343
  %v1346 = vadd.f32 %v1342, %v1344
  %v1347 = vtanh.pop %v1345
  %v1348 = vtanh.pop %v1346
  %v1349 = vmul.f32 %v1337, %v1347
  %v1350 = vmul.f32 %v1338, %v1348
  %s1351 = scalar_lea.vmem [#allocation2], 256
  %v1352 = vld [vmem:[%s1351] sm:$0xff]
  %v1353 = vld [vmem:[%s1351 + $0x8] sm:$0xff]
  %v1354 = vld [vmem:[%s1351 + $0x10] sm:$0xff]
  %v1355 = vld [vmem:[%s1351 + $0x18] sm:$0xff]
  %v1356 = vld [vmem:[%s1351 + $0x20] sm:$0xff]
  %v1357 = vld [vmem:[%s1351 + $0x28] sm:$0xff]
  %v1358 = vld [vmem:[%s1351 + $0x30] sm:$0xff]
  %v1359 = vld [vmem:[%s1351 + $0x38] sm:$0xff]
  %v1360 = vpack.c.bf16 %v1350, %v1349
  %1361 = vmatprep.subr.bf16.mxu0 %v738
  %1362 = vmatpush1.bf16.msra.mxu0 %v737
  %1363 = vmatprep.subr.bf16.mxu0 %v742
  %1364 = vmatpush1.bf16.msra.mxu0 %v741
  %1365 = vmatprep.subr.bf16.mxu0 %v746
  %1366 = vmatpush1.bf16.msra.mxu0 %v745
  %1367 = vmatprep.subr.bf16.mxu0 %v750
  %1368 = vmatpush1.bf16.msra.mxu0 %v749
  %1369 = vmatprep.subr.bf16.mxu0 %v754
  %1370 = vmatpush1.bf16.msra.mxu0 %v753
  %1371 = vmatprep.subr.bf16.mxu0 %v758
  %1372 = vmatpush1.bf16.msra.mxu0 %v757
  %1373 = vmatprep.subr.bf16.mxu0 %v762
  %1374 = vmatpush1.bf16.msra.mxu0 %v761
  %1375 = vmatprep.subr.bf16.mxu0 %v766
  %1376 = vmatpush1.bf16.msra.mxu0 %v765
  %1377 = vmatprep.subr.bf16.mxu0 0
  %1378 = vmatpush1.bf16.msra.mxu0 0
  %1379 = vmatprep.subr.bf16.mxu0 0
  %1380 = vmatpush1.bf16.msra.mxu0 0
  %1381 = vmatprep.subr.bf16.mxu0 0
  %1382 = vmatpush1.bf16.msra.mxu0 0
  %1383 = vmatprep.subr.bf16.mxu0 0
  %1384 = vmatpush1.bf16.msra.mxu0 0
  %1385 = vmatprep.subr.bf16.mxu0 0
  %1386 = vmatpush1.bf16.msra.mxu0 0
  %1387 = vmatprep.subr.bf16.mxu0 0
  %1388 = vmatpush1.bf16.msra.mxu0 0
  %1389 = vmatprep.subr.bf16.mxu0 0
  %1390 = vmatpush1.bf16.msra.mxu0 0
  %1391 = vmatprep.subr.bf16.mxu0 0
  %1392 = vmatpush1.bf16.msra.mxu0 0
  %1393 = vmatprep.mubr.bf16.mxu0 0
  %1394 = vmatmul.mubr.bf16.gmra.mrb[0].mxu0 %v1360
  %v1395 = vpop.f32.mrb[0].mxu0
  %v1396 = vadd.f32 0.0, %v1395
  %v1397 = vpop.f32.mrb[0].mxu0
  %v1398 = vadd.f32 0.0, %v1397
  %v1399 = vpop.f32.mrb[0].mxu0
  %v1400 = vadd.f32 0.0, %v1399
  %v1401 = vpop.f32.mrb[0].mxu0
  %v1402 = vadd.f32 0.0, %v1401
  %1403 = vdwg.mxu0
  %1404 = vmatprep.subr.bf16.mxu0 %v740
  %1405 = vmatpush1.bf16.msra.mxu0 %v739
  %1406 = vmatprep.subr.bf16.mxu0 %v744
  %1407 = vmatpush1.bf16.msra.mxu0 %v743
  %1408 = vmatprep.subr.bf16.mxu0 %v748
  %1409 = vmatpush1.bf16.msra.mxu0 %v747
  %1410 = vmatprep.subr.bf16.mxu0 %v752
  %1411 = vmatpush1.bf16.msra.mxu0 %v751
  %1412 = vmatprep.subr.bf16.mxu0 %v756
  %1413 = vmatpush1.bf16.msra.mxu0 %v755
  %1414 = vmatprep.subr.bf16.mxu0 %v760
  %1415 = vmatpush1.bf16.msra.mxu0 %v759
  %1416 = vmatprep.subr.bf16.mxu0 %v764
  %1417 = vmatpush1.bf16.msra.mxu0 %v763
  %1418 = vmatprep.subr.bf16.mxu0 %v768
  %1419 = vmatpush1.bf16.msra.mxu0 %v767
  %1420 = vmatprep.subr.bf16.mxu0 0
  %1421 = vmatpush1.bf16.msra.mxu0 0
  %1422 = vmatprep.subr.bf16.mxu0 0
  %1423 = vmatpush1.bf16.msra.mxu0 0
  %1424 = vmatprep.subr.bf16.mxu0 0
  %1425 = vmatpush1.bf16.msra.mxu0 0
  %1426 = vmatprep.subr.bf16.mxu0 0
  %1427 = vmatpush1.bf16.msra.mxu0 0
  %1428 = vmatprep.subr.bf16.mxu0 0
  %1429 = vmatpush1.bf16.msra.mxu0 0
  %1430 = vmatprep.subr.bf16.mxu0 0
  %1431 = vmatpush1.bf16.msra.mxu0 0
  %1432 = vmatprep.subr.bf16.mxu0 0
  %1433 = vmatpush1.bf16.msra.mxu0 0
  %1434 = vmatprep.subr.bf16.mxu0 0
  %1435 = vmatpush1.bf16.msra.mxu0 0
  %1436 = vmatprep.mubr.bf16.mxu0 0
  %1437 = vmatmul.mubr.bf16.gmra.mrb[0].mxu0 %v1360
  %v1438 = vpop.f32.mrb[0].mxu0
  %v1439 = vadd.f32 0.0, %v1438
  %v1440 = vpop.f32.mrb[0].mxu0
  %v1441 = vadd.f32 0.0, %v1440
  %v1442 = vpop.f32.mrb[0].mxu0
  %v1443 = vadd.f32 0.0, %v1442
  %v1444 = vpop.f32.mrb[0].mxu0
  %v1445 = vadd.f32 0.0, %v1444
  %1446 = vdwg.mxu0
  %v1447 = vadd.f32 %v1352, %v1396
  %v1448 = vadd.f32 %v1353, %v1398
  %v1449 = vadd.f32 %v1354, %v1439
  %v1450 = vadd.f32 %v1355, %v1441
  %v1451 = vadd.f32 %v1356, %v1400
  %v1452 = vadd.f32 %v1357, %v1402
  %v1453 = vadd.f32 %v1358, %v1443
  %v1454 = vadd.f32 %v1359, %v1445
  %v1455 = vmul.f32 %v1447, 0.5
  %v1456 = vmul.f32 %v1448, 0.5
  %v1457 = vmul.f32 %v1449, 0.5
  %v1458 = vmul.f32 %v1451, 0.5
  %v1459 = vmul.f32 %v1452, 0.5
  %v1460 = vmul.f32 %v1453, 0.5
  %v1461 = vtanh.pop %v1455
  %v1462 = vtanh.pop %v1456
  %v1463 = vtanh.pop %v1457
  %v1464 = vtanh.pop %v1458
  %v1465 = vtanh.pop %v1459
  %v1466 = vtanh.pop %v1460
  %v1467 = vmul.f32 %v1461, 0.5
  %v1468 = vmul.f32 %v1464, 0.5
  %v1469 = vadd.f32 %v1467, 0.5
  %v1470 = vadd.f32 %v1468, 0.5
  %v1471 = vmul.f32 %v1462, 0.5
  %v1472 = vmul.f32 %v1465, 0.5
  %v1473 = vadd.f32 %v1471, 0.5
  %v1474 = vadd.f32 %v1472, 0.5
  %v1475 = vmul.f32 %v1463, 0.5
  %v1476 = vmul.f32 %v1466, 0.5
  %v1477 = vadd.f32 %v1475, 0.5
  %v1478 = vadd.f32 %v1476, 0.5
  %v1479 = vtanh.pop %v1450
  %v1480 = vtanh.pop %v1454
  %v1481 = vmul.f32 %v1473, %v1345
  %v1482 = vmul.f32 %v1474, %v1346
  %v1483 = vmul.f32 %v1469, %v1479
  %v1484 = vmul.f32 %v1470, %v1480
  %v1485 = vadd.f32 %v1481, %v1483
  %v1486 = vadd.f32 %v1482, %v1484
  %v1487 = vtanh.pop %v1485
  %v1488 = vtanh.pop %v1486
  %v1489 = vmul.f32 %v1477, %v1487
  %v1490 = vmul.f32 %v1478, %v1488
  %s1491 = scalar_lea.vmem [#allocation2], 320
  %v1492 = vld [vmem:[%s1491] sm:$0xff]
  %v1493 = vld [vmem:[%s1491 + $0x8] sm:$0xff]
  %v1494 = vld [vmem:[%s1491 + $0x10] sm:$0xff]
  %v1495 = vld [vmem:[%s1491 + $0x18] sm:$0xff]
  %v1496 = vld [vmem:[%s1491 + $0x20] sm:$0xff]
  %v1497 = vld [vmem:[%s1491 + $0x28] sm:$0xff]
  %v1498 = vld [vmem:[%s1491 + $0x30] sm:$0xff]
  %v1499 = vld [vmem:[%s1491 + $0x38] sm:$0xff]
  %v1500 = vpack.c.bf16 %v1490, %v1489
  %1501 = vmatprep.subr.bf16.mxu0 %v738
  %1502 = vmatpush1.bf16.msra.mxu0 %v737
  %1503 = vmatprep.subr.bf16.mxu0 %v742
  %1504 = vmatpush1.bf16.msra.mxu0 %v741
  %1505 = vmatprep.subr.bf16.mxu0 %v746
  %1506 = vmatpush1.bf16.msra.mxu0 %v745
  %1507 = vmatprep.subr.bf16.mxu0 %v750
  %1508 = vmatpush1.bf16.msra.mxu0 %v749
  %1509 = vmatprep.subr.bf16.mxu0 %v754
  %1510 = vmatpush1.bf16.msra.mxu0 %v753
  %1511 = vmatprep.subr.bf16.mxu0 %v758
  %1512 = vmatpush1.bf16.msra.mxu0 %v757
  %1513 = vmatprep.subr.bf16.mxu0 %v762
  %1514 = vmatpush1.bf16.msra.mxu0 %v761
  %1515 = vmatprep.subr.bf16.mxu0 %v766
  %1516 = vmatpush1.bf16.msra.mxu0 %v765
  %1517 = vmatprep.subr.bf16.mxu0 0
  %1518 = vmatpush1.bf16.msra.mxu0 0
  %1519 = vmatprep.subr.bf16.mxu0 0
  %1520 = vmatpush1.bf16.msra.mxu0 0
  %1521 = vmatprep.subr.bf16.mxu0 0
  %1522 = vmatpush1.bf16.msra.mxu0 0
  %1523 = vmatprep.subr.bf16.mxu0 0
  %1524 = vmatpush1.bf16.msra.mxu0 0
  %1525 = vmatprep.subr.bf16.mxu0 0
  %1526 = vmatpush1.bf16.msra.mxu0 0
  %1527 = vmatprep.subr.bf16.mxu0 0
  %1528 = vmatpush1.bf16.msra.mxu0 0
  %1529 = vmatprep.subr.bf16.mxu0 0
  %1530 = vmatpush1.bf16.msra.mxu0 0
  %1531 = vmatprep.subr.bf16.mxu0 0
  %1532 = vmatpush1.bf16.msra.mxu0 0
  %1533 = vmatprep.mubr.bf16.mxu0 0
  %1534 = vmatmul.mubr.bf16.gmra.mrb[0].mxu0 %v1500
  %v1535 = vpop.f32.mrb[0].mxu0
  %v1536 = vadd.f32 0.0, %v1535
  %v1537 = vpop.f32.mrb[0].mxu0
  %v1538 = vadd.f32 0.0, %v1537
  %v1539 = vpop.f32.mrb[0].mxu0
  %v1540 = vadd.f32 0.0, %v1539
  %v1541 = vpop.f32.mrb[0].mxu0
  %v1542 = vadd.f32 0.0, %v1541
  %1543 = vdwg.mxu0
  %1544 = vmatprep.subr.bf16.mxu0 %v740
  %1545 = vmatpush1.bf16.msra.mxu0 %v739
  %1546 = vmatprep.subr.bf16.mxu0 %v744
  %1547 = vmatpush1.bf16.msra.mxu0 %v743
  %1548 = vmatprep.subr.bf16.mxu0 %v748
  %1549 = vmatpush1.bf16.msra.mxu0 %v747
  %1550 = vmatprep.subr.bf16.mxu0 %v752
  %1551 = vmatpush1.bf16.msra.mxu0 %v751
  %1552 = vmatprep.subr.bf16.mxu0 %v756
  %1553 = vmatpush1.bf16.msra.mxu0 %v755
  %1554 = vmatprep.subr.bf16.mxu0 %v760
  %1555 = vmatpush1.bf16.msra.mxu0 %v759
  %1556 = vmatprep.subr.bf16.mxu0 %v764
  %1557 = vmatpush1.bf16.msra.mxu0 %v763
  %1558 = vmatprep.subr.bf16.mxu0 %v768
  %1559 = vmatpush1.bf16.msra.mxu0 %v767
  %1560 = vmatprep.subr.bf16.mxu0 0
  %1561 = vmatpush1.bf16.msra.mxu0 0
  %1562 = vmatprep.subr.bf16.mxu0 0
  %1563 = vmatpush1.bf16.msra.mxu0 0
  %1564 = vmatprep.subr.bf16.mxu0 0
  %1565 = vmatpush1.bf16.msra.mxu0 0
  %1566 = vmatprep.subr.bf16.mxu0 0
  %1567 = vmatpush1.bf16.msra.mxu0 0
  %1568 = vmatprep.subr.bf16.mxu0 0
  %1569 = vmatpush1.bf16.msra.mxu0 0
  %1570 = vmatprep.subr.bf16.mxu0 0
  %1571 = vmatpush1.bf16.msra.mxu0 0
  %1572 = vmatprep.subr.bf16.mxu0 0
  %1573 = vmatpush1.bf16.msra.mxu0 0
  %1574 = vmatprep.subr.bf16.mxu0 0
  %1575 = vmatpush1.bf16.msra.mxu0 0
  %1576 = vmatprep.mubr.bf16.mxu0 0
  %1577 = vmatmul.mubr.bf16.gmra.mrb[0].mxu0 %v1500
  %v1578 = vpop.f32.mrb[0].mxu0
  %v1579 = vadd.f32 0.0, %v1578
  %v1580 = vpop.f32.mrb[0].mxu0
  %v1581 = vadd.f32 0.0, %v1580
  %v1582 = vpop.f32.mrb[0].mxu0
  %v1583 = vadd.f32 0.0, %v1582
  %v1584 = vpop.f32.mrb[0].mxu0
  %v1585 = vadd.f32 0.0, %v1584
  %1586 = vdwg.mxu0
  %v1587 = vadd.f32 %v1492, %v1536
  %v1588 = vadd.f32 %v1493, %v1538
  %v1589 = vadd.f32 %v1494, %v1579
  %v1590 = vadd.f32 %v1495, %v1581
  %v1591 = vadd.f32 %v1496, %v1540
  %v1592 = vadd.f32 %v1497, %v1542
  %v1593 = vadd.f32 %v1498, %v1583
  %v1594 = vadd.f32 %v1499, %v1585
  %v1595 = vmul.f32 %v1587, 0.5
  %v1596 = vmul.f32 %v1588, 0.5
  %v1597 = vmul.f32 %v1589, 0.5
  %v1598 = vmul.f32 %v1591, 0.5
  %v1599 = vmul.f32 %v1592, 0.5
  %v1600 = vmul.f32 %v1593, 0.5
  %v1601 = vtanh.pop %v1595
  %v1602 = vtanh.pop %v1596
  %v1603 = vtanh.pop %v1597
  %v1604 = vtanh.pop %v1598
  %v1605 = vtanh.pop %v1599
  %v1606 = vtanh.pop %v1600
  %v1607 = vmul.f32 %v1601, 0.5
  %v1608 = vmul.f32 %v1604, 0.5
  %v1609 = vadd.f32 %v1607, 0.5
  %v1610 = vadd.f32 %v1608, 0.5
  %v1611 = vmul.f32 %v1602, 0.5
  %v1612 = vmul.f32 %v1605, 0.5
  %v1613 = vadd.f32 %v1611, 0.5
  %v1614 = vadd.f32 %v1612, 0.5
  %v1615 = vmul.f32 %v1603, 0.5
  %v1616 = vmul.f32 %v1606, 0.5
  %v1617 = vadd.f32 %v1615, 0.5
  %v1618 = vadd.f32 %v1616, 0.5
  %v1619 = vtanh.pop %v1590
  %v1620 = vtanh.pop %v1594
  %v1621 = vmul.f32 %v1613, %v1485
  %v1622 = vmul.f32 %v1614, %v1486
  %v1623 = vmul.f32 %v1609, %v1619
  %v1624 = vmul.f32 %v1610, %v1620
  %v1625 = vadd.f32 %v1621, %v1623
  %v1626 = vadd.f32 %v1622, %v1624
  %v1627 = vtanh.pop %v1625
  %v1628 = vtanh.pop %v1626
  %v1629 = vmul.f32 %v1617, %v1627
  %v1630 = vmul.f32 %v1618, %v1628
  %s1631 = scalar_lea.vmem [#allocation2], 384
  %v1632 = vld [vmem:[%s1631] sm:$0xff]
  %v1633 = vld [vmem:[%s1631 + $0x8] sm:$0xff]
  %v1634 = vld [vmem:[%s1631 + $0x10] sm:$0xff]
  %v1635 = vld [vmem:[%s1631 + $0x18] sm:$0xff]
  %v1636 = vld [vmem:[%s1631 + $0x20] sm:$0xff]
  %v1637 = vld [vmem:[%s1631 + $0x28] sm:$0xff]
  %v1638 = vld [vmem:[%s1631 + $0x30] sm:$0xff]
  %v1639 = vld [vmem:[%s1631 + $0x38] sm:$0xff]
  %v1640 = vpack.c.bf16 %v1630, %v1629
  %1641 = vmatprep.subr.bf16.mxu0 %v738
  %1642 = vmatpush1.bf16.msra.mxu0 %v737
  %1643 = vmatprep.subr.bf16.mxu0 %v742
  %1644 = vmatpush1.bf16.msra.mxu0 %v741
  %1645 = vmatprep.subr.bf16.mxu0 %v746
  %1646 = vmatpush1.bf16.msra.mxu0 %v745
  %1647 = vmatprep.subr.bf16.mxu0 %v750
  %1648 = vmatpush1.bf16.msra.mxu0 %v749
  %1649 = vmatprep.subr.bf16.mxu0 %v754
  %1650 = vmatpush1.bf16.msra.mxu0 %v753
  %1651 = vmatprep.subr.bf16.mxu0 %v758
  %1652 = vmatpush1.bf16.msra.mxu0 %v757
  %1653 = vmatprep.subr.bf16.mxu0 %v762
  %1654 = vmatpush1.bf16.msra.mxu0 %v761
  %1655 = vmatprep.subr.bf16.mxu0 %v766
  %1656 = vmatpush1.bf16.msra.mxu0 %v765
  %1657 = vmatprep.subr.bf16.mxu0 0
  %1658 = vmatpush1.bf16.msra.mxu0 0
  %1659 = vmatprep.subr.bf16.mxu0 0
  %1660 = vmatpush1.bf16.msra.mxu0 0
  %1661 = vmatprep.subr.bf16.mxu0 0
  %1662 = vmatpush1.bf16.msra.mxu0 0
  %1663 = vmatprep.subr.bf16.mxu0 0
  %1664 = vmatpush1.bf16.msra.mxu0 0
  %1665 = vmatprep.subr.bf16.mxu0 0
  %1666 = vmatpush1.bf16.msra.mxu0 0
  %1667 = vmatprep.subr.bf16.mxu0 0
  %1668 = vmatpush1.bf16.msra.mxu0 0
  %1669 = vmatprep.subr.bf16.mxu0 0
  %1670 = vmatpush1.bf16.msra.mxu0 0
  %1671 = vmatprep.subr.bf16.mxu0 0
  %1672 = vmatpush1.bf16.msra.mxu0 0
  %1673 = vmatprep.mubr.bf16.mxu0 0
  %1674 = vmatmul.mubr.bf16.gmra.mrb[0].mxu0 %v1640
  %v1675 = vpop.f32.mrb[0].mxu0
  %v1676 = vadd.f32 0.0, %v1675
  %v1677 = vpop.f32.mrb[0].mxu0
  %v1678 = vadd.f32 0.0, %v1677
  %v1679 = vpop.f32.mrb[0].mxu0
  %v1680 = vadd.f32 0.0, %v1679
  %v1681 = vpop.f32.mrb[0].mxu0
  %v1682 = vadd.f32 0.0, %v1681
  %1683 = vdwg.mxu0
  %1684 = vmatprep.subr.bf16.mxu0 %v740
  %1685 = vmatpush1.bf16.msra.mxu0 %v739
  %1686 = vmatprep.subr.bf16.mxu0 %v744
  %1687 = vmatpush1.bf16.msra.mxu0 %v743
  %1688 = vmatprep.subr.bf16.mxu0 %v748
  %1689 = vmatpush1.bf16.msra.mxu0 %v747
  %1690 = vmatprep.subr.bf16.mxu0 %v752
  %1691 = vmatpush1.bf16.msra.mxu0 %v751
  %1692 = vmatprep.subr.bf16.mxu0 %v756
  %1693 = vmatpush1.bf16.msra.mxu0 %v755
  %1694 = vmatprep.subr.bf16.mxu0 %v760
  %1695 = vmatpush1.bf16.msra.mxu0 %v759
  %1696 = vmatprep.subr.bf16.mxu0 %v764
  %1697 = vmatpush1.bf16.msra.mxu0 %v763
  %1698 = vmatprep.subr.bf16.mxu0 %v768
  %1699 = vmatpush1.bf16.msra.mxu0 %v767
  %1700 = vmatprep.subr.bf16.mxu0 0
  %1701 = vmatpush1.bf16.msra.mxu0 0
  %1702 = vmatprep.subr.bf16.mxu0 0
  %1703 = vmatpush1.bf16.msra.mxu0 0
  %1704 = vmatprep.subr.bf16.mxu0 0
  %1705 = vmatpush1.bf16.msra.mxu0 0
  %1706 = vmatprep.subr.bf16.mxu0 0
  %1707 = vmatpush1.bf16.msra.mxu0 0
  %1708 = vmatprep.subr.bf16.mxu0 0
  %1709 = vmatpush1.bf16.msra.mxu0 0
  %1710 = vmatprep.subr.bf16.mxu0 0
  %1711 = vmatpush1.bf16.msra.mxu0 0
  %1712 = vmatprep.subr.bf16.mxu0 0
  %1713 = vmatpush1.bf16.msra.mxu0 0
  %1714 = vmatprep.subr.bf16.mxu0 0
  %1715 = vmatpush1.bf16.msra.mxu0 0
  %1716 = vmatprep.mubr.bf16.mxu0 0
  %1717 = vmatmul.mubr.bf16.gmra.mrb[0].mxu0 %v1640
  %v1718 = vpop.f32.mrb[0].mxu0
  %v1719 = vadd.f32 0.0, %v1718
  %v1720 = vpop.f32.mrb[0].mxu0
  %v1721 = vadd.f32 0.0, %v1720
  %v1722 = vpop.f32.mrb[0].mxu0
  %v1723 = vadd.f32 0.0, %v1722
  %v1724 = vpop.f32.mrb[0].mxu0
  %v1725 = vadd.f32 0.0, %v1724
  %1726 = vdwg.mxu0
  %v1727 = vadd.f32 %v1632, %v1676
  %v1728 = vadd.f32 %v1633, %v1678
  %v1729 = vadd.f32 %v1634, %v1719
  %v1730 = vadd.f32 %v1635, %v1721
  %v1731 = vadd.f32 %v1636, %v1680
  %v1732 = vadd.f32 %v1637, %v1682
  %v1733 = vadd.f32 %v1638, %v1723
  %v1734 = vadd.f32 %v1639, %v1725
  %v1735 = vmul.f32 %v1727, 0.5
  %v1736 = vmul.f32 %v1728, 0.5
  %v1737 = vmul.f32 %v1729, 0.5
  %v1738 = vmul.f32 %v1731, 0.5
  %v1739 = vmul.f32 %v1732, 0.5
  %v1740 = vmul.f32 %v1733, 0.5
  %v1741 = vtanh.pop %v1735
  %v1742 = vtanh.pop %v1736
  %v1743 = vtanh.pop %v1737
  %v1744 = vtanh.pop %v1738
  %v1745 = vtanh.pop %v1739
  %v1746 = vtanh.pop %v1740
  %v1747 = vmul.f32 %v1741, 0.5
  %v1748 = vmul.f32 %v1744, 0.5
  %v1749 = vadd.f32 %v1747, 0.5
  %v1750 = vadd.f32 %v1748, 0.5
  %v1751 = vmul.f32 %v1742, 0.5
  %v1752 = vmul.f32 %v1745, 0.5
  %v1753 = vadd.f32 %v1751, 0.5
  %v1754 = vadd.f32 %v1752, 0.5
  %v1755 = vmul.f32 %v1743, 0.5
  %v1756 = vmul.f32 %v1746, 0.5
  %v1757 = vadd.f32 %v1755, 0.5
  %v1758 = vadd.f32 %v1756, 0.5
  %v1759 = vtanh.pop %v1730
  %v1760 = vtanh.pop %v1734
  %v1761 = vmul.f32 %v1753, %v1625
  %v1762 = vmul.f32 %v1754, %v1626
  %v1763 = vmul.f32 %v1749, %v1759
  %v1764 = vmul.f32 %v1750, %v1760
  %v1765 = vadd.f32 %v1761, %v1763
  %v1766 = vadd.f32 %v1762, %v1764
  %v1767 = vtanh.pop %v1765
  %v1768 = vtanh.pop %v1766
  %v1769 = vmul.f32 %v1757, %v1767
  %v1770 = vmul.f32 %v1758, %v1768
  %s1771 = scalar_lea.vmem [#allocation2], 448
  %v1772 = vld [vmem:[%s1771] sm:$0xff]
  %v1773 = vld [vmem:[%s1771 + $0x8] sm:$0xff]
  %v1774 = vld [vmem:[%s1771 + $0x10] sm:$0xff]
  %v1775 = vld [vmem:[%s1771 + $0x18] sm:$0xff]
  %v1776 = vld [vmem:[%s1771 + $0x20] sm:$0xff]
  %v1777 = vld [vmem:[%s1771 + $0x28] sm:$0xff]
  %v1778 = vld [vmem:[%s1771 + $0x30] sm:$0xff]
  %v1779 = vld [vmem:[%s1771 + $0x38] sm:$0xff]
  %v1780 = vpack.c.bf16 %v1770, %v1769
  %1781 = vmatprep.subr.bf16.mxu0 %v738
  %1782 = vmatpush1.bf16.msra.mxu0 %v737
  %1783 = vmatprep.subr.bf16.mxu0 %v742
  %1784 = vmatpush1.bf16.msra.mxu0 %v741
  %1785 = vmatprep.subr.bf16.mxu0 %v746
  %1786 = vmatpush1.bf16.msra.mxu0 %v745
  %1787 = vmatprep.subr.bf16.mxu0 %v750
  %1788 = vmatpush1.bf16.msra.mxu0 %v749
  %1789 = vmatprep.subr.bf16.mxu0 %v754
  %1790 = vmatpush1.bf16.msra.mxu0 %v753
  %1791 = vmatprep.subr.bf16.mxu0 %v758
  %1792 = vmatpush1.bf16.msra.mxu0 %v757
  %1793 = vmatprep.subr.bf16.mxu0 %v762
  %1794 = vmatpush1.bf16.msra.mxu0 %v761
  %1795 = vmatprep.subr.bf16.mxu0 %v766
  %1796 = vmatpush1.bf16.msra.mxu0 %v765
  %1797 = vmatprep.subr.bf16.mxu0 0
  %1798 = vmatpush1.bf16.msra.mxu0 0
  %1799 = vmatprep.subr.bf16.mxu0 0
  %1800 = vmatpush1.bf16.msra.mxu0 0
  %1801 = vmatprep.subr.bf16.mxu0 0
  %1802 = vmatpush1.bf16.msra.mxu0 0
  %1803 = vmatprep.subr.bf16.mxu0 0
  %1804 = vmatpush1.bf16.msra.mxu0 0
  %1805 = vmatprep.subr.bf16.mxu0 0
  %1806 = vmatpush1.bf16.msra.mxu0 0
  %1807 = vmatprep.subr.bf16.mxu0 0
  %1808 = vmatpush1.bf16.msra.mxu0 0
  %1809 = vmatprep.subr.bf16.mxu0 0
  %1810 = vmatpush1.bf16.msra.mxu0 0
  %1811 = vmatprep.subr.bf16.mxu0 0
  %1812 = vmatpush1.bf16.msra.mxu0 0
  %1813 = vmatprep.mubr.bf16.mxu0 0
  %1814 = vmatmul.mubr.bf16.gmra.mrb[0].mxu0 %v1780
  %v1815 = vpop.f32.mrb[0].mxu0
  %v1816 = vadd.f32 0.0, %v1815
  %v1817 = vpop.f32.mrb[0].mxu0
  %v1818 = vadd.f32 0.0, %v1817
  %v1819 = vpop.f32.mrb[0].mxu0
  %v1820 = vadd.f32 0.0, %v1819
  %v1821 = vpop.f32.mrb[0].mxu0
  %v1822 = vadd.f32 0.0, %v1821
  %1823 = vdwg.mxu0
  %1824 = vmatprep.subr.bf16.mxu0 %v740
  %1825 = vmatpush1.bf16.msra.mxu0 %v739
  %1826 = vmatprep.subr.bf16.mxu0 %v744
  %1827 = vmatpush1.bf16.msra.mxu0 %v743
  %1828 = vmatprep.subr.bf16.mxu0 %v748
  %1829 = vmatpush1.bf16.msra.mxu0 %v747
  %1830 = vmatprep.subr.bf16.mxu0 %v752
  %1831 = vmatpush1.bf16.msra.mxu0 %v751
  %1832 = vmatprep.subr.bf16.mxu0 %v756
  %1833 = vmatpush1.bf16.msra.mxu0 %v755
  %1834 = vmatprep.subr.bf16.mxu0 %v760
  %1835 = vmatpush1.bf16.msra.mxu0 %v759
  %1836 = vmatprep.subr.bf16.mxu0 %v764
  %1837 = vmatpush1.bf16.msra.mxu0 %v763
  %1838 = vmatprep.subr.bf16.mxu0 %v768
  %1839 = vmatpush1.bf16.msra.mxu0 %v767
  %1840 = vmatprep.subr.bf16.mxu0 0
  %1841 = vmatpush1.bf16.msra.mxu0 0
  %1842 = vmatprep.subr.bf16.mxu0 0
  %1843 = vmatpush1.bf16.msra.mxu0 0
  %1844 = vmatprep.subr.bf16.mxu0 0
  %1845 = vmatpush1.bf16.msra.mxu0 0
  %1846 = vmatprep.subr.bf16.mxu0 0
  %1847 = vmatpush1.bf16.msra.mxu0 0
  %1848 = vmatprep.subr.bf16.mxu0 0
  %1849 = vmatpush1.bf16.msra.mxu0 0
  %1850 = vmatprep.subr.bf16.mxu0 0
  %1851 = vmatpush1.bf16.msra.mxu0 0
  %1852 = vmatprep.subr.bf16.mxu0 0
  %1853 = vmatpush1.bf16.msra.mxu0 0
  %1854 = vmatprep.subr.bf16.mxu0 0
  %1855 = vmatpush1.bf16.msra.mxu0 0
  %1856 = vmatprep.mubr.bf16.mxu0 0
  %1857 = vmatmul.mubr.bf16.gmra.mrb[0].mxu0 %v1780
  %v1858 = vpop.f32.mrb[0].mxu0
  %v1859 = vadd.f32 0.0, %v1858
  %v1860 = vpop.f32.mrb[0].mxu0
  %v1861 = vadd.f32 0.0, %v1860
  %v1862 = vpop.f32.mrb[0].mxu0
  %v1863 = vadd.f32 0.0, %v1862
  %v1864 = vpop.f32.mrb[0].mxu0
  %v1865 = vadd.f32 0.0, %v1864
  %1866 = vdwg.mxu0
  %v1867 = vadd.f32 %v1772, %v1816
  %v1868 = vadd.f32 %v1773, %v1818
  %v1869 = vadd.f32 %v1774, %v1859
  %v1870 = vadd.f32 %v1775, %v1861
  %v1871 = vadd.f32 %v1776, %v1820
  %v1872 = vadd.f32 %v1777, %v1822
  %v1873 = vadd.f32 %v1778, %v1863
  %v1874 = vadd.f32 %v1779, %v1865
  %v1875 = vmul.f32 %v1867, 0.5
  %v1876 = vmul.f32 %v1868, 0.5
  %v1877 = vmul.f32 %v1869, 0.5
  %v1878 = vmul.f32 %v1871, 0.5
  %v1879 = vmul.f32 %v1872, 0.5
  %v1880 = vmul.f32 %v1873, 0.5
  %v1881 = vtanh.pop %v1875
  %v1882 = vtanh.pop %v1876
  %v1883 = vtanh.pop %v1877
  %v1884 = vtanh.pop %v1878
  %v1885 = vtanh.pop %v1879
  %v1886 = vtanh.pop %v1880
  %v1887 = vmul.f32 %v1881, 0.5
  %v1888 = vmul.f32 %v1884, 0.5
  %v1889 = vadd.f32 %v1887, 0.5
  %v1890 = vadd.f32 %v1888, 0.5
  %v1891 = vmul.f32 %v1882, 0.5
  %v1892 = vmul.f32 %v1885, 0.5
  %v1893 = vadd.f32 %v1891, 0.5
  %v1894 = vadd.f32 %v1892, 0.5
  %v1895 = vmul.f32 %v1883, 0.5
  %v1896 = vmul.f32 %v1886, 0.5
  %v1897 = vadd.f32 %v1895, 0.5
  %v1898 = vadd.f32 %v1896, 0.5
  %v1899 = vtanh.pop %v1870
  %v1900 = vtanh.pop %v1874
  %v1901 = vmul.f32 %v1893, %v1765
  %v1902 = vmul.f32 %v1894, %v1766
  %v1903 = vmul.f32 %v1889, %v1899
  %v1904 = vmul.f32 %v1890, %v1900
  %v1905 = vadd.f32 %v1901, %v1903
  %v1906 = vadd.f32 %v1902, %v1904
  %v1907 = vtanh.pop %v1905
  %v1908 = vtanh.pop %v1906
  %v1909 = vmul.f32 %v1897, %v1907
  %v1910 = vmul.f32 %v1898, %v1908
  %1911 = vst [vmem:[#allocation3] sm:$0xff] %v1909
  %1912 = vst [vmem:[#allocation3 + $0x8] sm:$0xff] %v1910
  %1913 = vst [vmem:[#allocation4] sm:$0xff] %v1905
  %1914 = vst [vmem:[#allocation4 + $0x8] sm:$0xff] %v1906
  // Predicated region
  $region22: #{lstm_encoder_forward.3} parent=0 // pred_check
    %p1915 = pneg %p20
  $region23: #{lstm_encoder_forward.3} parent=0 // pred_check_branch
    %1917 = sbr.rel (%p1915) target = $region25
  $region24: #{lstm_encoder_forward.3} parent=0 // pred_region
    %1918 = vst [vmem:[%s4] sm:$0xff] %v1909
    %1919 = vst [vmem:[%s4 + $0x8] sm:$0xff] %v1910
    %1920 = vst [vmem:[%s5] sm:$0xff] %v1905
    %1921 = vst [vmem:[%s5 + $0x8] sm:$0xff] %v1906
  $region25: #{lstm_encoder_forward.3} parent=0 // pred_fallthru
    _
  // Predicated region
  $region26: #{lstm_encoder_forward.3} parent=0 // pred_check
    _
  $region27: #{lstm_encoder_forward.3} parent=0 // pred_check_branch
    %1923 = sbr.rel (0) target = $region29
  $region28: #{lstm_encoder_forward.3} parent=0 // pred_region
    _
  $region29: #{lstm_encoder_forward.3} parent=0 // pred_fallthru
    _
  // Predicated region
  $region30: #{lstm_encoder_forward.3} parent=0 // pred_check
    _
  $region31: #{lstm_encoder_forward.3} parent=0 // pred_check_branch
    %1925 = sbr.rel (0) target = $region33
  $region32: #{lstm_encoder_forward.3} parent=0 // pred_region
    _
  $region33: #{lstm_encoder_forward.3} parent=0 // pred_fallthru
    _
  // Predicated region
  $region34: #{lstm_encoder_forward.3} parent=0 // pred_check
    _
  $region35: #{lstm_encoder_forward.3} parent=0 // pred_check_branch
    %1927 = sbr.rel (0) target = $region37
  $region36: #{lstm_encoder_forward.3} parent=0 // pred_region
    _
  $region37: #{lstm_encoder_forward.3} parent=0 // pred_fallthru
    _
  // Predicated region
  $region38: #{lstm_encoder_forward.3} parent=0 // pred_check
    _
  $region39: #{lstm_encoder_forward.3} parent=0 // pred_check_branch
    %1929 = sbr.rel (0) target = $region41
  $region40: #{lstm_encoder_forward.3} parent=0 // pred_region
    _
  $region41: #{lstm_encoder_forward.3} parent=0 // pred_fallthru
    _

// kernel: lstm_encoder_forward.2
$region0: #{lstm_encoder_forward.2}
  #allocation0 [shape = 'u32[]', space=smem, size = 0x4, offset = 0x4, fixed_abs, tag = 'smem constant byte address 0x4 - core index']
  #allocation1 [shape = 'u32[144,128]{1,0:T(1,128)}', space=vmem, size = 0x12000, scoped, tag = 'internal scratch']
  #allocation2 [shape = 'f32[8,16,512]{2,1,0:T(8,128)}', space=vmem, size = 0x40000, scoped, tag = 'scratch operand']
  #allocation3 [shape = 'f32[16,128]{1,0:T(8,128)}', space=vmem, size = 0x2000, scoped, tag = 'scratch operand']
  #allocation4 [shape = 'f32[16,128]{1,0:T(8,128)}', space=vmem, size = 0x2000, scoped, tag = 'scratch operand']
  %s0 = inlined_call_operand.vmem [shape: bf16[8,16,128], index: 0, kind: input, shape index: {}]
  %s1 = inlined_call_operand.hbm [shape: bf16[128,512], index: 1, kind: input, shape index: {}]
  %s2 = inlined_call_operand.hbm [shape: bf16[128,512], index: 2, kind: input, shape index: {}]
  %s3 = inlined_call_operand.vmem [shape: f32[1,512], index: 3, kind: input, shape index: {}]
  %s4 = inlined_call_operand.vmem [shape: bf16[8,16,128], index: 4, kind: output, shape index: {0}]
  %s5 = inlined_call_operand.vmem [shape: f32[16,128], index: 5, kind: output, shape index: {1}]
  %s6 = inlined_call_operand.vmem [shape: f32[16,128], index: 6, kind: output, shape index: {2}]
  %7 = xla_tuple %s4, %s5, %s6
  %s8 = sld [smem:[#allocation0]]
  $region58: #{lstm_encoder_forward.2} parent=0
    _
  %s10 = ssub.s32 1, %s8
  %s11 = scalar_select 0, %s10, %s8
  $region1: #{lstm_encoder_forward.2} parent=0
    #allocation5 [shape = 'u8[131072]{0}', space=vmem, size = 0x20000, scoped, tag = 'input window, operand 1, single buffered']
    #allocation6 [shape = 's32[1]{0}', space=sflag, size = 0x4, scoped, tag = 'scoped memory for lstm_encoder_forward.2']
    #allocation7 [shape = 'u8[131072]{0}', space=vmem, size = 0x20000, scoped, tag = 'input window, operand 2, single buffered']
    #allocation8 [shape = 's32[1]{0}', space=sflag, size = 0x4, scoped, tag = 'scoped memory for lstm_encoder_forward.2']
    %12 = vsyncpa [#allocation6], 0
    %13 = vsyncpa [#allocation8], 0
    // Predicated region
    $region2: #{lstm_encoder_forward.2} parent=1 // pred_check
      _
    $region3: #{lstm_encoder_forward.2} parent=1 // pred_check_branch
      %15 = sbr.rel (0) target = $region5
    $region4: #{lstm_encoder_forward.2} parent=1 // pred_region
      _
    $region5: #{lstm_encoder_forward.2} parent=1 // pred_fallthru
      _
    // Predicated region
    $region6: #{lstm_encoder_forward.2} parent=1 // pred_check
      _
    $region7: #{lstm_encoder_forward.2} parent=1 // pred_check_branch
      %17 = sbr.rel (0) target = $region9
    $region8: #{lstm_encoder_forward.2} parent=1 // pred_region
      %s19 = ssub.s32 4096, 4096
      %20 = vsyncadd [#allocation6], %s19
      %s21 = sshll.u32 [#allocation5], 4
      %s22 = int_to_ptr.vmem [resolvable:$true] %s21
      %27 = dma.hbm_to_vmem [thread:$0]  %s1, 4096, %s22, [#allocation6], 256, 256, 16
    $region9: #{lstm_encoder_forward.2} parent=1 // pred_fallthru
      _
    // Predicated region
    $region10: #{lstm_encoder_forward.2} parent=1 // pred_check
      _
    $region11: #{lstm_encoder_forward.2} parent=1 // pred_check_branch
      %29 = sbr.rel (0) target = $region13
    $region12: #{lstm_encoder_forward.2} parent=1 // pred_region
      %s31 = ssub.s32 4096, 4096
      %32 = vsyncadd [#allocation8], %s31
      %s33 = sshll.u32 [#allocation7], 4
      %s34 = int_to_ptr.vmem [resolvable:$true] %s33
      %39 = dma.hbm_to_vmem [thread:$0]  %s2, 4096, %s34, [#allocation8], 256, 256, 16
    $region13: #{lstm_encoder_forward.2} parent=1 // pred_fallthru
      _
    // Predicated region
    $region14: #{lstm_encoder_forward.2} parent=1 // pred_check
      _
    $region15: #{lstm_encoder_forward.2} parent=1 // pred_check_branch
      %41 = sbr.rel (0) target = $region17
    $region16: #{lstm_encoder_forward.2} parent=1 // pred_region
      _
    $region17: #{lstm_encoder_forward.2} parent=1 // pred_fallthru
      _
    // Predicated region
    $region18: #{lstm_encoder_forward.2} parent=1 // pred_check
      _
    $region19: #{lstm_encoder_forward.2} parent=1 // pred_check_branch
      %43 = sbr.rel (0) target = $region21
    $region20: #{lstm_encoder_forward.2} parent=1 // pred_region
      %44 = dma.done [#allocation6], 4096
    $region21: #{lstm_encoder_forward.2} parent=1 // pred_fallthru
      _
    // Predicated region
    $region22: #{lstm_encoder_forward.2} parent=1 // pred_check
      _
    $region23: #{lstm_encoder_forward.2} parent=1 // pred_check_branch
      %46 = sbr.rel (0) target = $region25
    $region24: #{lstm_encoder_forward.2} parent=1 // pred_region
      %47 = dma.done [#allocation8], 4096
    $region25: #{lstm_encoder_forward.2} parent=1 // pred_fallthru
      _
    %p49 = scmp.eq.s32.totalorder 0, 0
    // Predicated region
    $region26: #{lstm_encoder_forward.2} parent=1 // pred_check
      %p50 = pneg %p49
    $region27: #{lstm_encoder_forward.2} parent=1 // pred_check_branch
      %52 = sbr.rel (%p50) target = $region29
    $region28: #{lstm_encoder_forward.2} parent=1 // pred_region
      %53 = vst [vmem:[#allocation3] sm:$0xff] 0.0
      %54 = vst [vmem:[#allocation3 + $0x8] sm:$0xff] 0.0
      %55 = vst [vmem:[#allocation4] sm:$0xff] 0.0
      %56 = vst [vmem:[#allocation4 + $0x8] sm:$0xff] 0.0
    $region29: #{lstm_encoder_forward.2} parent=1 // pred_fallthru
      _
    %v57 = vld [vmem:[%s0] sm:$0xf]
    %v58 = vld [vmem:[%s0 + $0x4] sm:$0xf]
    %v59 = vld [vmem:[%s0 + $0x8] sm:$0xf]
    %v60 = vld [vmem:[%s0 + $0xc] sm:$0xf]
    %v61 = vld [vmem:[%s0 + $0x10] sm:$0xf]
    %v62 = vld [vmem:[%s0 + $0x14] sm:$0xf]
    %v63 = vld [vmem:[%s0 + $0x18] sm:$0xf]
    %v64 = vld [vmem:[%s0 + $0x1c] sm:$0xf]
    %v65 = vld [vmem:[%s0 + $0x20] sm:$0xf]
    %v66 = vld [vmem:[%s0 + $0x24] sm:$0xf]
    %v67 = vld [vmem:[%s0 + $0x28] sm:$0xf]
    %v68 = vld [vmem:[%s0 + $0x2c] sm:$0xf]
    %v69 = vld [vmem:[%s0 + $0x30] sm:$0xf]
    %v70 = vld [vmem:[%s0 + $0x34] sm:$0xf]
    %v71 = vld [vmem:[%s0 + $0x38] sm:$0xf]
    %v72 = vld [vmem:[%s0 + $0x3c] sm:$0xf]
    %v73 = vld [vmem:[#allocation5] sm:$0xff]
    %v74 = vld [vmem:[#allocation5 + $0x8] sm:$0xff]
    %v75 = vld [vmem:[#allocation5 + $0x10] sm:$0xff]
    %v76 = vld [vmem:[#allocation5 + $0x18] sm:$0xff]
    %v77 = vld [vmem:[#allocation5 + $0x20] sm:$0xff]
    %v78 = vld [vmem:[#allocation5 + $0x28] sm:$0xff]
    %v79 = vld [vmem:[#allocation5 + $0x30] sm:$0xff]
    %v80 = vld [vmem:[#allocation5 + $0x38] sm:$0xff]
    %v81 = vld [vmem:[#allocation5 + $0x40] sm:$0xff]
    %v82 = vld [vmem:[#allocation5 + $0x48] sm:$0xff]
    %v83 = vld [vmem:[#allocation5 + $0x50] sm:$0xff]
    %v84 = vld [vmem:[#allocation5 + $0x58] sm:$0xff]
    %v85 = vld [vmem:[#allocation5 + $0x60] sm:$0xff]
    %v86 = vld [vmem:[#allocation5 + $0x68] sm:$0xff]
    %v87 = vld [vmem:[#allocation5 + $0x70] sm:$0xff]
    %v88 = vld [vmem:[#allocation5 + $0x78] sm:$0xff]
    %v89 = vld [vmem:[#allocation5 + $0x80] sm:$0xff]
    %v90 = vld [vmem:[#allocation5 + $0x88] sm:$0xff]
    %v91 = vld [vmem:[#allocation5 + $0x90] sm:$0xff]
    %v92 = vld [vmem:[#allocation5 + $0x98] sm:$0xff]
    %v93 = vld [vmem:[#allocation5 + $0xa0] sm:$0xff]
    %v94 = vld [vmem:[#allocation5 + $0xa8] sm:$0xff]
    %v95 = vld [vmem:[#allocation5 + $0xb0] sm:$0xff]
    %v96 = vld [vmem:[#allocation5 + $0xb8] sm:$0xff]
    %v97 = vld [vmem:[#allocation5 + $0xc0] sm:$0xff]
    %v98 = vld [vmem:[#allocation5 + $0xc8] sm:$0xff]
    %v99 = vld [vmem:[#allocation5 + $0xd0] sm:$0xff]
    %v100 = vld [vmem:[#allocation5 + $0xd8] sm:$0xff]
    %v101 = vld [vmem:[#allocation5 + $0xe0] sm:$0xff]
    %v102 = vld [vmem:[#allocation5 + $0xe8] sm:$0xff]
    %v103 = vld [vmem:[#allocation5 + $0xf0] sm:$0xff]
    %v104 = vld [vmem:[#allocation5 + $0xf8] sm:$0xff]
    %v105 = vld [vmem:[%s3] sm:$0xf]
    %v107 = vlaneseq
    %v108 = vshrl.u32 %v107, 7
    %v109 = vsub.s32 0, %v108
    %v110 = vrot.slane %v105, %v109
    %v111 = vlaneseq
    %v112 = vshrl.u32 %v111, 7
    %v113 = vsub.s32 1, %v112
    %v114 = vrot.slane %v105, %v113
    %v115 = vlaneseq
    %v116 = vshrl.u32 %v115, 7
    %v117 = vsub.s32 2, %v116
    %v118 = vrot.slane %v105, %v117
    %v119 = vlaneseq
    %v120 = vshrl.u32 %v119, 7
    %v121 = vsub.s32 3, %v120
    %v122 = vrot.slane %v105, %v121
    %v143 = vunpack.c.l.b16 %v57
    %v144 = vunpack.c.l.b16 %v58
    %v145 = vunpack.c.l.b16 %v59
    %v146 = vunpack.c.l.b16 %v60
    %v147 = vunpack.c.l.b16 %v61
    %v148 = vunpack.c.l.b16 %v62
    %v149 = vunpack.c.l.b16 %v63
    %v150 = vunpack.c.l.b16 %v64
    %v151 = vunpack.c.l.b16 %v65
    %v152 = vunpack.c.l.b16 %v66
    %v153 = vunpack.c.l.b16 %v67
    %v154 = vunpack.c.l.b16 %v68
    %v155 = vunpack.c.l.b16 %v69
    %v156 = vunpack.c.l.b16 %v70
    %v157 = vunpack.c.l.b16 %v71
    %v158 = vunpack.c.l.b16 %v72
    %v159 = vpack.c.b16 %v144, %v143
    %v160 = vpack.c.b16 %v146, %v145
    %v161 = vpack.c.b16 %v148, %v147
    %v162 = vpack.c.b16 %v150, %v149
    %v163 = vpack.c.b16 %v152, %v151
    %v164 = vpack.c.b16 %v154, %v153
    %v165 = vpack.c.b16 %v156, %v155
    %v166 = vpack.c.b16 %v158, %v157
    %v207 = vunpack.c.l.b16 %v73
    %v208 = vunpack.c.h.b16 %v73
    %v209 = vunpack.c.l.b16 %v74
    %v210 = vunpack.c.h.b16 %v74
    %v211 = vunpack.c.l.b16 %v75
    %v212 = vunpack.c.h.b16 %v75
    %v213 = vunpack.c.l.b16 %v76
    %v214 = vunpack.c.h.b16 %v76
    %v215 = vunpack.c.l.b16 %v77
    %v216 = vunpack.c.h.b16 %v77
    %v217 = vunpack.c.l.b16 %v78
    %v218 = vunpack.c.h.b16 %v78
    %v219 = vunpack.c.l.b16 %v79
    %v220 = vunpack.c.h.b16 %v79
    %v221 = vunpack.c.l.b16 %v80
    %v222 = vunpack.c.h.b16 %v80
    %v223 = vunpack.c.l.b16 %v81
    %v224 = vunpack.c.h.b16 %v81
    %v225 = vunpack.c.l.b16 %v82
    %v226 = vunpack.c.h.b16 %v82
    %v227 = vunpack.c.l.b16 %v83
    %v228 = vunpack.c.h.b16 %v83
    %v229 = vunpack.c.l.b16 %v84
    %v230 = vunpack.c.h.b16 %v84
    %v231 = vunpack.c.l.b16 %v85
    %v232 = vunpack.c.h.b16 %v85
    %v233 = vunpack.c.l.b16 %v86
    %v234 = vunpack.c.h.b16 %v86
    %v235 = vunpack.c.l.b16 %v87
    %v236 = vunpack.c.h.b16 %v87
    %v237 = vunpack.c.l.b16 %v88
    %v238 = vunpack.c.h.b16 %v88
    %v239 = vunpack.c.l.b16 %v89
    %v240 = vunpack.c.h.b16 %v89
    %v241 = vunpack.c.l.b16 %v90
    %v242 = vunpack.c.h.b16 %v90
    %v243 = vunpack.c.l.b16 %v91
    %v244 = vunpack.c.h.b16 %v91
    %v245 = vunpack.c.l.b16 %v92
    %v246 = vunpack.c.h.b16 %v92
    %v247 = vunpack.c.l.b16 %v93
    %v248 = vunpack.c.h.b16 %v93
    %v249 = vunpack.c.l.b16 %v94
    %v250 = vunpack.c.h.b16 %v94
    %v251 = vunpack.c.l.b16 %v95
    %v252 = vunpack.c.h.b16 %v95
    %v253 = vunpack.c.l.b16 %v96
    %v254 = vunpack.c.h.b16 %v96
    %v255 = vunpack.c.l.b16 %v97
    %v256 = vunpack.c.h.b16 %v97
    %v257 = vunpack.c.l.b16 %v98
    %v258 = vunpack.c.h.b16 %v98
    %v259 = vunpack.c.l.b16 %v99
    %v260 = vunpack.c.h.b16 %v99
    %v261 = vunpack.c.l.b16 %v100
    %v262 = vunpack.c.h.b16 %v100
    %v263 = vunpack.c.l.b16 %v101
    %v264 = vunpack.c.h.b16 %v101
    %v265 = vunpack.c.l.b16 %v102
    %v266 = vunpack.c.h.b16 %v102
    %v267 = vunpack.c.l.b16 %v103
    %v268 = vunpack.c.h.b16 %v103
    %v269 = vunpack.c.l.b16 %v104
    %v270 = vunpack.c.h.b16 %v104
    %v271 = vpack.c.b16 %v211, %v207
    %v272 = vpack.c.b16 %v212, %v208
    %v273 = vpack.c.b16 %v213, %v209
    %v274 = vpack.c.b16 %v214, %v210
    %v275 = vpack.c.b16 %v219, %v215
    %v276 = vpack.c.b16 %v220, %v216
    %v277 = vpack.c.b16 %v221, %v217
    %v278 = vpack.c.b16 %v222, %v218
    %v279 = vpack.c.b16 %v227, %v223
    %v280 = vpack.c.b16 %v228, %v224
    %v281 = vpack.c.b16 %v229, %v225
    %v282 = vpack.c.b16 %v230, %v226
    %v283 = vpack.c.b16 %v235, %v231
    %v284 = vpack.c.b16 %v236, %v232
    %v285 = vpack.c.b16 %v237, %v233
    %v286 = vpack.c.b16 %v238, %v234
    %v287 = vpack.c.b16 %v243, %v239
    %v288 = vpack.c.b16 %v244, %v240
    %v289 = vpack.c.b16 %v245, %v241
    %v290 = vpack.c.b16 %v246, %v242
    %v291 = vpack.c.b16 %v251, %v247
    %v292 = vpack.c.b16 %v252, %v248
    %v293 = vpack.c.b16 %v253, %v249
    %v294 = vpack.c.b16 %v254, %v250
    %v295 = vpack.c.b16 %v259, %v255
    %v296 = vpack.c.b16 %v260, %v256
    %v297 = vpack.c.b16 %v261, %v257
    %v298 = vpack.c.b16 %v262, %v258
    %v299 = vpack.c.b16 %v267, %v263
    %v300 = vpack.c.b16 %v268, %v264
    %v301 = vpack.c.b16 %v269, %v265
    %v302 = vpack.c.b16 %v270, %v266
    %335 = vmatprep.subr.bf16.mxu0 %v272
    %336 = vmatpush1.bf16.msra.mxu0 %v271
    %337 = vmatprep.subr.bf16.mxu0 %v276
    %338 = vmatpush1.bf16.msra.mxu0 %v275
    %339 = vmatprep.subr.bf16.mxu0 %v280
    %340 = vmatpush1.bf16.msra.mxu0 %v279
    %341 = vmatprep.subr.bf16.mxu0 %v284
    %342 = vmatpush1.bf16.msra.mxu0 %v283
    %343 = vmatprep.subr.bf16.mxu0 %v288
    %344 = vmatpush1.bf16.msra.mxu0 %v287
    %345 = vmatprep.subr.bf16.mxu0 %v292
    %346 = vmatpush1.bf16.msra.mxu0 %v291
    %347 = vmatprep.subr.bf16.mxu0 %v296
    %348 = vmatpush1.bf16.msra.mxu0 %v295
    %349 = vmatprep.subr.bf16.mxu0 %v300
    %350 = vmatpush1.bf16.msra.mxu0 %v299
    %351 = vmatprep.subr.bf16.mxu0 0
    %352 = vmatpush1.bf16.msra.mxu0 0
    %353 = vmatprep.subr.bf16.mxu0 0
    %354 = vmatpush1.bf16.msra.mxu0 0
    %355 = vmatprep.subr.bf16.mxu0 0
    %356 = vmatpush1.bf16.msra.mxu0 0
    %357 = vmatprep.subr.bf16.mxu0 0
    %358 = vmatpush1.bf16.msra.mxu0 0
    %359 = vmatprep.subr.bf16.mxu0 0
    %360 = vmatpush1.bf16.msra.mxu0 0
    %361 = vmatprep.subr.bf16.mxu0 0
    %362 = vmatpush1.bf16.msra.mxu0 0
    %363 = vmatprep.subr.bf16.mxu0 0
    %364 = vmatpush1.bf16.msra.mxu0 0
    %365 = vmatprep.subr.bf16.mxu0 0
    %366 = vmatpush1.bf16.msra.mxu0 0
    %367 = vmatprep.mubr.bf16.mxu0 0
    %368 = vmatmul.mubr.bf16.gmra.mrb[0].mxu0 %v159
    %v369 = vpop.f32.mrb[0].mxu0
    %v370 = vadd.f32 %v110, %v369
    %v371 = vpop.f32.mrb[0].mxu0
    %v372 = vadd.f32 %v114, %v371
    %v373 = vpop.f32.mrb[0].mxu0
    %v374 = vadd.f32 %v110, %v373
    %v375 = vpop.f32.mrb[0].mxu0
    %v376 = vadd.f32 %v114, %v375
    %377 = vmatprep.mubr.bf16.mxu0 0
    %378 = vmatmul.mubr.bf16.gmra.mrb[0].mxu0 %v160
    %v379 = vpop.f32.mrb[0].mxu0
    %v380 = vadd.f32 %v110, %v379
    %v381 = vpop.f32.mrb[0].mxu0
    %v382 = vadd.f32 %v114, %v381
    %v383 = vpop.f32.mrb[0].mxu0
    %v384 = vadd.f32 %v110, %v383
    %v385 = vpop.f32.mrb[0].mxu0
    %v386 = vadd.f32 %v114, %v385
    %387 = vmatprep.mubr.bf16.mxu0 0
    %388 = vmatmul.mubr.bf16.gmra.mrb[0].mxu0 %v161
    %v389 = vpop.f32.mrb[0].mxu0
    %v390 = vadd.f32 %v110, %v389
    %v391 = vpop.f32.mrb[0].mxu0
    %v392 = vadd.f32 %v114, %v391
    %v393 = vpop.f32.mrb[0].mxu0
    %v394 = vadd.f32 %v110, %v393
    %v395 = vpop.f32.mrb[0].mxu0
    %v396 = vadd.f32 %v114, %v395
    %397 = vmatprep.mubr.bf16.mxu0 0
    %398 = vmatmul.mubr.bf16.gmra.mrb[0].mxu0 %v162
    %v399 = vpop.f32.mrb[0].mxu0
    %v400 = vadd.f32 %v110, %v399
    %v401 = vpop.f32.mrb[0].mxu0
    %v402 = vadd.f32 %v114, %v401
    %v403 = vpop.f32.mrb[0].mxu0
    %v404 = vadd.f32 %v110, %v403
    %v405 = vpop.f32.mrb[0].mxu0
    %v406 = vadd.f32 %v114, %v405
    %407 = vmatprep.mubr.bf16.mxu0 0
    %408 = vmatmul.mubr.bf16.gmra.mrb[0].mxu0 %v163
    %v409 = vpop.f32.mrb[0].mxu0
    %v410 = vadd.f32 %v110, %v409
    %v411 = vpop.f32.mrb[0].mxu0
    %v412 = vadd.f32 %v114, %v411
    %v413 = vpop.f32.mrb[0].mxu0
    %v414 = vadd.f32 %v110, %v413
    %v415 = vpop.f32.mrb[0].mxu0
    %v416 = vadd.f32 %v114, %v415
    %417 = vmatprep.mubr.bf16.mxu0 0
    %418 = vmatmul.mubr.bf16.gmra.mrb[0].mxu0 %v164
    %v419 = vpop.f32.mrb[0].mxu0
    %v420 = vadd.f32 %v110, %v419
    %v421 = vpop.f32.mrb[0].mxu0
    %v422 = vadd.f32 %v114, %v421
    %v423 = vpop.f32.mrb[0].mxu0
    %v424 = vadd.f32 %v110, %v423
    %v425 = vpop.f32.mrb[0].mxu0
    %v426 = vadd.f32 %v114, %v425
    %427 = vmatprep.mubr.bf16.mxu0 0
    %428 = vmatmul.mubr.bf16.gmra.mrb[0].mxu0 %v165
    %v429 = vpop.f32.mrb[0].mxu0
    %v430 = vadd.f32 %v110, %v429
    %v431 = vpop.f32.mrb[0].mxu0
    %v432 = vadd.f32 %v114, %v431
    %v433 = vpop.f32.mrb[0].mxu0
    %v434 = vadd.f32 %v110, %v433
    %v435 = vpop.f32.mrb[0].mxu0
    %v436 = vadd.f32 %v114, %v435
    %437 = vmatprep.mubr.bf16.mxu0 0
    %438 = vmatmul.mubr.bf16.gmra.mrb[0].mxu0 %v166
    %v439 = vpop.f32.mrb[0].mxu0
    %v440 = vadd.f32 %v110, %v439
    %v441 = vpop.f32.mrb[0].mxu0
    %v442 = vadd.f32 %v114, %v441
    %v443 = vpop.f32.mrb[0].mxu0
    %v444 = vadd.f32 %v110, %v443
    %v445 = vpop.f32.mrb[0].mxu0
    %v446 = vadd.f32 %v114, %v445
    %447 = vdwg.mxu0
    %448 = vmatprep.subr.bf16.mxu0 %v274
    %449 = vmatpush1.bf16.msra.mxu0 %v273
    %450 = vmatprep.subr.bf16.mxu0 %v278
    %451 = vmatpush1.bf16.msra.mxu0 %v277
    %452 = vmatprep.subr.bf16.mxu0 %v282
    %453 = vmatpush1.bf16.msra.mxu0 %v281
    %454 = vmatprep.subr.bf16.mxu0 %v286
    %455 = vmatpush1.bf16.msra.mxu0 %v285
    %456 = vmatprep.subr.bf16.mxu0 %v290
    %457 = vmatpush1.bf16.msra.mxu0 %v289
    %458 = vmatprep.subr.bf16.mxu0 %v294
    %459 = vmatpush1.bf16.msra.mxu0 %v293
    %460 = vmatprep.subr.bf16.mxu0 %v298
    %461 = vmatpush1.bf16.msra.mxu0 %v297
    %462 = vmatprep.subr.bf16.mxu0 %v302
    %463 = vmatpush1.bf16.msra.mxu0 %v301
    %464 = vmatprep.subr.bf16.mxu0 0
    %465 = vmatpush1.bf16.msra.mxu0 0
    %466 = vmatprep.subr.bf16.mxu0 0
    %467 = vmatpush1.bf16.msra.mxu0 0
    %468 = vmatprep.subr.bf16.mxu0 0
    %469 = vmatpush1.bf16.msra.mxu0 0
    %470 = vmatprep.subr.bf16.mxu0 0
    %471 = vmatpush1.bf16.msra.mxu0 0
    %472 = vmatprep.subr.bf16.mxu0 0
    %473 = vmatpush1.bf16.msra.mxu0 0
    %474 = vmatprep.subr.bf16.mxu0 0
    %475 = vmatpush1.bf16.msra.mxu0 0
    %476 = vmatprep.subr.bf16.mxu0 0
    %477 = vmatpush1.bf16.msra.mxu0 0
    %478 = vmatprep.subr.bf16.mxu0 0
    %479 = vmatpush1.bf16.msra.mxu0 0
    %480 = vmatprep.mubr.bf16.mxu0 0
    %481 = vmatmul.mubr.bf16.gmra.mrb[0].mxu0 %v159
    %v482 = vpop.f32.mrb[0].mxu0
    %v483 = vadd.f32 %v118, %v482
    %v484 = vpop.f32.mrb[0].mxu0
    %v485 = vadd.f32 %v122, %v484
    %v486 = vpop.f32.mrb[0].mxu0
    %v487 = vadd.f32 %v118, %v486
    %v488 = vpop.f32.mrb[0].mxu0
    %v489 = vadd.f32 %v122, %v488
    %490 = vmatprep.mubr.bf16.mxu0 0
    %491 = vmatmul.mubr.bf16.gmra.mrb[0].mxu0 %v160
    %v492 = vpop.f32.mrb[0].mxu0
    %v493 = vadd.f32 %v118, %v492
    %v494 = vpop.f32.mrb[0].mxu0
    %v495 = vadd.f32 %v122, %v494
    %v496 = vpop.f32.mrb[0].mxu0
    %v497 = vadd.f32 %v118, %v496
    %v498 = vpop.f32.mrb[0].mxu0
    %v499 = vadd.f32 %v122, %v498
    %500 = vmatprep.mubr.bf16.mxu0 0
    %501 = vmatmul.mubr.bf16.gmra.mrb[0].mxu0 %v161
    %v502 = vpop.f32.mrb[0].mxu0
    %v503 = vadd.f32 %v118, %v502
    %v504 = vpop.f32.mrb[0].mxu0
    %v505 = vadd.f32 %v122, %v504
    %v506 = vpop.f32.mrb[0].mxu0
    %v507 = vadd.f32 %v118, %v506
    %v508 = vpop.f32.mrb[0].mxu0
    %v509 = vadd.f32 %v122, %v508
    %510 = vmatprep.mubr.bf16.mxu0 0
    %511 = vmatmul.mubr.bf16.gmra.mrb[0].mxu0 %v162
    %v512 = vpop.f32.mrb[0].mxu0
    %v513 = vadd.f32 %v118, %v512
    %v514 = vpop.f32.mrb[0].mxu0
    %v515 = vadd.f32 %v122, %v514
    %v516 = vpop.f32.mrb[0].mxu0
    %v517 = vadd.f32 %v118, %v516
    %v518 = vpop.f32.mrb[0].mxu0
    %v519 = vadd.f32 %v122, %v518
    %520 = vmatprep.mubr.bf16.mxu0 0
    %521 = vmatmul.mubr.bf16.gmra.mrb[0].mxu0 %v163
    %v522 = vpop.f32.mrb[0].mxu0
    %v523 = vadd.f32 %v118, %v522
    %v524 = vpop.f32.mrb[0].mxu0
    %v525 = vadd.f32 %v122, %v524
    %v526 = vpop.f32.mrb[0].mxu0
    %v527 = vadd.f32 %v118, %v526
    %v528 = vpop.f32.mrb[0].mxu0
    %v529 = vadd.f32 %v122, %v528
    %530 = vmatprep.mubr.bf16.mxu0 0
    %531 = vmatmul.mubr.bf16.gmra.mrb[0].mxu0 %v164
    %v532 = vpop.f32.mrb[0].mxu0
    %v533 = vadd.f32 %v118, %v532
    %v534 = vpop.f32.mrb[0].mxu0
    %v535 = vadd.f32 %v122, %v534
    %v536 = vpop.f32.mrb[0].mxu0
    %v537 = vadd.f32 %v118, %v536
    %v538 = vpop.f32.mrb[0].mxu0
    %v539 = vadd.f32 %v122, %v538
    %540 = vmatprep.mubr.bf16.mxu0 0
    %541 = vmatmul.mubr.bf16.gmra.mrb[0].mxu0 %v165
    %v542 = vpop.f32.mrb[0].mxu0
    %v543 = vadd.f32 %v118, %v542
    %v544 = vpop.f32.mrb[0].mxu0
    %v545 = vadd.f32 %v122, %v544
    %v546 = vpop.f32.mrb[0].mxu0
    %v547 = vadd.f32 %v118, %v546
    %v548 = vpop.f32.mrb[0].mxu0
    %v549 = vadd.f32 %v122, %v548
    %550 = vmatprep.mubr.bf16.mxu0 0
    %551 = vmatmul.mubr.bf16.gmra.mrb[0].mxu0 %v166
    %v552 = vpop.f32.mrb[0].mxu0
    %v553 = vadd.f32 %v118, %v552
    %v554 = vpop.f32.mrb[0].mxu0
    %v555 = vadd.f32 %v122, %v554
    %v556 = vpop.f32.mrb[0].mxu0
    %v557 = vadd.f32 %v118, %v556
    %v558 = vpop.f32.mrb[0].mxu0
    %v559 = vadd.f32 %v122, %v558
    %560 = vdwg.mxu0
    %561 = vst [vmem:[#allocation2] sm:$0xff] %v370
    %562 = vst [vmem:[#allocation2 + $0x8] sm:$0xff] %v372
    %563 = vst [vmem:[#allocation2 + $0x10] sm:$0xff] %v483
    %564 = vst [vmem:[#allocation2 + $0x18] sm:$0xff] %v485
    %565 = vst [vmem:[#allocation2 + $0x20] sm:$0xff] %v374
    %566 = vst [vmem:[#allocation2 + $0x28] sm:$0xff] %v376
    %567 = vst [vmem:[#allocation2 + $0x30] sm:$0xff] %v487
    %568 = vst [vmem:[#allocation2 + $0x38] sm:$0xff] %v489
    %569 = vst [vmem:[#allocation2 + $0x40] sm:$0xff] %v380
    %570 = vst [vmem:[#allocation2 + $0x48] sm:$0xff] %v382
    %571 = vst [vmem:[#allocation2 + $0x50] sm:$0xff] %v493
    %572 = vst [vmem:[#allocation2 + $0x58] sm:$0xff] %v495
    %573 = vst [vmem:[#allocation2 + $0x60] sm:$0xff] %v384
    %574 = vst [vmem:[#allocation2 + $0x68] sm:$0xff] %v386
    %575 = vst [vmem:[#allocation2 + $0x70] sm:$0xff] %v497
    %576 = vst [vmem:[#allocation2 + $0x78] sm:$0xff] %v499
    %577 = vst [vmem:[#allocation2 + $0x80] sm:$0xff] %v390
    %578 = vst [vmem:[#allocation2 + $0x88] sm:$0xff] %v392
    %579 = vst [vmem:[#allocation2 + $0x90] sm:$0xff] %v503
    %580 = vst [vmem:[#allocation2 + $0x98] sm:$0xff] %v505
    %581 = vst [vmem:[#allocation2 + $0xa0] sm:$0xff] %v394
    %582 = vst [vmem:[#allocation2 + $0xa8] sm:$0xff] %v396
    %583 = vst [vmem:[#allocation2 + $0xb0] sm:$0xff] %v507
    %584 = vst [vmem:[#allocation2 + $0xb8] sm:$0xff] %v509
    %585 = vst [vmem:[#allocation2 + $0xc0] sm:$0xff] %v400
    %586 = vst [vmem:[#allocation2 + $0xc8] sm:$0xff] %v402
    %587 = vst [vmem:[#allocation2 + $0xd0] sm:$0xff] %v513
    %588 = vst [vmem:[#allocation2 + $0xd8] sm:$0xff] %v515
    %589 = vst [vmem:[#allocation2 + $0xe0] sm:$0xff] %v404
    %590 = vst [vmem:[#allocation2 + $0xe8] sm:$0xff] %v406
    %591 = vst [vmem:[#allocation2 + $0xf0] sm:$0xff] %v517
    %592 = vst [vmem:[#allocation2 + $0xf8] sm:$0xff] %v519
    %593 = vst [vmem:[#allocation2 + $0x100] sm:$0xff] %v410
    %594 = vst [vmem:[#allocation2 + $0x108] sm:$0xff] %v412
    %595 = vst [vmem:[#allocation2 + $0x110] sm:$0xff] %v523
    %596 = vst [vmem:[#allocation2 + $0x118] sm:$0xff] %v525
    %597 = vst [vmem:[#allocation2 + $0x120] sm:$0xff] %v414
    %598 = vst [vmem:[#allocation2 + $0x128] sm:$0xff] %v416
    %599 = vst [vmem:[#allocation2 + $0x130] sm:$0xff] %v527
    %600 = vst [vmem:[#allocation2 + $0x138] sm:$0xff] %v529
    %601 = vst [vmem:[#allocation2 + $0x140] sm:$0xff] %v420
    %602 = vst [vmem:[#allocation2 + $0x148] sm:$0xff] %v422
    %603 = vst [vmem:[#allocation2 + $0x150] sm:$0xff] %v533
    %604 = vst [vmem:[#allocation2 + $0x158] sm:$0xff] %v535
    %605 = vst [vmem:[#allocation2 + $0x160] sm:$0xff] %v424
    %606 = vst [vmem:[#allocation2 + $0x168] sm:$0xff] %v426
    %607 = vst [vmem:[#allocation2 + $0x170] sm:$0xff] %v537
    %608 = vst [vmem:[#allocation2 + $0x178] sm:$0xff] %v539
    %609 = vst [vmem:[#allocation2 + $0x180] sm:$0xff] %v430
    %610 = vst [vmem:[#allocation2 + $0x188] sm:$0xff] %v432
    %611 = vst [vmem:[#allocation2 + $0x190] sm:$0xff] %v543
    %612 = vst [vmem:[#allocation2 + $0x198] sm:$0xff] %v545
    %613 = vst [vmem:[#allocation2 + $0x1a0] sm:$0xff] %v434
    %614 = vst [vmem:[#allocation2 + $0x1a8] sm:$0xff] %v436
    %615 = vst [vmem:[#allocation2 + $0x1b0] sm:$0xff] %v547
    %616 = vst [vmem:[#allocation2 + $0x1b8] sm:$0xff] %v549
    %617 = vst [vmem:[#allocation2 + $0x1c0] sm:$0xff] %v440
    %618 = vst [vmem:[#allocation2 + $0x1c8] sm:$0xff] %v442
    %619 = vst [vmem:[#allocation2 + $0x1d0] sm:$0xff] %v553
    %620 = vst [vmem:[#allocation2 + $0x1d8] sm:$0xff] %v555
    %621 = vst [vmem:[#allocation2 + $0x1e0] sm:$0xff] %v444
    %622 = vst [vmem:[#allocation2 + $0x1e8] sm:$0xff] %v446
    %623 = vst [vmem:[#allocation2 + $0x1f0] sm:$0xff] %v557
    %624 = vst [vmem:[#allocation2 + $0x1f8] sm:$0xff] %v559
    %v625 = vld [vmem:[#allocation7] sm:$0xff]
    %v626 = vld [vmem:[#allocation7 + $0x8] sm:$0xff]
    %v627 = vld [vmem:[#allocation7 + $0x10] sm:$0xff]
    %v628 = vld [vmem:[#allocation7 + $0x18] sm:$0xff]
    %v629 = vld [vmem:[#allocation7 + $0x20] sm:$0xff]
    %v630 = vld [vmem:[#allocation7 + $0x28] sm:$0xff]
    %v631 = vld [vmem:[#allocation7 + $0x30] sm:$0xff]
    %v632 = vld [vmem:[#allocation7 + $0x38] sm:$0xff]
    %v633 = vld [vmem:[#allocation7 + $0x40] sm:$0xff]
    %v634 = vld [vmem:[#allocation7 + $0x48] sm:$0xff]
    %v635 = vld [vmem:[#allocation7 + $0x50] sm:$0xff]
    %v636 = vld [vmem:[#allocation7 + $0x58] sm:$0xff]
    %v637 = vld [vmem:[#allocation7 + $0x60] sm:$0xff]
    %v638 = vld [vmem:[#allocation7 + $0x68] sm:$0xff]
    %v639 = vld [vmem:[#allocation7 + $0x70] sm:$0xff]
    %v640 = vld [vmem:[#allocation7 + $0x78] sm:$0xff]
    %v641 = vld [vmem:[#allocation7 + $0x80] sm:$0xff]
    %v642 = vld [vmem:[#allocation7 + $0x88] sm:$0xff]
    %v643 = vld [vmem:[#allocation7 + $0x90] sm:$0xff]
    %v644 = vld [vmem:[#allocation7 + $0x98] sm:$0xff]
    %v645 = vld [vmem:[#allocation7 + $0xa0] sm:$0xff]
    %v646 = vld [vmem:[#allocation7 + $0xa8] sm:$0xff]
    %v647 = vld [vmem:[#allocation7 + $0xb0] sm:$0xff]
    %v648 = vld [vmem:[#allocation7 + $0xb8] sm:$0xff]
    %v649 = vld [vmem:[#allocation7 + $0xc0] sm:$0xff]
    %v650 = vld [vmem:[#allocation7 + $0xc8] sm:$0xff]
    %v651 = vld [vmem:[#allocation7 + $0xd0] sm:$0xff]
    %v652 = vld [vmem:[#allocation7 + $0xd8] sm:$0xff]
    %v653 = vld [vmem:[#allocation7 + $0xe0] sm:$0xff]
    %v654 = vld [vmem:[#allocation7 + $0xe8] sm:$0xff]
    %v655 = vld [vmem:[#allocation7 + $0xf0] sm:$0xff]
    %v656 = vld [vmem:[#allocation7 + $0xf8] sm:$0xff]
    %v657 = vld [vmem:[#allocation3] sm:$0xff]
    %v658 = vld [vmem:[#allocation3 + $0x8] sm:$0xff]
    %v659 = vld [vmem:[#allocation4] sm:$0xff]
    %v660 = vld [vmem:[#allocation4 + $0x8] sm:$0xff]
    %v661 = vld [vmem:[#allocation2] sm:$0xff]
    %v662 = vld [vmem:[#allocation2 + $0x8] sm:$0xff]
    %v663 = vld [vmem:[#allocation2 + $0x10] sm:$0xff]
    %v664 = vld [vmem:[#allocation2 + $0x18] sm:$0xff]
    %v665 = vld [vmem:[#allocation2 + $0x20] sm:$0xff]
    %v666 = vld [vmem:[#allocation2 + $0x28] sm:$0xff]
    %v667 = vld [vmem:[#allocation2 + $0x30] sm:$0xff]
    %v668 = vld [vmem:[#allocation2 + $0x38] sm:$0xff]
    %v669 = vpack.c.bf16 %v658, %v657
    %v702 = vunpack.c.l.b16 %v625
    %v703 = vunpack.c.h.b16 %v625
    %v704 = vunpack.c.l.b16 %v626
    %v705 = vunpack.c.h.b16 %v626
    %v706 = vunpack.c.l.b16 %v627
    %v707 = vunpack.c.h.b16 %v627
    %v708 = vunpack.c.l.b16 %v628
    %v709 = vunpack.c.h.b16 %v628
    %v710 = vunpack.c.l.b16 %v629
    %v711 = vunpack.c.h.b16 %v629
    %v712 = vunpack.c.l.b16 %v630
    %v713 = vunpack.c.h.b16 %v630
    %v714 = vunpack.c.l.b16 %v631
    %v715 = vunpack.c.h.b16 %v631
    %v716 = vunpack.c.l.b16 %v632
    %v717 = vunpack.c.h.b16 %v632
    %v718 = vunpack.c.l.b16 %v633
    %v719 = vunpack.c.h.b16 %v633
    %v720 = vunpack.c.l.b16 %v634
    %v721 = vunpack.c.h.b16 %v634
    %v722 = vunpack.c.l.b16 %v635
    %v723 = vunpack.c.h.b16 %v635
    %v724 = vunpack.c.l.b16 %v636
    %v725 = vunpack.c.h.b16 %v636
    %v726 = vunpack.c.l.b16 %v637
    %v727 = vunpack.c.h.b16 %v637
    %v728 = vunpack.c.l.b16 %v638
    %v729 = vunpack.c.h.b16 %v638
    %v730 = vunpack.c.l.b16 %v639
    %v731 = vunpack.c.h.b16 %v639
    %v732 = vunpack.c.l.b16 %v640
    %v733 = vunpack.c.h.b16 %v640
    %v734 = vunpack.c.l.b16 %v641
    %v735 = vunpack.c.h.b16 %v641
    %v736 = vunpack.c.l.b16 %v642
    %v737 = vunpack.c.h.b16 %v642
    %v738 = vunpack.c.l.b16 %v643
    %v739 = vunpack.c.h.b16 %v643
    %v740 = vunpack.c.l.b16 %v644
    %v741 = vunpack.c.h.b16 %v644
    %v742 = vunpack.c.l.b16 %v645
    %v743 = vunpack.c.h.b16 %v645
    %v744 = vunpack.c.l.b16 %v646
    %v745 = vunpack.c.h.b16 %v646
    %v746 = vunpack.c.l.b16 %v647
    %v747 = vunpack.c.h.b16 %v647
    %v748 = vunpack.c.l.b16 %v648
    %v749 = vunpack.c.h.b16 %v648
    %v750 = vunpack.c.l.b16 %v649
    %v751 = vunpack.c.h.b16 %v649
    %v752 = vunpack.c.l.b16 %v650
    %v753 = vunpack.c.h.b16 %v650
    %v754 = vunpack.c.l.b16 %v651
    %v755 = vunpack.c.h.b16 %v651
    %v756 = vunpack.c.l.b16 %v652
    %v757 = vunpack.c.h.b16 %v652
    %v758 = vunpack.c.l.b16 %v653
    %v759 = vunpack.c.h.b16 %v653
    %v760 = vunpack.c.l.b16 %v654
    %v761 = vunpack.c.h.b16 %v654
    %v762 = vunpack.c.l.b16 %v655
    %v763 = vunpack.c.h.b16 %v655
    %v764 = vunpack.c.l.b16 %v656
    %v765 = vunpack.c.h.b16 %v656
    %v766 = vpack.c.b16 %v706, %v702
    %v767 = vpack.c.b16 %v707, %v703
    %v768 = vpack.c.b16 %v708, %v704
    %v769 = vpack.c.b16 %v709, %v705
    %v770 = vpack.c.b16 %v714, %v710
    %v771 = vpack.c.b16 %v715, %v711
    %v772 = vpack.c.b16 %v716, %v712
    %v773 = vpack.c.b16 %v717, %v713
    %v774 = vpack.c.b16 %v722, %v718
    %v775 = vpack.c.b16 %v723, %v719
    %v776 = vpack.c.b16 %v724, %v720
    %v777 = vpack.c.b16 %v725, %v721
    %v778 = vpack.c.b16 %v730, %v726
    %v779 = vpack.c.b16 %v731, %v727
    %v780 = vpack.c.b16 %v732, %v728
    %v781 = vpack.c.b16 %v733, %v729
    %v782 = vpack.c.b16 %v738, %v734
    %v783 = vpack.c.b16 %v739, %v735
    %v784 = vpack.c.b16 %v740, %v736
    %v785 = vpack.c.b16 %v741, %v737
    %v786 = vpack.c.b16 %v746, %v742
    %v787 = vpack.c.b16 %v747, %v743
    %v788 = vpack.c.b16 %v748, %v744
    %v789 = vpack.c.b16 %v749, %v745
    %v790 = vpack.c.b16 %v754, %v750
    %v791 = vpack.c.b16 %v755, %v751
    %v792 = vpack.c.b16 %v756, %v752
    %v793 = vpack.c.b16 %v757, %v753
    %v794 = vpack.c.b16 %v762, %v758
    %v795 = vpack.c.b16 %v763, %v759
    %v796 = vpack.c.b16 %v764, %v760
    %v797 = vpack.c.b16 %v765, %v761
    %830 = vmatprep.subr.bf16.mxu0 %v767
    %831 = vmatpush1.bf16.msra.mxu0 %v766
    %832 = vmatprep.subr.bf16.mxu0 %v771
    %833 = vmatpush1.bf16.msra.mxu0 %v770
    %834 = vmatprep.subr.bf16.mxu0 %v775
    %835 = vmatpush1.bf16.msra.mxu0 %v774
    %836 = vmatprep.subr.bf16.mxu0 %v779
    %837 = vmatpush1.bf16.msra.mxu0 %v778
    %838 = vmatprep.subr.bf16.mxu0 %v783
    %839 = vmatpush1.bf16.msra.mxu0 %v782
    %840 = vmatprep.subr.bf16.mxu0 %v787
    %841 = vmatpush1.bf16.msra.mxu0 %v786
    %842 = vmatprep.subr.bf16.mxu0 %v791
    %843 = vmatpush1.bf16.msra.mxu0 %v790
    %844 = vmatprep.subr.bf16.mxu0 %v795
    %845 = vmatpush1.bf16.msra.mxu0 %v794
    %846 = vmatprep.subr.bf16.mxu0 0
    %847 = vmatpush1.bf16.msra.mxu0 0
    %848 = vmatprep.subr.bf16.mxu0 0
    %849 = vmatpush1.bf16.msra.mxu0 0
    %850 = vmatprep.subr.bf16.mxu0 0
    %851 = vmatpush1.bf16.msra.mxu0 0
    %852 = vmatprep.subr.bf16.mxu0 0
    %853 = vmatpush1.bf16.msra.mxu0 0
    %854 = vmatprep.subr.bf16.mxu0 0
    %855 = vmatpush1.bf16.msra.mxu0 0
    %856 = vmatprep.subr.bf16.mxu0 0
    %857 = vmatpush1.bf16.msra.mxu0 0
    %858 = vmatprep.subr.bf16.mxu0 0
    %859 = vmatpush1.bf16.msra.mxu0 0
    %860 = vmatprep.subr.bf16.mxu0 0
    %861 = vmatpush1.bf16.msra.mxu0 0
    %862 = vmatprep.mubr.bf16.mxu0 0
    %863 = vmatmul.mubr.bf16.gmra.mrb[0].mxu0 %v669
    %v864 = vpop.f32.mrb[0].mxu0
    %v865 = vadd.f32 0.0, %v864
    %v866 = vpop.f32.mrb[0].mxu0
    %v867 = vadd.f32 0.0, %v866
    %v868 = vpop.f32.mrb[0].mxu0
    %v869 = vadd.f32 0.0, %v868
    %v870 = vpop.f32.mrb[0].mxu0
    %v871 = vadd.f32 0.0, %v870
    %872 = vdwg.mxu0
    %873 = vmatprep.subr.bf16.mxu0 %v769
    %874 = vmatpush1.bf16.msra.mxu0 %v768
    %875 = vmatprep.subr.bf16.mxu0 %v773
    %876 = vmatpush1.bf16.msra.mxu0 %v772
    %877 = vmatprep.subr.bf16.mxu0 %v777
    %878 = vmatpush1.bf16.msra.mxu0 %v776
    %879 = vmatprep.subr.bf16.mxu0 %v781
    %880 = vmatpush1.bf16.msra.mxu0 %v780
    %881 = vmatprep.subr.bf16.mxu0 %v785
    %882 = vmatpush1.bf16.msra.mxu0 %v784
    %883 = vmatprep.subr.bf16.mxu0 %v789
    %884 = vmatpush1.bf16.msra.mxu0 %v788
    %885 = vmatprep.subr.bf16.mxu0 %v793
    %886 = vmatpush1.bf16.msra.mxu0 %v792
    %887 = vmatprep.subr.bf16.mxu0 %v797
    %888 = vmatpush1.bf16.msra.mxu0 %v796
    %889 = vmatprep.subr.bf16.mxu0 0
    %890 = vmatpush1.bf16.msra.mxu0 0
    %891 = vmatprep.subr.bf16.mxu0 0
    %892 = vmatpush1.bf16.msra.mxu0 0
    %893 = vmatprep.subr.bf16.mxu0 0
    %894 = vmatpush1.bf16.msra.mxu0 0
    %895 = vmatprep.subr.bf16.mxu0 0
    %896 = vmatpush1.bf16.msra.mxu0 0
    %897 = vmatprep.subr.bf16.mxu0 0
    %898 = vmatpush1.bf16.msra.mxu0 0
    %899 = vmatprep.subr.bf16.mxu0 0
    %900 = vmatpush1.bf16.msra.mxu0 0
    %901 = vmatprep.subr.bf16.mxu0 0
    %902 = vmatpush1.bf16.msra.mxu0 0
    %903 = vmatprep.subr.bf16.mxu0 0
    %904 = vmatpush1.bf16.msra.mxu0 0
    %905 = vmatprep.mubr.bf16.mxu0 0
    %906 = vmatmul.mubr.bf16.gmra.mrb[0].mxu0 %v669
    %v907 = vpop.f32.mrb[0].mxu0
    %v908 = vadd.f32 0.0, %v907
    %v909 = vpop.f32.mrb[0].mxu0
    %v910 = vadd.f32 0.0, %v909
    %v911 = vpop.f32.mrb[0].mxu0
    %v912 = vadd.f32 0.0, %v911
    %v913 = vpop.f32.mrb[0].mxu0
    %v914 = vadd.f32 0.0, %v913
    %915 = vdwg.mxu0
    %v916 = vadd.f32 %v661, %v865
    %v917 = vadd.f32 %v662, %v867
    %v918 = vadd.f32 %v663, %v908
    %v919 = vadd.f32 %v664, %v910
    %v920 = vadd.f32 %v665, %v869
    %v921 = vadd.f32 %v666, %v871
    %v922 = vadd.f32 %v667, %v912
    %v923 = vadd.f32 %v668, %v914
    %v924 = vmul.f32 %v916, 0.5
    %v925 = vmul.f32 %v917, 0.5
    %v926 = vmul.f32 %v918, 0.5
    %v927 = vmul.f32 %v920, 0.5
    %v928 = vmul.f32 %v921, 0.5
    %v929 = vmul.f32 %v922, 0.5
    %v930 = vtanh.pop %v924
    %v931 = vtanh.pop %v925
    %v932 = vtanh.pop %v926
    %v933 = vtanh.pop %v927
    %v934 = vtanh.pop %v928
    %v935 = vtanh.pop %v929
    %v936 = vmul.f32 %v930, 0.5
    %v937 = vmul.f32 %v933, 0.5
    %v938 = vadd.f32 %v936, 0.5
    %v939 = vadd.f32 %v937, 0.5
    %v940 = vmul.f32 %v931, 0.5
    %v941 = vmul.f32 %v934, 0.5
    %v942 = vadd.f32 %v940, 0.5
    %v943 = vadd.f32 %v941, 0.5
    %v944 = vmul.f32 %v932, 0.5
    %v945 = vmul.f32 %v935, 0.5
    %v946 = vadd.f32 %v944, 0.5
    %v947 = vadd.f32 %v945, 0.5
    %v948 = vtanh.pop %v919
    %v949 = vtanh.pop %v923
    %v950 = vmul.f32 %v942, %v659
    %v951 = vmul.f32 %v943, %v660
    %v952 = vmul.f32 %v938, %v948
    %v953 = vmul.f32 %v939, %v949
    %v954 = vadd.f32 %v950, %v952
    %v955 = vadd.f32 %v951, %v953
    %v956 = vtanh.pop %v954
    %v957 = vtanh.pop %v955
    %v958 = vmul.f32 %v946, %v956
    %v959 = vmul.f32 %v947, %v957
    %v960 = vpack.c.bf16 %v959, %v958
    %v962 = vunpack.c.l.b16 %v960
    %v963 = vunpack.c.h.b16 %v960
    %v964 = vpack.c.b16 %v962, %v962
    %v965 = vpack.c.b16 %v963, %v963
    %968 = vst [vmem:[%s4] sm:$0xf] %v964
    %969 = vst [vmem:[%s4 + $0x4] sm:$0xf] %v965
    %s970 = scalar_lea.vmem [#allocation2], 64
    %v971 = vld [vmem:[%s970] sm:$0xff]
    %v972 = vld [vmem:[%s970 + $0x8] sm:$0xff]
    %v973 = vld [vmem:[%s970 + $0x10] sm:$0xff]
    %v974 = vld [vmem:[%s970 + $0x18] sm:$0xff]
    %v975 = vld [vmem:[%s970 + $0x20] sm:$0xff]
    %v976 = vld [vmem:[%s970 + $0x28] sm:$0xff]
    %v977 = vld [vmem:[%s970 + $0x30] sm:$0xff]
    %v978 = vld [vmem:[%s970 + $0x38] sm:$0xff]
    %979 = vmatprep.subr.bf16.mxu0 %v767
    %980 = vmatpush1.bf16.msra.mxu0 %v766
    %981 = vmatprep.subr.bf16.mxu0 %v771
    %982 = vmatpush1.bf16.msra.mxu0 %v770
    %983 = vmatprep.subr.bf16.mxu0 %v775
    %984 = vmatpush1.bf16.msra.mxu0 %v774
    %985 = vmatprep.subr.bf16.mxu0 %v779
    %986 = vmatpush1.bf16.msra.mxu0 %v778
    %987 = vmatprep.subr.bf16.mxu0 %v783
    %988 = vmatpush1.bf16.msra.mxu0 %v782
    %989 = vmatprep.subr.bf16.mxu0 %v787
    %990 = vmatpush1.bf16.msra.mxu0 %v786
    %991 = vmatprep.subr.bf16.mxu0 %v791
    %992 = vmatpush1.bf16.msra.mxu0 %v790
    %993 = vmatprep.subr.bf16.mxu0 %v795
    %994 = vmatpush1.bf16.msra.mxu0 %v794
    %995 = vmatprep.subr.bf16.mxu0 0
    %996 = vmatpush1.bf16.msra.mxu0 0
    %997 = vmatprep.subr.bf16.mxu0 0
    %998 = vmatpush1.bf16.msra.mxu0 0
    %999 = vmatprep.subr.bf16.mxu0 0
    %1000 = vmatpush1.bf16.msra.mxu0 0
    %1001 = vmatprep.subr.bf16.mxu0 0
    %1002 = vmatpush1.bf16.msra.mxu0 0
    %1003 = vmatprep.subr.bf16.mxu0 0
    %1004 = vmatpush1.bf16.msra.mxu0 0
    %1005 = vmatprep.subr.bf16.mxu0 0
    %1006 = vmatpush1.bf16.msra.mxu0 0
    %1007 = vmatprep.subr.bf16.mxu0 0
    %1008 = vmatpush1.bf16.msra.mxu0 0
    %1009 = vmatprep.subr.bf16.mxu0 0
    %1010 = vmatpush1.bf16.msra.mxu0 0
    %1011 = vmatprep.mubr.bf16.mxu0 0
    %1012 = vmatmul.mubr.bf16.gmra.mrb[0].mxu0 %v960
    %v1013 = vpop.f32.mrb[0].mxu0
    %v1014 = vadd.f32 0.0, %v1013
    %v1015 = vpop.f32.mrb[0].mxu0
    %v1016 = vadd.f32 0.0, %v1015
    %v1017 = vpop.f32.mrb[0].mxu0
    %v1018 = vadd.f32 0.0, %v1017
    %v1019 = vpop.f32.mrb[0].mxu0
    %v1020 = vadd.f32 0.0, %v1019
    %1021 = vdwg.mxu0
    %1022 = vmatprep.subr.bf16.mxu0 %v769
    %1023 = vmatpush1.bf16.msra.mxu0 %v768
    %1024 = vmatprep.subr.bf16.mxu0 %v773
    %1025 = vmatpush1.bf16.msra.mxu0 %v772
    %1026 = vmatprep.subr.bf16.mxu0 %v777
    %1027 = vmatpush1.bf16.msra.mxu0 %v776
    %1028 = vmatprep.subr.bf16.mxu0 %v781
    %1029 = vmatpush1.bf16.msra.mxu0 %v780
    %1030 = vmatprep.subr.bf16.mxu0 %v785
    %1031 = vmatpush1.bf16.msra.mxu0 %v784
    %1032 = vmatprep.subr.bf16.mxu0 %v789
    %1033 = vmatpush1.bf16.msra.mxu0 %v788
    %1034 = vmatprep.subr.bf16.mxu0 %v793
    %1035 = vmatpush1.bf16.msra.mxu0 %v792
    %1036 = vmatprep.subr.bf16.mxu0 %v797
    %1037 = vmatpush1.bf16.msra.mxu0 %v796
    %1038 = vmatprep.subr.bf16.mxu0 0
    %1039 = vmatpush1.bf16.msra.mxu0 0
    %1040 = vmatprep.subr.bf16.mxu0 0
    %1041 = vmatpush1.bf16.msra.mxu0 0
    %1042 = vmatprep.subr.bf16.mxu0 0
    %1043 = vmatpush1.bf16.msra.mxu0 0
    %1044 = vmatprep.subr.bf16.mxu0 0
    %1045 = vmatpush1.bf16.msra.mxu0 0
    %1046 = vmatprep.subr.bf16.mxu0 0
    %1047 = vmatpush1.bf16.msra.mxu0 0
    %1048 = vmatprep.subr.bf16.mxu0 0
    %1049 = vmatpush1.bf16.msra.mxu0 0
    %1050 = vmatprep.subr.bf16.mxu0 0
    %1051 = vmatpush1.bf16.msra.mxu0 0
    %1052 = vmatprep.subr.bf16.mxu0 0
    %1053 = vmatpush1.bf16.msra.mxu0 0
    %1054 = vmatprep.mubr.bf16.mxu0 0
    %1055 = vmatmul.mubr.bf16.gmra.mrb[0].mxu0 %v960
    %v1056 = vpop.f32.mrb[0].mxu0
    %v1057 = vadd.f32 0.0, %v1056
    %v1058 = vpop.f32.mrb[0].mxu0
    %v1059 = vadd.f32 0.0, %v1058
    %v1060 = vpop.f32.mrb[0].mxu0
    %v1061 = vadd.f32 0.0, %v1060
    %v1062 = vpop.f32.mrb[0].mxu0
    %v1063 = vadd.f32 0.0, %v1062
    %1064 = vdwg.mxu0
    %v1065 = vadd.f32 %v971, %v1014
    %v1066 = vadd.f32 %v972, %v1016
    %v1067 = vadd.f32 %v973, %v1057
    %v1068 = vadd.f32 %v974, %v1059
    %v1069 = vadd.f32 %v975, %v1018
    %v1070 = vadd.f32 %v976, %v1020
    %v1071 = vadd.f32 %v977, %v1061
    %v1072 = vadd.f32 %v978, %v1063
    %v1073 = vmul.f32 %v1065, 0.5
    %v1074 = vmul.f32 %v1066, 0.5
    %v1075 = vmul.f32 %v1067, 0.5
    %v1076 = vmul.f32 %v1069, 0.5
    %v1077 = vmul.f32 %v1070, 0.5
    %v1078 = vmul.f32 %v1071, 0.5
    %v1079 = vtanh.pop %v1073
    %v1080 = vtanh.pop %v1074
    %v1081 = vtanh.pop %v1075
    %v1082 = vtanh.pop %v1076
    %v1083 = vtanh.pop %v1077
    %v1084 = vtanh.pop %v1078
    %v1085 = vmul.f32 %v1079, 0.5
    %v1086 = vmul.f32 %v1082, 0.5
    %v1087 = vadd.f32 %v1085, 0.5
    %v1088 = vadd.f32 %v1086, 0.5
    %v1089 = vmul.f32 %v1080, 0.5
    %v1090 = vmul.f32 %v1083, 0.5
    %v1091 = vadd.f32 %v1089, 0.5
    %v1092 = vadd.f32 %v1090, 0.5
    %v1093 = vmul.f32 %v1081, 0.5
    %v1094 = vmul.f32 %v1084, 0.5
    %v1095 = vadd.f32 %v1093, 0.5
    %v1096 = vadd.f32 %v1094, 0.5
    %v1097 = vtanh.pop %v1068
    %v1098 = vtanh.pop %v1072
    %v1099 = vmul.f32 %v1091, %v954
    %v1100 = vmul.f32 %v1092, %v955
    %v1101 = vmul.f32 %v1087, %v1097
    %v1102 = vmul.f32 %v1088, %v1098
    %v1103 = vadd.f32 %v1099, %v1101
    %v1104 = vadd.f32 %v1100, %v1102
    %v1105 = vtanh.pop %v1103
    %v1106 = vtanh.pop %v1104
    %v1107 = vmul.f32 %v1095, %v1105
    %v1108 = vmul.f32 %v1096, %v1106
    %v1109 = vpack.c.bf16 %v1108, %v1107
    %v1111 = vunpack.c.l.b16 %v1109
    %v1112 = vunpack.c.h.b16 %v1109
    %v1113 = vpack.c.b16 %v1111, %v1111
    %v1114 = vpack.c.b16 %v1112, %v1112
    %s1117 = scalar_lea.vmem %s4, 8
    %1118 = vst [vmem:[%s1117] sm:$0xf] %v1113
    %1119 = vst [vmem:[%s1117 + $0x4] sm:$0xf] %v1114
    %s1120 = scalar_lea.vmem [#allocation2], 128
    %v1121 = vld [vmem:[%s1120] sm:$0xff]
    %v1122 = vld [vmem:[%s1120 + $0x8] sm:$0xff]
    %v1123 = vld [vmem:[%s1120 + $0x10] sm:$0xff]
    %v1124 = vld [vmem:[%s1120 + $0x18] sm:$0xff]
    %v1125 = vld [vmem:[%s1120 + $0x20] sm:$0xff]
    %v1126 = vld [vmem:[%s1120 + $0x28] sm:$0xff]
    %v1127 = vld [vmem:[%s1120 + $0x30] sm:$0xff]
    %v1128 = vld [vmem:[%s1120 + $0x38] sm:$0xff]
    %1129 = vmatprep.subr.bf16.mxu0 %v767
    %1130 = vmatpush1.bf16.msra.mxu0 %v766
    %1131 = vmatprep.subr.bf16.mxu0 %v771
    %1132 = vmatpush1.bf16.msra.mxu0 %v770
    %1133 = vmatprep.subr.bf16.mxu0 %v775
    %1134 = vmatpush1.bf16.msra.mxu0 %v774
    %1135 = vmatprep.subr.bf16.mxu0 %v779
    %1136 = vmatpush1.bf16.msra.mxu0 %v778
    %1137 = vmatprep.subr.bf16.mxu0 %v783
    %1138 = vmatpush1.bf16.msra.mxu0 %v782
    %1139 = vmatprep.subr.bf16.mxu0 %v787
    %1140 = vmatpush1.bf16.msra.mxu0 %v786
    %1141 = vmatprep.subr.bf16.mxu0 %v791
    %1142 = vmatpush1.bf16.msra.mxu0 %v790
    %1143 = vmatprep.subr.bf16.mxu0 %v795
    %1144 = vmatpush1.bf16.msra.mxu0 %v794
    %1145 = vmatprep.subr.bf16.mxu0 0
    %1146 = vmatpush1.bf16.msra.mxu0 0
    %1147 = vmatprep.subr.bf16.mxu0 0
    %1148 = vmatpush1.bf16.msra.mxu0 0
    %1149 = vmatprep.subr.bf16.mxu0 0
    %1150 = vmatpush1.bf16.msra.mxu0 0
    %1151 = vmatprep.subr.bf16.mxu0 0
    %1152 = vmatpush1.bf16.msra.mxu0 0
    %1153 = vmatprep.subr.bf16.mxu0 0
    %1154 = vmatpush1.bf16.msra.mxu0 0
    %1155 = vmatprep.subr.bf16.mxu0 0
    %1156 = vmatpush1.bf16.msra.mxu0 0
    %1157 = vmatprep.subr.bf16.mxu0 0
    %1158 = vmatpush1.bf16.msra.mxu0 0
    %1159 = vmatprep.subr.bf16.mxu0 0
    %1160 = vmatpush1.bf16.msra.mxu0 0
    %1161 = vmatprep.mubr.bf16.mxu0 0
    %1162 = vmatmul.mubr.bf16.gmra.mrb[0].mxu0 %v1109
    %v1163 = vpop.f32.mrb[0].mxu0
    %v1164 = vadd.f32 0.0, %v1163
    %v1165 = vpop.f32.mrb[0].mxu0
    %v1166 = vadd.f32 0.0, %v1165
    %v1167 = vpop.f32.mrb[0].mxu0
    %v1168 = vadd.f32 0.0, %v1167
    %v1169 = vpop.f32.mrb[0].mxu0
    %v1170 = vadd.f32 0.0, %v1169
    %1171 = vdwg.mxu0
    %1172 = vmatprep.subr.bf16.mxu0 %v769
    %1173 = vmatpush1.bf16.msra.mxu0 %v768
    %1174 = vmatprep.subr.bf16.mxu0 %v773
    %1175 = vmatpush1.bf16.msra.mxu0 %v772
    %1176 = vmatprep.subr.bf16.mxu0 %v777
    %1177 = vmatpush1.bf16.msra.mxu0 %v776
    %1178 = vmatprep.subr.bf16.mxu0 %v781
    %1179 = vmatpush1.bf16.msra.mxu0 %v780
    %1180 = vmatprep.subr.bf16.mxu0 %v785
    %1181 = vmatpush1.bf16.msra.mxu0 %v784
    %1182 = vmatprep.subr.bf16.mxu0 %v789
    %1183 = vmatpush1.bf16.msra.mxu0 %v788
    %1184 = vmatprep.subr.bf16.mxu0 %v793
    %1185 = vmatpush1.bf16.msra.mxu0 %v792
    %1186 = vmatprep.subr.bf16.mxu0 %v797
    %1187 = vmatpush1.bf16.msra.mxu0 %v796
    %1188 = vmatprep.subr.bf16.mxu0 0
    %1189 = vmatpush1.bf16.msra.mxu0 0
    %1190 = vmatprep.subr.bf16.mxu0 0
    %1191 = vmatpush1.bf16.msra.mxu0 0
    %1192 = vmatprep.subr.bf16.mxu0 0
    %1193 = vmatpush1.bf16.msra.mxu0 0
    %1194 = vmatprep.subr.bf16.mxu0 0
    %1195 = vmatpush1.bf16.msra.mxu0 0
    %1196 = vmatprep.subr.bf16.mxu0 0
    %1197 = vmatpush1.bf16.msra.mxu0 0
    %1198 = vmatprep.subr.bf16.mxu0 0
    %1199 = vmatpush1.bf16.msra.mxu0 0
    %1200 = vmatprep.subr.bf16.mxu0 0
    %1201 = vmatpush1.bf16.msra.mxu0 0
    %1202 = vmatprep.subr.bf16.mxu0 0
    %1203 = vmatpush1.bf16.msra.mxu0 0
    %1204 = vmatprep.mubr.bf16.mxu0 0
    %1205 = vmatmul.mubr.bf16.gmra.mrb[0].mxu0 %v1109
    %v1206 = vpop.f32.mrb[0].mxu0
    %v1207 = vadd.f32 0.0, %v1206
    %v1208 = vpop.f32.mrb[0].mxu0
    %v1209 = vadd.f32 0.0, %v1208
    %v1210 = vpop.f32.mrb[0].mxu0
    %v1211 = vadd.f32 0.0, %v1210
    %v1212 = vpop.f32.mrb[0].mxu0
    %v1213 = vadd.f32 0.0, %v1212
    %1214 = vdwg.mxu0
    %v1215 = vadd.f32 %v1121, %v1164
    %v1216 = vadd.f32 %v1122, %v1166
    %v1217 = vadd.f32 %v1123, %v1207
    %v1218 = vadd.f32 %v1124, %v1209
    %v1219 = vadd.f32 %v1125, %v1168
    %v1220 = vadd.f32 %v1126, %v1170
    %v1221 = vadd.f32 %v1127, %v1211
    %v1222 = vadd.f32 %v1128, %v1213
    %v1223 = vmul.f32 %v1215, 0.5
    %v1224 = vmul.f32 %v1216, 0.5
    %v1225 = vmul.f32 %v1217, 0.5
    %v1226 = vmul.f32 %v1219, 0.5
    %v1227 = vmul.f32 %v1220, 0.5
    %v1228 = vmul.f32 %v1221, 0.5
    %v1229 = vtanh.pop %v1223
    %v1230 = vtanh.pop %v1224
    %v1231 = vtanh.pop %v1225
    %v1232 = vtanh.pop %v1226
    %v1233 = vtanh.pop %v1227
    %v1234 = vtanh.pop %v1228
    %v1235 = vmul.f32 %v1229, 0.5
    %v1236 = vmul.f32 %v1232, 0.5
    %v1237 = vadd.f32 %v1235, 0.5
    %v1238 = vadd.f32 %v1236, 0.5
    %v1239 = vmul.f32 %v1230, 0.5
    %v1240 = vmul.f32 %v1233, 0.5
    %v1241 = vadd.f32 %v1239, 0.5
    %v1242 = vadd.f32 %v1240, 0.5
    %v1243 = vmul.f32 %v1231, 0.5
    %v1244 = vmul.f32 %v1234, 0.5
    %v1245 = vadd.f32 %v1243, 0.5
    %v1246 = vadd.f32 %v1244, 0.5
    %v1247 = vtanh.pop %v1218
    %v1248 = vtanh.pop %v1222
    %v1249 = vmul.f32 %v1241, %v1103
    %v1250 = vmul.f32 %v1242, %v1104
    %v1251 = vmul.f32 %v1237, %v1247
    %v1252 = vmul.f32 %v1238, %v1248
    %v1253 = vadd.f32 %v1249, %v1251
    %v1254 = vadd.f32 %v1250, %v1252
    %v1255 = vtanh.pop %v1253
    %v1256 = vtanh.pop %v1254
    %v1257 = vmul.f32 %v1245, %v1255
    %v1258 = vmul.f32 %v1246, %v1256
    %v1259 = vpack.c.bf16 %v1258, %v1257
    %v1261 = vunpack.c.l.b16 %v1259
    %v1262 = vunpack.c.h.b16 %v1259
    %v1263 = vpack.c.b16 %v1261, %v1261
    %v1264 = vpack.c.b16 %v1262, %v1262
    %s1267 = scalar_lea.vmem %s4, 16
    %1268 = vst [vmem:[%s1267] sm:$0xf] %v1263
    %1269 = vst [vmem:[%s1267 + $0x4] sm:$0xf] %v1264
    %s1270 = scalar_lea.vmem [#allocation2], 192
    %v1271 = vld [vmem:[%s1270] sm:$0xff]
    %v1272 = vld [vmem:[%s1270 + $0x8] sm:$0xff]
    %v1273 = vld [vmem:[%s1270 + $0x10] sm:$0xff]
    %v1274 = vld [vmem:[%s1270 + $0x18] sm:$0xff]
    %v1275 = vld [vmem:[%s1270 + $0x20] sm:$0xff]
    %v1276 = vld [vmem:[%s1270 + $0x28] sm:$0xff]
    %v1277 = vld [vmem:[%s1270 + $0x30] sm:$0xff]
    %v1278 = vld [vmem:[%s1270 + $0x38] sm:$0xff]
    %1279 = vmatprep.subr.bf16.mxu0 %v767
    %1280 = vmatpush1.bf16.msra.mxu0 %v766
    %1281 = vmatprep.subr.bf16.mxu0 %v771
    %1282 = vmatpush1.bf16.msra.mxu0 %v770
    %1283 = vmatprep.subr.bf16.mxu0 %v775
    %1284 = vmatpush1.bf16.msra.mxu0 %v774
    %1285 = vmatprep.subr.bf16.mxu0 %v779
    %1286 = vmatpush1.bf16.msra.mxu0 %v778
    %1287 = vmatprep.subr.bf16.mxu0 %v783
    %1288 = vmatpush1.bf16.msra.mxu0 %v782
    %1289 = vmatprep.subr.bf16.mxu0 %v787
    %1290 = vmatpush1.bf16.msra.mxu0 %v786
    %1291 = vmatprep.subr.bf16.mxu0 %v791
    %1292 = vmatpush1.bf16.msra.mxu0 %v790
    %1293 = vmatprep.subr.bf16.mxu0 %v795
    %1294 = vmatpush1.bf16.msra.mxu0 %v794
    %1295 = vmatprep.subr.bf16.mxu0 0
    %1296 = vmatpush1.bf16.msra.mxu0 0
    %1297 = vmatprep.subr.bf16.mxu0 0
    %1298 = vmatpush1.bf16.msra.mxu0 0
    %1299 = vmatprep.subr.bf16.mxu0 0
    %1300 = vmatpush1.bf16.msra.mxu0 0
    %1301 = vmatprep.subr.bf16.mxu0 0
    %1302 = vmatpush1.bf16.msra.mxu0 0
    %1303 = vmatprep.subr.bf16.mxu0 0
    %1304 = vmatpush1.bf16.msra.mxu0 0
    %1305 = vmatprep.subr.bf16.mxu0 0
    %1306 = vmatpush1.bf16.msra.mxu0 0
    %1307 = vmatprep.subr.bf16.mxu0 0
    %1308 = vmatpush1.bf16.msra.mxu0 0
    %1309 = vmatprep.subr.bf16.mxu0 0
    %1310 = vmatpush1.bf16.msra.mxu0 0
    %1311 = vmatprep.mubr.bf16.mxu0 0
    %1312 = vmatmul.mubr.bf16.gmra.mrb[0].mxu0 %v1259
    %v1313 = vpop.f32.mrb[0].mxu0
    %v1314 = vadd.f32 0.0, %v1313
    %v1315 = vpop.f32.mrb[0].mxu0
    %v1316 = vadd.f32 0.0, %v1315
    %v1317 = vpop.f32.mrb[0].mxu0
    %v1318 = vadd.f32 0.0, %v1317
    %v1319 = vpop.f32.mrb[0].mxu0
    %v1320 = vadd.f32 0.0, %v1319
    %1321 = vdwg.mxu0
    %1322 = vmatprep.subr.bf16.mxu0 %v769
    %1323 = vmatpush1.bf16.msra.mxu0 %v768
    %1324 = vmatprep.subr.bf16.mxu0 %v773
    %1325 = vmatpush1.bf16.msra.mxu0 %v772
    %1326 = vmatprep.subr.bf16.mxu0 %v777
    %1327 = vmatpush1.bf16.msra.mxu0 %v776
    %1328 = vmatprep.subr.bf16.mxu0 %v781
    %1329 = vmatpush1.bf16.msra.mxu0 %v780
    %1330 = vmatprep.subr.bf16.mxu0 %v785
    %1331 = vmatpush1.bf16.msra.mxu0 %v784
    %1332 = vmatprep.subr.bf16.mxu0 %v789
    %1333 = vmatpush1.bf16.msra.mxu0 %v788
    %1334 = vmatprep.subr.bf16.mxu0 %v793
    %1335 = vmatpush1.bf16.msra.mxu0 %v792
    %1336 = vmatprep.subr.bf16.mxu0 %v797
    %1337 = vmatpush1.bf16.msra.mxu0 %v796
    %1338 = vmatprep.subr.bf16.mxu0 0
    %1339 = vmatpush1.bf16.msra.mxu0 0
    %1340 = vmatprep.subr.bf16.mxu0 0
    %1341 = vmatpush1.bf16.msra.mxu0 0
    %1342 = vmatprep.subr.bf16.mxu0 0
    %1343 = vmatpush1.bf16.msra.mxu0 0
    %1344 = vmatprep.subr.bf16.mxu0 0
    %1345 = vmatpush1.bf16.msra.mxu0 0
    %1346 = vmatprep.subr.bf16.mxu0 0
    %1347 = vmatpush1.bf16.msra.mxu0 0
    %1348 = vmatprep.subr.bf16.mxu0 0
    %1349 = vmatpush1.bf16.msra.mxu0 0
    %1350 = vmatprep.subr.bf16.mxu0 0
    %1351 = vmatpush1.bf16.msra.mxu0 0
    %1352 = vmatprep.subr.bf16.mxu0 0
    %1353 = vmatpush1.bf16.msra.mxu0 0
    %1354 = vmatprep.mubr.bf16.mxu0 0
    %1355 = vmatmul.mubr.bf16.gmra.mrb[0].mxu0 %v1259
    %v1356 = vpop.f32.mrb[0].mxu0
    %v1357 = vadd.f32 0.0, %v1356
    %v1358 = vpop.f32.mrb[0].mxu0
    %v1359 = vadd.f32 0.0, %v1358
    %v1360 = vpop.f32.mrb[0].mxu0
    %v1361 = vadd.f32 0.0, %v1360
    %v1362 = vpop.f32.mrb[0].mxu0
    %v1363 = vadd.f32 0.0, %v1362
    %1364 = vdwg.mxu0
    %v1365 = vadd.f32 %v1271, %v1314
    %v1366 = vadd.f32 %v1272, %v1316
    %v1367 = vadd.f32 %v1273, %v1357
    %v1368 = vadd.f32 %v1274, %v1359
    %v1369 = vadd.f32 %v1275, %v1318
    %v1370 = vadd.f32 %v1276, %v1320
    %v1371 = vadd.f32 %v1277, %v1361
    %v1372 = vadd.f32 %v1278, %v1363
    %v1373 = vmul.f32 %v1365, 0.5
    %v1374 = vmul.f32 %v1366, 0.5
    %v1375 = vmul.f32 %v1367, 0.5
    %v1376 = vmul.f32 %v1369, 0.5
    %v1377 = vmul.f32 %v1370, 0.5
    %v1378 = vmul.f32 %v1371, 0.5
    %v1379 = vtanh.pop %v1373
    %v1380 = vtanh.pop %v1374
    %v1381 = vtanh.pop %v1375
    %v1382 = vtanh.pop %v1376
    %v1383 = vtanh.pop %v1377
    %v1384 = vtanh.pop %v1378
    %v1385 = vmul.f32 %v1379, 0.5
    %v1386 = vmul.f32 %v1382, 0.5
    %v1387 = vadd.f32 %v1385, 0.5
    %v1388 = vadd.f32 %v1386, 0.5
    %v1389 = vmul.f32 %v1380, 0.5
    %v1390 = vmul.f32 %v1383, 0.5
    %v1391 = vadd.f32 %v1389, 0.5
    %v1392 = vadd.f32 %v1390, 0.5
    %v1393 = vmul.f32 %v1381, 0.5
    %v1394 = vmul.f32 %v1384, 0.5
    %v1395 = vadd.f32 %v1393, 0.5
    %v1396 = vadd.f32 %v1394, 0.5
    %v1397 = vtanh.pop %v1368
    %v1398 = vtanh.pop %v1372
    %v1399 = vmul.f32 %v1391, %v1253
    %v1400 = vmul.f32 %v1392, %v1254
    %v1401 = vmul.f32 %v1387, %v1397
    %v1402 = vmul.f32 %v1388, %v1398
    %v1403 = vadd.f32 %v1399, %v1401
    %v1404 = vadd.f32 %v1400, %v1402
    %v1405 = vtanh.pop %v1403
    %v1406 = vtanh.pop %v1404
    %v1407 = vmul.f32 %v1395, %v1405
    %v1408 = vmul.f32 %v1396, %v1406
    %v1409 = vpack.c.bf16 %v1408, %v1407
    %v1411 = vunpack.c.l.b16 %v1409
    %v1412 = vunpack.c.h.b16 %v1409
    %v1413 = vpack.c.b16 %v1411, %v1411
    %v1414 = vpack.c.b16 %v1412, %v1412
    %s1417 = scalar_lea.vmem %s4, 24
    %1418 = vst [vmem:[%s1417] sm:$0xf] %v1413
    %1419 = vst [vmem:[%s1417 + $0x4] sm:$0xf] %v1414
    %s1420 = scalar_lea.vmem [#allocation2], 256
    %v1421 = vld [vmem:[%s1420] sm:$0xff]
    %v1422 = vld [vmem:[%s1420 + $0x8] sm:$0xff]
    %v1423 = vld [vmem:[%s1420 + $0x10] sm:$0xff]
    %v1424 = vld [vmem:[%s1420 + $0x18] sm:$0xff]
    %v1425 = vld [vmem:[%s1420 + $0x20] sm:$0xff]
    %v1426 = vld [vmem:[%s1420 + $0x28] sm:$0xff]
    %v1427 = vld [vmem:[%s1420 + $0x30] sm:$0xff]
    %v1428 = vld [vmem:[%s1420 + $0x38] sm:$0xff]
    %1429 = vmatprep.subr.bf16.mxu0 %v767
    %1430 = vmatpush1.bf16.msra.mxu0 %v766
    %1431 = vmatprep.subr.bf16.mxu0 %v771
    %1432 = vmatpush1.bf16.msra.mxu0 %v770
    %1433 = vmatprep.subr.bf16.mxu0 %v775
    %1434 = vmatpush1.bf16.msra.mxu0 %v774
    %1435 = vmatprep.subr.bf16.mxu0 %v779
    %1436 = vmatpush1.bf16.msra.mxu0 %v778
    %1437 = vmatprep.subr.bf16.mxu0 %v783
    %1438 = vmatpush1.bf16.msra.mxu0 %v782
    %1439 = vmatprep.subr.bf16.mxu0 %v787
    %1440 = vmatpush1.bf16.msra.mxu0 %v786
    %1441 = vmatprep.subr.bf16.mxu0 %v791
    %1442 = vmatpush1.bf16.msra.mxu0 %v790
    %1443 = vmatprep.subr.bf16.mxu0 %v795
    %1444 = vmatpush1.bf16.msra.mxu0 %v794
    %1445 = vmatprep.subr.bf16.mxu0 0
    %1446 = vmatpush1.bf16.msra.mxu0 0
    %1447 = vmatprep.subr.bf16.mxu0 0
    %1448 = vmatpush1.bf16.msra.mxu0 0
    %1449 = vmatprep.subr.bf16.mxu0 0
    %1450 = vmatpush1.bf16.msra.mxu0 0
    %1451 = vmatprep.subr.bf16.mxu0 0
    %1452 = vmatpush1.bf16.msra.mxu0 0
    %1453 = vmatprep.subr.bf16.mxu0 0
    %1454 = vmatpush1.bf16.msra.mxu0 0
    %1455 = vmatprep.subr.bf16.mxu0 0
    %1456 = vmatpush1.bf16.msra.mxu0 0
    %1457 = vmatprep.subr.bf16.mxu0 0
    %1458 = vmatpush1.bf16.msra.mxu0 0
    %1459 = vmatprep.subr.bf16.mxu0 0
    %1460 = vmatpush1.bf16.msra.mxu0 0
    %1461 = vmatprep.mubr.bf16.mxu0 0
    %1462 = vmatmul.mubr.bf16.gmra.mrb[0].mxu0 %v1409
    %v1463 = vpop.f32.mrb[0].mxu0
    %v1464 = vadd.f32 0.0, %v1463
    %v1465 = vpop.f32.mrb[0].mxu0
    %v1466 = vadd.f32 0.0, %v1465
    %v1467 = vpop.f32.mrb[0].mxu0
    %v1468 = vadd.f32 0.0, %v1467
    %v1469 = vpop.f32.mrb[0].mxu0
    %v1470 = vadd.f32 0.0, %v1469
    %1471 = vdwg.mxu0
    %1472 = vmatprep.subr.bf16.mxu0 %v769
    %1473 = vmatpush1.bf16.msra.mxu0 %v768
    %1474 = vmatprep.subr.bf16.mxu0 %v773
    %1475 = vmatpush1.bf16.msra.mxu0 %v772
    %1476 = vmatprep.subr.bf16.mxu0 %v777
    %1477 = vmatpush1.bf16.msra.mxu0 %v776
    %1478 = vmatprep.subr.bf16.mxu0 %v781
    %1479 = vmatpush1.bf16.msra.mxu0 %v780
    %1480 = vmatprep.subr.bf16.mxu0 %v785
    %1481 = vmatpush1.bf16.msra.mxu0 %v784
    %1482 = vmatprep.subr.bf16.mxu0 %v789
    %1483 = vmatpush1.bf16.msra.mxu0 %v788
    %1484 = vmatprep.subr.bf16.mxu0 %v793
    %1485 = vmatpush1.bf16.msra.mxu0 %v792
    %1486 = vmatprep.subr.bf16.mxu0 %v797
    %1487 = vmatpush1.bf16.msra.mxu0 %v796
    %1488 = vmatprep.subr.bf16.mxu0 0
    %1489 = vmatpush1.bf16.msra.mxu0 0
    %1490 = vmatprep.subr.bf16.mxu0 0
    %1491 = vmatpush1.bf16.msra.mxu0 0
    %1492 = vmatprep.subr.bf16.mxu0 0
    %1493 = vmatpush1.bf16.msra.mxu0 0
    %1494 = vmatprep.subr.bf16.mxu0 0
    %1495 = vmatpush1.bf16.msra.mxu0 0
    %1496 = vmatprep.subr.bf16.mxu0 0
    %1497 = vmatpush1.bf16.msra.mxu0 0
    %1498 = vmatprep.subr.bf16.mxu0 0
    %1499 = vmatpush1.bf16.msra.mxu0 0
    %1500 = vmatprep.subr.bf16.mxu0 0
    %1501 = vmatpush1.bf16.msra.mxu0 0
    %1502 = vmatprep.subr.bf16.mxu0 0
    %1503 = vmatpush1.bf16.msra.mxu0 0
    %1504 = vmatprep.mubr.bf16.mxu0 0
    %1505 = vmatmul.mubr.bf16.gmra.mrb[0].mxu0 %v1409
    %v1506 = vpop.f32.mrb[0].mxu0
    %v1507 = vadd.f32 0.0, %v1506
    %v1508 = vpop.f32.mrb[0].mxu0
    %v1509 = vadd.f32 0.0, %v1508
    %v1510 = vpop.f32.mrb[0].mxu0
    %v1511 = vadd.f32 0.0, %v1510
    %v1512 = vpop.f32.mrb[0].mxu0
    %v1513 = vadd.f32 0.0, %v1512
    %1514 = vdwg.mxu0
    %v1515 = vadd.f32 %v1421, %v1464
    %v1516 = vadd.f32 %v1422, %v1466
    %v1517 = vadd.f32 %v1423, %v1507
    %v1518 = vadd.f32 %v1424, %v1509
    %v1519 = vadd.f32 %v1425, %v1468
    %v1520 = vadd.f32 %v1426, %v1470
    %v1521 = vadd.f32 %v1427, %v1511
    %v1522 = vadd.f32 %v1428, %v1513
    %v1523 = vmul.f32 %v1515, 0.5
    %v1524 = vmul.f32 %v1516, 0.5
    %v1525 = vmul.f32 %v1517, 0.5
    %v1526 = vmul.f32 %v1519, 0.5
    %v1527 = vmul.f32 %v1520, 0.5
    %v1528 = vmul.f32 %v1521, 0.5
    %v1529 = vtanh.pop %v1523
    %v1530 = vtanh.pop %v1524
    %v1531 = vtanh.pop %v1525
    %v1532 = vtanh.pop %v1526
    %v1533 = vtanh.pop %v1527
    %v1534 = vtanh.pop %v1528
    %v1535 = vmul.f32 %v1529, 0.5
    %v1536 = vmul.f32 %v1532, 0.5
    %v1537 = vadd.f32 %v1535, 0.5
    %v1538 = vadd.f32 %v1536, 0.5
    %v1539 = vmul.f32 %v1530, 0.5
    %v1540 = vmul.f32 %v1533, 0.5
    %v1541 = vadd.f32 %v1539, 0.5
    %v1542 = vadd.f32 %v1540, 0.5
    %v1543 = vmul.f32 %v1531, 0.5
    %v1544 = vmul.f32 %v1534, 0.5
    %v1545 = vadd.f32 %v1543, 0.5
    %v1546 = vadd.f32 %v1544, 0.5
    %v1547 = vtanh.pop %v1518
    %v1548 = vtanh.pop %v1522
    %v1549 = vmul.f32 %v1541, %v1403
    %v1550 = vmul.f32 %v1542, %v1404
    %v1551 = vmul.f32 %v1537, %v1547
    %v1552 = vmul.f32 %v1538, %v1548
    %v1553 = vadd.f32 %v1549, %v1551
    %v1554 = vadd.f32 %v1550, %v1552
    %v1555 = vtanh.pop %v1553
    %v1556 = vtanh.pop %v1554
    %v1557 = vmul.f32 %v1545, %v1555
    %v1558 = vmul.f32 %v1546, %v1556
    %v1559 = vpack.c.bf16 %v1558, %v1557
    %v1561 = vunpack.c.l.b16 %v1559
    %v1562 = vunpack.c.h.b16 %v1559
    %v1563 = vpack.c.b16 %v1561, %v1561
    %v1564 = vpack.c.b16 %v1562, %v1562
    %s1567 = scalar_lea.vmem %s4, 32
    %1568 = vst [vmem:[%s1567] sm:$0xf] %v1563
    %1569 = vst [vmem:[%s1567 + $0x4] sm:$0xf] %v1564
    %s1570 = scalar_lea.vmem [#allocation2], 320
    %v1571 = vld [vmem:[%s1570] sm:$0xff]
    %v1572 = vld [vmem:[%s1570 + $0x8] sm:$0xff]
    %v1573 = vld [vmem:[%s1570 + $0x10] sm:$0xff]
    %v1574 = vld [vmem:[%s1570 + $0x18] sm:$0xff]
    %v1575 = vld [vmem:[%s1570 + $0x20] sm:$0xff]
    %v1576 = vld [vmem:[%s1570 + $0x28] sm:$0xff]
    %v1577 = vld [vmem:[%s1570 + $0x30] sm:$0xff]
    %v1578 = vld [vmem:[%s1570 + $0x38] sm:$0xff]
    %1579 = vmatprep.subr.bf16.mxu0 %v767
    %1580 = vmatpush1.bf16.msra.mxu0 %v766
    %1581 = vmatprep.subr.bf16.mxu0 %v771
    %1582 = vmatpush1.bf16.msra.mxu0 %v770
    %1583 = vmatprep.subr.bf16.mxu0 %v775
    %1584 = vmatpush1.bf16.msra.mxu0 %v774
    %1585 = vmatprep.subr.bf16.mxu0 %v779
    %1586 = vmatpush1.bf16.msra.mxu0 %v778
    %1587 = vmatprep.subr.bf16.mxu0 %v783
    %1588 = vmatpush1.bf16.msra.mxu0 %v782
    %1589 = vmatprep.subr.bf16.mxu0 %v787
    %1590 = vmatpush1.bf16.msra.mxu0 %v786
    %1591 = vmatprep.subr.bf16.mxu0 %v791
    %1592 = vmatpush1.bf16.msra.mxu0 %v790
    %1593 = vmatprep.subr.bf16.mxu0 %v795
    %1594 = vmatpush1.bf16.msra.mxu0 %v794
    %1595 = vmatprep.subr.bf16.mxu0 0
    %1596 = vmatpush1.bf16.msra.mxu0 0
    %1597 = vmatprep.subr.bf16.mxu0 0
    %1598 = vmatpush1.bf16.msra.mxu0 0
    %1599 = vmatprep.subr.bf16.mxu0 0
    %1600 = vmatpush1.bf16.msra.mxu0 0
    %1601 = vmatprep.subr.bf16.mxu0 0
    %1602 = vmatpush1.bf16.msra.mxu0 0
    %1603 = vmatprep.subr.bf16.mxu0 0
    %1604 = vmatpush1.bf16.msra.mxu0 0
    %1605 = vmatprep.subr.bf16.mxu0 0
    %1606 = vmatpush1.bf16.msra.mxu0 0
    %1607 = vmatprep.subr.bf16.mxu0 0
    %1608 = vmatpush1.bf16.msra.mxu0 0
    %1609 = vmatprep.subr.bf16.mxu0 0
    %1610 = vmatpush1.bf16.msra.mxu0 0
    %1611 = vmatprep.mubr.bf16.mxu0 0
    %1612 = vmatmul.mubr.bf16.gmra.mrb[0].mxu0 %v1559
    %v1613 = vpop.f32.mrb[0].mxu0
    %v1614 = vadd.f32 0.0, %v1613
    %v1615 = vpop.f32.mrb[0].mxu0
    %v1616 = vadd.f32 0.0, %v1615
    %v1617 = vpop.f32.mrb[0].mxu0
    %v1618 = vadd.f32 0.0, %v1617
    %v1619 = vpop.f32.mrb[0].mxu0
    %v1620 = vadd.f32 0.0, %v1619
    %1621 = vdwg.mxu0
    %1622 = vmatprep.subr.bf16.mxu0 %v769
    %1623 = vmatpush1.bf16.msra.mxu0 %v768
    %1624 = vmatprep.subr.bf16.mxu0 %v773
    %1625 = vmatpush1.bf16.msra.mxu0 %v772
    %1626 = vmatprep.subr.bf16.mxu0 %v777
    %1627 = vmatpush1.bf16.msra.mxu0 %v776
    %1628 = vmatprep.subr.bf16.mxu0 %v781
    %1629 = vmatpush1.bf16.msra.mxu0 %v780
    %1630 = vmatprep.subr.bf16.mxu0 %v785
    %1631 = vmatpush1.bf16.msra.mxu0 %v784
    %1632 = vmatprep.subr.bf16.mxu0 %v789
    %1633 = vmatpush1.bf16.msra.mxu0 %v788
    %1634 = vmatprep.subr.bf16.mxu0 %v793
    %1635 = vmatpush1.bf16.msra.mxu0 %v792
    %1636 = vmatprep.subr.bf16.mxu0 %v797
    %1637 = vmatpush1.bf16.msra.mxu0 %v796
    %1638 = vmatprep.subr.bf16.mxu0 0
    %1639 = vmatpush1.bf16.msra.mxu0 0
    %1640 = vmatprep.subr.bf16.mxu0 0
    %1641 = vmatpush1.bf16.msra.mxu0 0
    %1642 = vmatprep.subr.bf16.mxu0 0
    %1643 = vmatpush1.bf16.msra.mxu0 0
    %1644 = vmatprep.subr.bf16.mxu0 0
    %1645 = vmatpush1.bf16.msra.mxu0 0
    %1646 = vmatprep.subr.bf16.mxu0 0
    %1647 = vmatpush1.bf16.msra.mxu0 0
    %1648 = vmatprep.subr.bf16.mxu0 0
    %1649 = vmatpush1.bf16.msra.mxu0 0
    %1650 = vmatprep.subr.bf16.mxu0 0
    %1651 = vmatpush1.bf16.msra.mxu0 0
    %1652 = vmatprep.subr.bf16.mxu0 0
    %1653 = vmatpush1.bf16.msra.mxu0 0
    %1654 = vmatprep.mubr.bf16.mxu0 0
    %1655 = vmatmul.mubr.bf16.gmra.mrb[0].mxu0 %v1559
    %v1656 = vpop.f32.mrb[0].mxu0
    %v1657 = vadd.f32 0.0, %v1656
    %v1658 = vpop.f32.mrb[0].mxu0
    %v1659 = vadd.f32 0.0, %v1658
    %v1660 = vpop.f32.mrb[0].mxu0
    %v1661 = vadd.f32 0.0, %v1660
    %v1662 = vpop.f32.mrb[0].mxu0
    %v1663 = vadd.f32 0.0, %v1662
    %1664 = vdwg.mxu0
    %v1665 = vadd.f32 %v1571, %v1614
    %v1666 = vadd.f32 %v1572, %v1616
    %v1667 = vadd.f32 %v1573, %v1657
    %v1668 = vadd.f32 %v1574, %v1659
    %v1669 = vadd.f32 %v1575, %v1618
    %v1670 = vadd.f32 %v1576, %v1620
    %v1671 = vadd.f32 %v1577, %v1661
    %v1672 = vadd.f32 %v1578, %v1663
    %v1673 = vmul.f32 %v1665, 0.5
    %v1674 = vmul.f32 %v1666, 0.5
    %v1675 = vmul.f32 %v1667, 0.5
    %v1676 = vmul.f32 %v1669, 0.5
    %v1677 = vmul.f32 %v1670, 0.5
    %v1678 = vmul.f32 %v1671, 0.5
    %v1679 = vtanh.pop %v1673
    %v1680 = vtanh.pop %v1674
    %v1681 = vtanh.pop %v1675
    %v1682 = vtanh.pop %v1676
    %v1683 = vtanh.pop %v1677
    %v1684 = vtanh.pop %v1678
    %v1685 = vmul.f32 %v1679, 0.5
    %v1686 = vmul.f32 %v1682, 0.5
    %v1687 = vadd.f32 %v1685, 0.5
    %v1688 = vadd.f32 %v1686, 0.5
    %v1689 = vmul.f32 %v1680, 0.5
    %v1690 = vmul.f32 %v1683, 0.5
    %v1691 = vadd.f32 %v1689, 0.5
    %v1692 = vadd.f32 %v1690, 0.5
    %v1693 = vmul.f32 %v1681, 0.5
    %v1694 = vmul.f32 %v1684, 0.5
    %v1695 = vadd.f32 %v1693, 0.5
    %v1696 = vadd.f32 %v1694, 0.5
    %v1697 = vtanh.pop %v1668
    %v1698 = vtanh.pop %v1672
    %v1699 = vmul.f32 %v1691, %v1553
    %v1700 = vmul.f32 %v1692, %v1554
    %v1701 = vmul.f32 %v1687, %v1697
    %v1702 = vmul.f32 %v1688, %v1698
    %v1703 = vadd.f32 %v1699, %v1701
    %v1704 = vadd.f32 %v1700, %v1702
    %v1705 = vtanh.pop %v1703
    %v1706 = vtanh.pop %v1704
    %v1707 = vmul.f32 %v1695, %v1705
    %v1708 = vmul.f32 %v1696, %v1706
    %v1709 = vpack.c.bf16 %v1708, %v1707
    %v1711 = vunpack.c.l.b16 %v1709
    %v1712 = vunpack.c.h.b16 %v1709
    %v1713 = vpack.c.b16 %v1711, %v1711
    %v1714 = vpack.c.b16 %v1712, %v1712
    %s1717 = scalar_lea.vmem %s4, 40
    %1718 = vst [vmem:[%s1717] sm:$0xf] %v1713
    %1719 = vst [vmem:[%s1717 + $0x4] sm:$0xf] %v1714
    %s1720 = scalar_lea.vmem [#allocation2], 384
    %v1721 = vld [vmem:[%s1720] sm:$0xff]
    %v1722 = vld [vmem:[%s1720 + $0x8] sm:$0xff]
    %v1723 = vld [vmem:[%s1720 + $0x10] sm:$0xff]
    %v1724 = vld [vmem:[%s1720 + $0x18] sm:$0xff]
    %v1725 = vld [vmem:[%s1720 + $0x20] sm:$0xff]
    %v1726 = vld [vmem:[%s1720 + $0x28] sm:$0xff]
    %v1727 = vld [vmem:[%s1720 + $0x30] sm:$0xff]
    %v1728 = vld [vmem:[%s1720 + $0x38] sm:$0xff]
    %1729 = vmatprep.subr.bf16.mxu0 %v767
    %1730 = vmatpush1.bf16.msra.mxu0 %v766
    %1731 = vmatprep.subr.bf16.mxu0 %v771
    %1732 = vmatpush1.bf16.msra.mxu0 %v770
    %1733 = vmatprep.subr.bf16.mxu0 %v775
    %1734 = vmatpush1.bf16.msra.mxu0 %v774
    %1735 = vmatprep.subr.bf16.mxu0 %v779
    %1736 = vmatpush1.bf16.msra.mxu0 %v778
    %1737 = vmatprep.subr.bf16.mxu0 %v783
    %1738 = vmatpush1.bf16.msra.mxu0 %v782
    %1739 = vmatprep.subr.bf16.mxu0 %v787
    %1740 = vmatpush1.bf16.msra.mxu0 %v786
    %1741 = vmatprep.subr.bf16.mxu0 %v791
    %1742 = vmatpush1.bf16.msra.mxu0 %v790
    %1743 = vmatprep.subr.bf16.mxu0 %v795
    %1744 = vmatpush1.bf16.msra.mxu0 %v794
    %1745 = vmatprep.subr.bf16.mxu0 0
    %1746 = vmatpush1.bf16.msra.mxu0 0
    %1747 = vmatprep.subr.bf16.mxu0 0
    %1748 = vmatpush1.bf16.msra.mxu0 0
    %1749 = vmatprep.subr.bf16.mxu0 0
    %1750 = vmatpush1.bf16.msra.mxu0 0
    %1751 = vmatprep.subr.bf16.mxu0 0
    %1752 = vmatpush1.bf16.msra.mxu0 0
    %1753 = vmatprep.subr.bf16.mxu0 0
    %1754 = vmatpush1.bf16.msra.mxu0 0
    %1755 = vmatprep.subr.bf16.mxu0 0
    %1756 = vmatpush1.bf16.msra.mxu0 0
    %1757 = vmatprep.subr.bf16.mxu0 0
    %1758 = vmatpush1.bf16.msra.mxu0 0
    %1759 = vmatprep.subr.bf16.mxu0 0
    %1760 = vmatpush1.bf16.msra.mxu0 0
    %1761 = vmatprep.mubr.bf16.mxu0 0
    %1762 = vmatmul.mubr.bf16.gmra.mrb[0].mxu0 %v1709
    %v1763 = vpop.f32.mrb[0].mxu0
    %v1764 = vadd.f32 0.0, %v1763
    %v1765 = vpop.f32.mrb[0].mxu0
    %v1766 = vadd.f32 0.0, %v1765
    %v1767 = vpop.f32.mrb[0].mxu0
    %v1768 = vadd.f32 0.0, %v1767
    %v1769 = vpop.f32.mrb[0].mxu0
    %v1770 = vadd.f32 0.0, %v1769
    %1771 = vdwg.mxu0
    %1772 = vmatprep.subr.bf16.mxu0 %v769
    %1773 = vmatpush1.bf16.msra.mxu0 %v768
    %1774 = vmatprep.subr.bf16.mxu0 %v773
    %1775 = vmatpush1.bf16.msra.mxu0 %v772
    %1776 = vmatprep.subr.bf16.mxu0 %v777
    %1777 = vmatpush1.bf16.msra.mxu0 %v776
    %1778 = vmatprep.subr.bf16.mxu0 %v781
    %1779 = vmatpush1.bf16.msra.mxu0 %v780
    %1780 = vmatprep.subr.bf16.mxu0 %v785
    %1781 = vmatpush1.bf16.msra.mxu0 %v784
    %1782 = vmatprep.subr.bf16.mxu0 %v789
    %1783 = vmatpush1.bf16.msra.mxu0 %v788
    %1784 = vmatprep.subr.bf16.mxu0 %v793
    %1785 = vmatpush1.bf16.msra.mxu0 %v792
    %1786 = vmatprep.subr.bf16.mxu0 %v797
    %1787 = vmatpush1.bf16.msra.mxu0 %v796
    %1788 = vmatprep.subr.bf16.mxu0 0
    %1789 = vmatpush1.bf16.msra.mxu0 0
    %1790 = vmatprep.subr.bf16.mxu0 0
    %1791 = vmatpush1.bf16.msra.mxu0 0
    %1792 = vmatprep.subr.bf16.mxu0 0
    %1793 = vmatpush1.bf16.msra.mxu0 0
    %1794 = vmatprep.subr.bf16.mxu0 0
    %1795 = vmatpush1.bf16.msra.mxu0 0
    %1796 = vmatprep.subr.bf16.mxu0 0
    %1797 = vmatpush1.bf16.msra.mxu0 0
    %1798 = vmatprep.subr.bf16.mxu0 0
    %1799 = vmatpush1.bf16.msra.mxu0 0
    %1800 = vmatprep.subr.bf16.mxu0 0
    %1801 = vmatpush1.bf16.msra.mxu0 0
    %1802 = vmatprep.subr.bf16.mxu0 0
    %1803 = vmatpush1.bf16.msra.mxu0 0
    %1804 = vmatprep.mubr.bf16.mxu0 0
    %1805 = vmatmul.mubr.bf16.gmra.mrb[0].mxu0 %v1709
    %v1806 = vpop.f32.mrb[0].mxu0
    %v1807 = vadd.f32 0.0, %v1806
    %v1808 = vpop.f32.mrb[0].mxu0
    %v1809 = vadd.f32 0.0, %v1808
    %v1810 = vpop.f32.mrb[0].mxu0
    %v1811 = vadd.f32 0.0, %v1810
    %v1812 = vpop.f32.mrb[0].mxu0
    %v1813 = vadd.f32 0.0, %v1812
    %1814 = vdwg.mxu0
    %v1815 = vadd.f32 %v1721, %v1764
    %v1816 = vadd.f32 %v1722, %v1766
    %v1817 = vadd.f32 %v1723, %v1807
    %v1818 = vadd.f32 %v1724, %v1809
    %v1819 = vadd.f32 %v1725, %v1768
    %v1820 = vadd.f32 %v1726, %v1770
    %v1821 = vadd.f32 %v1727, %v1811
    %v1822 = vadd.f32 %v1728, %v1813
    %v1823 = vmul.f32 %v1815, 0.5
    %v1824 = vmul.f32 %v1816, 0.5
    %v1825 = vmul.f32 %v1817, 0.5
    %v1826 = vmul.f32 %v1819, 0.5
    %v1827 = vmul.f32 %v1820, 0.5
    %v1828 = vmul.f32 %v1821, 0.5
    %v1829 = vtanh.pop %v1823
    %v1830 = vtanh.pop %v1824
    %v1831 = vtanh.pop %v1825
    %v1832 = vtanh.pop %v1826
    %v1833 = vtanh.pop %v1827
    %v1834 = vtanh.pop %v1828
    %v1835 = vmul.f32 %v1829, 0.5
    %v1836 = vmul.f32 %v1832, 0.5
    %v1837 = vadd.f32 %v1835, 0.5
    %v1838 = vadd.f32 %v1836, 0.5
    %v1839 = vmul.f32 %v1830, 0.5
    %v1840 = vmul.f32 %v1833, 0.5
    %v1841 = vadd.f32 %v1839, 0.5
    %v1842 = vadd.f32 %v1840, 0.5
    %v1843 = vmul.f32 %v1831, 0.5
    %v1844 = vmul.f32 %v1834, 0.5
    %v1845 = vadd.f32 %v1843, 0.5
    %v1846 = vadd.f32 %v1844, 0.5
    %v1847 = vtanh.pop %v1818
    %v1848 = vtanh.pop %v1822
    %v1849 = vmul.f32 %v1841, %v1703
    %v1850 = vmul.f32 %v1842, %v1704
    %v1851 = vmul.f32 %v1837, %v1847
    %v1852 = vmul.f32 %v1838, %v1848
    %v1853 = vadd.f32 %v1849, %v1851
    %v1854 = vadd.f32 %v1850, %v1852
    %v1855 = vtanh.pop %v1853
    %v1856 = vtanh.pop %v1854
    %v1857 = vmul.f32 %v1845, %v1855
    %v1858 = vmul.f32 %v1846, %v1856
    %v1859 = vpack.c.bf16 %v1858, %v1857
    %v1861 = vunpack.c.l.b16 %v1859
    %v1862 = vunpack.c.h.b16 %v1859
    %v1863 = vpack.c.b16 %v1861, %v1861
    %v1864 = vpack.c.b16 %v1862, %v1862
    %s1867 = scalar_lea.vmem %s4, 48
    %1868 = vst [vmem:[%s1867] sm:$0xf] %v1863
    %1869 = vst [vmem:[%s1867 + $0x4] sm:$0xf] %v1864
    %s1870 = scalar_lea.vmem [#allocation2], 448
    %v1871 = vld [vmem:[%s1870] sm:$0xff]
    %v1872 = vld [vmem:[%s1870 + $0x8] sm:$0xff]
    %v1873 = vld [vmem:[%s1870 + $0x10] sm:$0xff]
    %v1874 = vld [vmem:[%s1870 + $0x18] sm:$0xff]
    %v1875 = vld [vmem:[%s1870 + $0x20] sm:$0xff]
    %v1876 = vld [vmem:[%s1870 + $0x28] sm:$0xff]
    %v1877 = vld [vmem:[%s1870 + $0x30] sm:$0xff]
    %v1878 = vld [vmem:[%s1870 + $0x38] sm:$0xff]
    %1879 = vmatprep.subr.bf16.mxu0 %v767
    %1880 = vmatpush1.bf16.msra.mxu0 %v766
    %1881 = vmatprep.subr.bf16.mxu0 %v771
    %1882 = vmatpush1.bf16.msra.mxu0 %v770
    %1883 = vmatprep.subr.bf16.mxu0 %v775
    %1884 = vmatpush1.bf16.msra.mxu0 %v774
    %1885 = vmatprep.subr.bf16.mxu0 %v779
    %1886 = vmatpush1.bf16.msra.mxu0 %v778
    %1887 = vmatprep.subr.bf16.mxu0 %v783
    %1888 = vmatpush1.bf16.msra.mxu0 %v782
    %1889 = vmatprep.subr.bf16.mxu0 %v787
    %1890 = vmatpush1.bf16.msra.mxu0 %v786
    %1891 = vmatprep.subr.bf16.mxu0 %v791
    %1892 = vmatpush1.bf16.msra.mxu0 %v790
    %1893 = vmatprep.subr.bf16.mxu0 %v795
    %1894 = vmatpush1.bf16.msra.mxu0 %v794
    %1895 = vmatprep.subr.bf16.mxu0 0
    %1896 = vmatpush1.bf16.msra.mxu0 0
    %1897 = vmatprep.subr.bf16.mxu0 0
    %1898 = vmatpush1.bf16.msra.mxu0 0
    %1899 = vmatprep.subr.bf16.mxu0 0
    %1900 = vmatpush1.bf16.msra.mxu0 0
    %1901 = vmatprep.subr.bf16.mxu0 0
    %1902 = vmatpush1.bf16.msra.mxu0 0
    %1903 = vmatprep.subr.bf16.mxu0 0
    %1904 = vmatpush1.bf16.msra.mxu0 0
    %1905 = vmatprep.subr.bf16.mxu0 0
    %1906 = vmatpush1.bf16.msra.mxu0 0
    %1907 = vmatprep.subr.bf16.mxu0 0
    %1908 = vmatpush1.bf16.msra.mxu0 0
    %1909 = vmatprep.subr.bf16.mxu0 0
    %1910 = vmatpush1.bf16.msra.mxu0 0
    %1911 = vmatprep.mubr.bf16.mxu0 0
    %1912 = vmatmul.mubr.bf16.gmra.mrb[0].mxu0 %v1859
    %v1913 = vpop.f32.mrb[0].mxu0
    %v1914 = vadd.f32 0.0, %v1913
    %v1915 = vpop.f32.mrb[0].mxu0
    %v1916 = vadd.f32 0.0, %v1915
    %v1917 = vpop.f32.mrb[0].mxu0
    %v1918 = vadd.f32 0.0, %v1917
    %v1919 = vpop.f32.mrb[0].mxu0
    %v1920 = vadd.f32 0.0, %v1919
    %1921 = vdwg.mxu0
    %1922 = vmatprep.subr.bf16.mxu0 %v769
    %1923 = vmatpush1.bf16.msra.mxu0 %v768
    %1924 = vmatprep.subr.bf16.mxu0 %v773
    %1925 = vmatpush1.bf16.msra.mxu0 %v772
    %1926 = vmatprep.subr.bf16.mxu0 %v777
    %1927 = vmatpush1.bf16.msra.mxu0 %v776
    %1928 = vmatprep.subr.bf16.mxu0 %v781
    %1929 = vmatpush1.bf16.msra.mxu0 %v780
    %1930 = vmatprep.subr.bf16.mxu0 %v785
    %1931 = vmatpush1.bf16.msra.mxu0 %v784
    %1932 = vmatprep.subr.bf16.mxu0 %v789
    %1933 = vmatpush1.bf16.msra.mxu0 %v788
    %1934 = vmatprep.subr.bf16.mxu0 %v793
    %1935 = vmatpush1.bf16.msra.mxu0 %v792
    %1936 = vmatprep.subr.bf16.mxu0 %v797
    %1937 = vmatpush1.bf16.msra.mxu0 %v796
    %1938 = vmatprep.subr.bf16.mxu0 0
    %1939 = vmatpush1.bf16.msra.mxu0 0
    %1940 = vmatprep.subr.bf16.mxu0 0
    %1941 = vmatpush1.bf16.msra.mxu0 0
    %1942 = vmatprep.subr.bf16.mxu0 0
    %1943 = vmatpush1.bf16.msra.mxu0 0
    %1944 = vmatprep.subr.bf16.mxu0 0
    %1945 = vmatpush1.bf16.msra.mxu0 0
    %1946 = vmatprep.subr.bf16.mxu0 0
    %1947 = vmatpush1.bf16.msra.mxu0 0
    %1948 = vmatprep.subr.bf16.mxu0 0
    %1949 = vmatpush1.bf16.msra.mxu0 0
    %1950 = vmatprep.subr.bf16.mxu0 0
    %1951 = vmatpush1.bf16.msra.mxu0 0
    %1952 = vmatprep.subr.bf16.mxu0 0
    %1953 = vmatpush1.bf16.msra.mxu0 0
    %1954 = vmatprep.mubr.bf16.mxu0 0
    %1955 = vmatmul.mubr.bf16.gmra.mrb[0].mxu0 %v1859
    %v1956 = vpop.f32.mrb[0].mxu0
    %v1957 = vadd.f32 0.0, %v1956
    %v1958 = vpop.f32.mrb[0].mxu0
    %v1959 = vadd.f32 0.0, %v1958
    %v1960 = vpop.f32.mrb[0].mxu0
    %v1961 = vadd.f32 0.0, %v1960
    %v1962 = vpop.f32.mrb[0].mxu0
    %v1963 = vadd.f32 0.0, %v1962
    %1964 = vdwg.mxu0
    %v1965 = vadd.f32 %v1871, %v1914
    %v1966 = vadd.f32 %v1872, %v1916
    %v1967 = vadd.f32 %v1873, %v1957
    %v1968 = vadd.f32 %v1874, %v1959
    %v1969 = vadd.f32 %v1875, %v1918
    %v1970 = vadd.f32 %v1876, %v1920
    %v1971 = vadd.f32 %v1877, %v1961
    %v1972 = vadd.f32 %v1878, %v1963
    %v1973 = vmul.f32 %v1965, 0.5
    %v1974 = vmul.f32 %v1966, 0.5
    %v1975 = vmul.f32 %v1967, 0.5
    %v1976 = vmul.f32 %v1969, 0.5
    %v1977 = vmul.f32 %v1970, 0.5
    %v1978 = vmul.f32 %v1971, 0.5
    %v1979 = vtanh.pop %v1973
    %v1980 = vtanh.pop %v1974
    %v1981 = vtanh.pop %v1975
    %v1982 = vtanh.pop %v1976
    %v1983 = vtanh.pop %v1977
    %v1984 = vtanh.pop %v1978
    %v1985 = vmul.f32 %v1979, 0.5
    %v1986 = vmul.f32 %v1982, 0.5
    %v1987 = vadd.f32 %v1985, 0.5
    %v1988 = vadd.f32 %v1986, 0.5
    %v1989 = vmul.f32 %v1980, 0.5
    %v1990 = vmul.f32 %v1983, 0.5
    %v1991 = vadd.f32 %v1989, 0.5
    %v1992 = vadd.f32 %v1990, 0.5
    %v1993 = vmul.f32 %v1981, 0.5
    %v1994 = vmul.f32 %v1984, 0.5
    %v1995 = vadd.f32 %v1993, 0.5
    %v1996 = vadd.f32 %v1994, 0.5
    %v1997 = vtanh.pop %v1968
    %v1998 = vtanh.pop %v1972
    %v1999 = vmul.f32 %v1991, %v1853
    %v2000 = vmul.f32 %v1992, %v1854
    %v2001 = vmul.f32 %v1987, %v1997
    %v2002 = vmul.f32 %v1988, %v1998
    %v2003 = vadd.f32 %v1999, %v2001
    %v2004 = vadd.f32 %v2000, %v2002
    %v2005 = vtanh.pop %v2003
    %v2006 = vtanh.pop %v2004
    %v2007 = vmul.f32 %v1995, %v2005
    %v2008 = vmul.f32 %v1996, %v2006
    %v2009 = vpack.c.bf16 %v2008, %v2007
    %v2011 = vunpack.c.l.b16 %v2009
    %v2012 = vunpack.c.h.b16 %v2009
    %v2013 = vpack.c.b16 %v2011, %v2011
    %v2014 = vpack.c.b16 %v2012, %v2012
    %s2017 = scalar_lea.vmem %s4, 56
    %2018 = vst [vmem:[%s2017] sm:$0xf] %v2013
    %2019 = vst [vmem:[%s2017 + $0x4] sm:$0xf] %v2014
    %2020 = vst [vmem:[#allocation3] sm:$0xff] %v2007
    %2021 = vst [vmem:[#allocation3 + $0x8] sm:$0xff] %v2008
    %2022 = vst [vmem:[#allocation4] sm:$0xff] %v2003
    %2023 = vst [vmem:[#allocation4 + $0x8] sm:$0xff] %v2004
    // Predicated region
    $region30: #{lstm_encoder_forward.2} parent=1 // pred_check
      %p2024 = pneg %p49
    $region31: #{lstm_encoder_forward.2} parent=1 // pred_check_branch
      %2026 = sbr.rel (%p2024) target = $region33
    $region32: #{lstm_encoder_forward.2} parent=1 // pred_region
      %2027 = vst [vmem:[%s5] sm:$0xff] %v2007
      %2028 = vst [vmem:[%s5 + $0x8] sm:$0xff] %v2008
      %2029 = vst [vmem:[%s6] sm:$0xff] %v2003
      %2030 = vst [vmem:[%s6 + $0x8] sm:$0xff] %v2004
    $region33: #{lstm_encoder_forward.2} parent=1 // pred_fallthru
      _
    // Predicated region
    $region34: #{lstm_encoder_forward.2} parent=1 // pred_check
      _
    $region35: #{lstm_encoder_forward.2} parent=1 // pred_check_branch
      %2032 = sbr.rel (0) target = $region37
    $region36: #{lstm_encoder_forward.2} parent=1 // pred_region
      _
    $region37: #{lstm_encoder_forward.2} parent=1 // pred_fallthru
      _
    // Predicated region
    $region38: #{lstm_encoder_forward.2} parent=1 // pred_check
      _
    $region39: #{lstm_encoder_forward.2} parent=1 // pred_check_branch
      %2034 = sbr.rel (0) target = $region41
    $region40: #{lstm_encoder_forward.2} parent=1 // pred_region
      _
    $region41: #{lstm_encoder_forward.2} parent=1 // pred_fallthru
      _
    // Predicated region
    $region42: #{lstm_encoder_forward.2} parent=1 // pred_check
      _
    $region43: #{lstm_encoder_forward.2} parent=1 // pred_check_branch
      %2036 = sbr.rel (0) target = $region45
    $region44: #{lstm_encoder_forward.2} parent=1 // pred_region
      _
    $region45: #{lstm_encoder_forward.2} parent=1 // pred_fallthru
      _
    // Predicated region
    $region46: #{lstm_encoder_forward.2} parent=1 // pred_check
      _
    $region47: #{lstm_encoder_forward.2} parent=1 // pred_check_branch
      %2038 = sbr.rel (0) target = $region49
    $region48: #{lstm_encoder_forward.2} parent=1 // pred_region
      _
    $region49: #{lstm_encoder_forward.2} parent=1 // pred_fallthru
      _
    // Predicated region
    $region50: #{lstm_encoder_forward.2} parent=1 // pred_check
      _
    $region51: #{lstm_encoder_forward.2} parent=1 // pred_check_branch
      %2040 = sbr.rel (0) target = $region53
    $region52: #{lstm_encoder_forward.2} parent=1 // pred_region
      _
    $region53: #{lstm_encoder_forward.2} parent=1 // pred_fallthru
      _
    // Predicated region
    $region54: #{lstm_encoder_forward.2} parent=1 // pred_check
      _
    $region55: #{lstm_encoder_forward.2} parent=1 // pred_check_branch
      %2042 = sbr.rel (0) target = $region57
    $region56: #{lstm_encoder_forward.2} parent=1 // pred_region
      _
    $region57: #{lstm_encoder_forward.2} parent=1 // pred_fallthru
      _
    %2043 = vsyncpa [#allocation6], 1
    %2044 = vsyncpa [#allocation8], 1

</llo_original>
